<compile_context>
chip_gen: v5e
topology: v5e:2x2
jax: 0.10.0
libtpu: 0.0.40
codegen_flags: <defaults>
</compile_context>

<pallas_src>
import functools

import jax
import jax.numpy as jnp
from jax.experimental import pallas as pl
from jax.experimental.pallas import tpu as pltpu


def _pos_embed_kernel(x_ref, tri_ref, emb_ref, out_ref, carry_ref, *, padding_idx):
    ti = pl.program_id(2)  # seq axis (innermost, "arbitrary", carries cumsum)

    # New (batch, D) tile: reset the running cumsum carry.
    @pl.when(ti == 0)
    def _():
        carry_ref[...] = jnp.zeros_like(carry_ref)

    x = x_ref[...]                                        # (tb, tq) int32
    tb, tq = x.shape
    rows, tD = emb_ref.shape

    # Inclusive cumsum within this seq tile on the MXU (bf16 0/1 inputs,
    # f32 accumulation -> exact).
    mask = (x != padding_idx).astype(jnp.bfloat16)        # (tb, tq)
    tri = tri_ref[...]                                    # (tq, tq) bf16, tri[k, t] = (k <= t)
    local = jnp.dot(mask, tri, preferred_element_type=jnp.float32)   # (tb, tq) f32

    carry = carry_ref[...]                                # (tb, 1) f32
    pos = (local + carry).astype(jnp.int32)               # values in [0, T]
    carry_ref[...] = carry + local[:, -1:]                # carry this tile's total

    # One-hot MXU gather of the resident table window (exact: exactly one
    # nonzero f32 term per output row).
    row_ids = jax.lax.broadcasted_iota(jnp.int32, (tb, tq, rows), 2)
    one_hot = (pos[:, :, None] == row_ids).astype(jnp.float32)       # (tb, tq, rows)
    gathered = jnp.dot(one_hot.reshape(tb * tq, rows), emb_ref[...],
                       preferred_element_type=jnp.float32)           # (tb*tq, tD)
    # tq is a multiple of 8 (or the full T), so this reshape is layout-preserving.
    out_ref[...] = gathered.reshape(tb, tq, tD).astype(out_ref.dtype)


def learned_pos_embedding(x, emb_weight, padding_idx=3, *, tb=None, tq=None, tD=None):
    """x: (B, T) int32 token ids; emb_weight: (V, D) float32 with V > T."""
    B, T = x.shape
    V, D = emb_weight.shape
    assert V > T, "cumsum positions can reach T; embedding table must cover it"
    assert D % 128 == 0, "embedding_dim must be a multiple of 128 for lane-dense stores"

    # Positions lie in [0, T]; window only the first rows_pad rows of the full
    # table via the BlockSpec (no wrapper slice / HBM copy). rows_pad is a
    # multiple of 8 or the full V, satisfying the (8, 128) block rule.
    rows_pad = min(V, ((T + 1 + 7) // 8) * 8)

    # Seq tile: 256 matches the v6e/v7x 256x256 MXU and halves seq grid steps;
    # 128 otherwise; full T as a fallback.
    if tq is None:
        if T % 256 == 0:
            tq = 256
        elif T % 128 == 0:
            tq = 128
        else:
            tq = T
    assert T % tq == 0 and (tq % 128 == 0 or tq == T)

    # Batch tile: sublane-legal (multiple of 8 or full B), grown toward ~4 MiB
    # f32 output blocks (the kernel is HBM-store-bound) while keeping the
    # one-hot intermediate bounded and >= 2 parallel batch tiles when possible.
    if tb is None:
        if B % 8 != 0:
            tb = B
        else:
            tb = 8
            out_budget = 4 << 20       # ~4 MiB output block
            onehot_budget = 16 << 20   # cap the (tb, tq, rows) f32 intermediate
            while (B % (tb * 2) == 0
                   and B // (tb * 2) >= 2
                   and (tb * 2) * tq * D * 4 <= out_budget
                   and (tb * 2) * tq * rows_pad * 4 <= onehot_budget):
                tb *= 2
    assert B % tb == 0

    # D tile: normally the full D (one lane-dense slab). If there is only one
    # batch tile, split D so v7x's second TensorCore gets parallel work.
    if tD is None:
        tD = D
        if B // tb < 2 and D % 256 == 0:
            tD = D // 2
    assert D % tD == 0 and tD % 128 == 0

    # (tq, tq) upper-triangular ones, bf16, built once and VMEM-resident.
    tri = jnp.triu(jnp.ones((tq, tq), dtype=jnp.bfloat16))

    grid = (B // tb, D // tD, T // tq)
    n_d = D // tD

    cost = pl.CostEstimate(
        flops=2 * B * T * tq * n_d + 2 * B * T * rows_pad * D,
        transcendentals=0,
        bytes_accessed=B * T * D * 4 + B * T * 4 * n_d + rows_pad * D * 4 + tq * tq * 2,
    )

    # Rough VMEM budget: double-buffered x/out, single-buffered residents,
    # one-hot + matmul intermediates; generous headroom but within 64 MiB-class
    # limits unless the tiles genuinely need more.
    vmem_bytes = (2 * tb * tq * 4
                  + tq * tq * 2
                  + rows_pad * tD * 4
                  + 2 * tb * tq * tD * 4
                  + tb * tq * rows_pad * 4
                  + 2 * tb * tq * tD * 4)
    vmem_limit = min(max(2 * vmem_bytes, 32 * 1024 * 1024), 128 * 1024 * 1024)

    kernel = functools.partial(_pos_embed_kernel, padding_idx=padding_idx)

    return pl.pallas_call(
        kernel,
        out_shape=jax.ShapeDtypeStruct((B, T, D), emb_weight.dtype),
        grid_spec=pltpu.PrefetchScalarGridSpec(
            num_scalar_prefetch=0,
            grid=grid,
            in_specs=[
                # x tile (re-fetched per D tile; negligible bytes)
                pl.BlockSpec((tb, tq), lambda bi, di, ti: (bi, ti)),
                # tri: resident, single-buffered
                pl.BlockSpec((tq, tq), lambda bi, di, ti: (0, 0),
                             pipeline_mode=pl.Buffered(1)),
                # embedding-table window: resident per D tile, single-buffered
                pl.BlockSpec((rows_pad, tD), lambda bi, di, ti: (0, di),
                             pipeline_mode=pl.Buffered(1)),
            ],
            out_specs=pl.BlockSpec((tb, tq, tD), lambda bi, di, ti: (bi, ti, di)),
            scratch_shapes=[pltpu.VMEM((tb, 1), jnp.float32)],   # cumsum carry
        ),
        compiler_params=pltpu.CompilerParams(
            # batch and D tiles are independent (megacore / v7x 2-TC sharding);
            # the seq axis carries the cumsum and must run in order.
            dimension_semantics=("parallel", "parallel", "arbitrary"),
            vmem_limit_bytes=vmem_limit,
        ),
        cost_estimate=cost,
    )(x, tri, emb_weight)


def _reference(x, emb_weight, padding_idx=3):
    mask = (x != padding_idx).astype(jnp.int32)
    pos = jnp.cumsum(mask, axis=1)
    return emb_weight[pos]


if __name__ == "__main__":
    # Small, module-consistent shapes: num_embeddings=512 -> 513-row table,
    # embedding_dim=128 (lane-dense), batch=2, seq=512 (two 256-wide seq tiles,
    # exercising the carried cumsum across seq tiles).
    num_embeddings, embedding_dim = 512, 128
    V = num_embeddings + 1            # module does num_embeddings + 1
    B, T = 2, 512
    padding_idx = 3                   # forward() default

    key = jax.random.PRNGKey(0)
    k_emb, k_x = jax.random.split(key)

    # nn.Embedding init: N(0, 1), with internal padding_idx (=0) row zeroed.
    emb_weight = jax.random.normal(k_emb, (V, embedding_dim), dtype=jnp.float32)
    emb_weight = emb_weight.at[0].set(0.0)

    # Token ids in [0, 10); padding_idx=3 appears naturally.
    x = jax.random.randint(k_x, (B, T), 0, 10, dtype=jnp.int32)

    out = learned_pos_embedding(x, emb_weight, padding_idx=padding_idx)
    out = jax.block_until_ready(out)

    ref = _reference(x, emb_weight, padding_idx=padding_idx)
    assert out.shape == (B, T, embedding_dim)
    assert jnp.allclose(out, ref, atol=1e-6), "mismatch vs reference"

    print("KERNEL_OK")
</pallas_src>

<mosaic_0001>
module attributes {stable_mosaic.version = 11 : i64} {
  func.func @_pos_embed_kernel(%arg0: i32, %arg1: i32, %arg2: i32, %arg3: memref<2x256xi32, #tpu.memory_space<vmem>>, %arg4: memref<256x256xbf16, #tpu.memory_space<vmem>>, %arg5: memref<513x128xf32, #tpu.memory_space<vmem>>, %arg6: memref<2x256x128xf32, #tpu.memory_space<vmem>>, %arg7: memref<2x1xf32, #tpu.memory_space<vmem>>) attributes {dimension_semantics = [#tpu.dimension_semantics<parallel>, #tpu.dimension_semantics<parallel>, #tpu.dimension_semantics<arbitrary>], iteration_bounds = array<i64: 1, 1, 2>, scalar_prefetch = 0 : i64, scratch_operands = 1 : i64, tpu.core_type = #tpu.core_type<tc>, window_params = [{transform_indices = @transform_0, window_bounds = array<i64: 2, 256>}, {pipeline_mode = #tpu.pipeline_mode<synchronous>, transform_indices = @transform_1, window_bounds = array<i64: 256, 256>}, {pipeline_mode = #tpu.pipeline_mode<synchronous>, transform_indices = @transform_2, window_bounds = array<i64: 513, 128>}, {transform_indices = @transform_3, window_bounds = array<i64: 2, 256, 128>}]} {
    %c0_i32 = arith.constant 0 : i32
    %0 = arith.cmpi eq, %arg2, %c0_i32 : i32
    %1 = arith.extui %0 : i1 to i32
    %c0_i32_0 = arith.constant 0 : i32
    %2 = arith.cmpi ne, %1, %c0_i32_0 : i32
    scf.if %2 {
      %cst_14 = arith.constant 0.000000e+00 : f32
      %29 = vector.broadcast %cst_14 : f32 to vector<2x1xf32>
      %c0_15 = arith.constant 0 : index
      %c0_16 = arith.constant 0 : index
      %30 = vector.load %arg7[%c0_15, %c0_16] : memref<2x1xf32, #tpu.memory_space<vmem>>, vector<2x1xf32>
      tpu.vector_store %arg7[%c0_15, %c0_16], %29 {strides = array<i32>} : memref<2x1xf32, #tpu.memory_space<vmem>>, vector<2x1xf32>,
    } else {
    }
    %c0 = arith.constant 0 : index
    %c0_1 = arith.constant 0 : index
    %3 = vector.load %arg3[%c0, %c0_1] : memref<2x256xi32, #tpu.memory_space<vmem>>, vector<2x256xi32>
    %c3_i32 = arith.constant 3 : i32
    %4 = vector.broadcast %c3_i32 : i32 to vector<2x256xi32>
    %5 = arith.cmpi ne, %3, %4 : vector<2x256xi32>
    %6 = arith.extui %5 : vector<2x256xi1> to vector<2x256xi32>
    %7 = arith.sitofp %6 : vector<2x256xi32> to vector<2x256xf32>
    %8 = arith.truncf %7 : vector<2x256xf32> to vector<2x256xbf16>
    %c0_2 = arith.constant 0 : index
    %c0_3 = arith.constant 0 : index
    %9 = vector.load %arg4[%c0_2, %c0_3] : memref<256x256xbf16, #tpu.memory_space<vmem>>, vector<256x256xbf16>
    %cst = arith.constant dense<0.000000e+00> : vector<2x256xf32>
    %10 = tpu.matmul %8, %9, %cst {dimension_numbers = #tpu.dot_dimension_numbers<[1], [0], [0], [1], [0, 0, 1, 1], [], []>} : vector<2x256xbf16>, vector<256x256xbf16>, vector<2x256xf32> -> vector<2x256xf32>
    %c0_4 = arith.constant 0 : index
    %c0_5 = arith.constant 0 : index
    %11 = vector.load %arg7[%c0_4, %c0_5] : memref<2x1xf32, #tpu.memory_space<vmem>>, vector<2x1xf32>
    %12 = vector.broadcast %11 : vector<2x1xf32> to vector<2x256xf32>
    %13 = arith.addf %10, %12 : vector<2x256xf32>
    %14 = arith.fptosi %13 : vector<2x256xf32> to vector<2x256xi32>
    %15 = vector.extract_strided_slice %10 {offsets = [0, 255], sizes = [2, 1], strides = [1, 1]} : vector<2x256xf32> to vector<2x1xf32>
    %16 = arith.addf %11, %15 : vector<2x1xf32>
    %c0_6 = arith.constant 0 : index
    %c0_7 = arith.constant 0 : index
    %17 = vector.load %arg7[%c0_6, %c0_7] : memref<2x1xf32, #tpu.memory_space<vmem>>, vector<2x1xf32>
    tpu.vector_store %arg7[%c0_6, %c0_7], %16 {strides = array<i32>} : memref<2x1xf32, #tpu.memory_space<vmem>>, vector<2x1xf32>,
    %18 = tpu.iota {dimensions = array<i32: 2>} : vector<2x256x513xi32>
    %19 = vector.shape_cast %14 : vector<2x256xi32> to vector<2x256x1xi32>
    %20 = vector.broadcast %19 : vector<2x256x1xi32> to vector<2x256x513xi32>
    %21 = arith.cmpi eq, %20, %18 : vector<2x256x513xi32>
    %22 = arith.extui %21 : vector<2x256x513xi1> to vector<2x256x513xi32>
    %23 = arith.sitofp %22 : vector<2x256x513xi32> to vector<2x256x513xf32>
    %24 = vector.shape_cast %23 : vector<2x256x513xf32> to vector<512x513xf32>
    %c0_8 = arith.constant 0 : index
    %c0_9 = arith.constant 0 : index
    %25 = vector.load %arg5[%c0_8, %c0_9] : memref<513x128xf32, #tpu.memory_space<vmem>>, vector<513x128xf32>
    %cst_10 = arith.constant dense<0.000000e+00> : vector<512x128xf32>
    %26 = tpu.matmul %24, %25, %cst_10 {dimension_numbers = #tpu.dot_dimension_numbers<[1], [0], [0], [1], [0, 0, 1, 1], [], []>} : vector<512x513xf32>, vector<513x128xf32>, vector<512x128xf32> -> vector<512x128xf32>
    %27 = vector.shape_cast %26 : vector<512x128xf32> to vector<2x256x128xf32>
    %c0_11 = arith.constant 0 : index
    %c0_12 = arith.constant 0 : index
    %c0_13 = arith.constant 0 : index
    %28 = vector.load %arg6[%c0_11, %c0_12, %c0_13] : memref<2x256x128xf32, #tpu.memory_space<vmem>>, vector<2x256x128xf32>
    tpu.vector_store %arg6[%c0_11, %c0_12, %c0_13], %27 {strides = array<i32>} : memref<2x256x128xf32, #tpu.memory_space<vmem>>, vector<2x256x128xf32>,
    return
  }
  func.func @transform_0(%arg0: i32, %arg1: i32, %arg2: i32) -> (i32, i32) {
    %c0_i32 = arith.constant 0 : i32
    return %arg0, %arg2 : i32, i32
  }
  func.func @transform_1(%arg0: i32, %arg1: i32, %arg2: i32) -> (i32, i32) {
    %c0_i32 = arith.constant 0 : i32
    %c0_i32_0 = arith.constant 0 : i32
    %c0_i32_1 = arith.constant 0 : i32
    return %c0_i32, %c0_i32_0 : i32, i32
  }
  func.func @transform_2(%arg0: i32, %arg1: i32, %arg2: i32) -> (i32, i32) {
    %c0_i32 = arith.constant 0 : i32
    %c0_i32_0 = arith.constant 0 : i32
    return %c0_i32, %arg1 : i32, i32
  }
  func.func @transform_3(%arg0: i32, %arg1: i32, %arg2: i32) -> (i32, i32, i32) {
    %c0_i32 = arith.constant 0 : i32
    return %arg0, %arg2, %arg1 : i32, i32, i32
  }
}

</mosaic_0001>

<llo_original>
// kernel: tpu_custom_call.1
$region0: #{tpu_custom_call.1}
  #allocation0 [shape = 'u32[]', space=smem, size = 0x4, offset = 0x4, fixed_abs, tag = 'smem constant byte address 0x4 - core index']
  #allocation1 [shape = 'u32[72,128]{1,0:T(1,128)}', space=vmem, size = 0x9000, scoped, tag = 'internal scratch']
  #allocation2 [shape = 'f32[2,1]{1,0:T(2,128)}', space=vmem, size = 0x400, scoped, tag = 'scratch operand']
  #allocation10 [shape = 's32[]', space=sflag, size = 0x4, offset = 0, fixed_abs, tag = 'sflag constant byte address 0x0 - dummy sync flag']
  %s0 = inlined_call_operand.hbm [shape: s32[2,512], index: 0, kind: input, shape index: {}]
  %s1 = inlined_call_operand.hbm [shape: bf16[256,256], index: 1, kind: input, shape index: {}]
  %s2 = inlined_call_operand.hbm [shape: f32[513,128], index: 2, kind: input, shape index: {}]
  %s3 = inlined_call_operand.hbm [shape: f32[2,512,128], index: 3, kind: output, shape index: {}]
  %s4 = sld [smem:[#allocation0]]
  $region61: #{tpu_custom_call.1} parent=0
    _
  %s6 = ssub.s32 1, %s4
  %s7 = scalar_select 0, %s6, %s4
  $region1: #{tpu_custom_call.1} parent=0
    #allocation3 [shape = 'u8[4096]{0}', space=vmem, size = 0x1000, scoped, tag = 'input window, operand 0']
    #allocation4 [shape = 's32[2]{0}', space=sflag, size = 0x8, scoped, tag = 'scoped memory for tpu_custom_call.1']
    #allocation5 [shape = 's32[2]{0}', space=sflag, size = 0x8, scoped, tag = 'scoped memory for tpu_custom_call.1']
    #allocation6 [shape = 'u8[131072]{0}', space=vmem, size = 0x20000, scoped, tag = 'input window, operand 1, single buffered']
    #allocation7 [shape = 's32[1]{0}', space=sflag, size = 0x4, scoped, tag = 'scoped memory for tpu_custom_call.1']
    #allocation8 [shape = 'u8[266240]{0}', space=vmem, size = 0x41000, scoped, tag = 'input window, operand 2, single buffered']
    #allocation9 [shape = 'u8[524288]{0}', space=vmem, size = 0x80000, scoped, tag = 'output window, operand 0']
    %8 = vsyncpa [#allocation4], 0
    %s9 = scalar_lea.sflag [#allocation4], 1
    %10 = vsyncpa %s9, 0
    %11 = vsyncpa [#allocation7], 0
    %12 = vsyncpa [#allocation5], 0
    %s13 = scalar_lea.sflag [#allocation5], 1
    %14 = vsyncpa %s13, 0
    loop: start=0, step=1, limit=4
    $region2: #{tpu_custom_call.1} parent=1 // loop_pre_header
      _
    $region3: #{tpu_custom_call.1} parent=1 // loop_header
      %s16 = sphi 0, %s20
      %p17 = scmp.ge.s32.totalorder %s16, 4
      %s23 = sphi 0, %s42
      %s24 = sphi 0, %s38
      %s25 = sphi 0, %s34
      %s26 = sphi 0, %s23
      %s27 = sphi 0, %s24
      %s28 = sphi 0, %s25
      %s29 = sphi 0, %s26
      %s30 = sphi 0, %s27
      %s31 = sphi 0, %s28
      %s47 = sphi 0, %s49
      %s50 = sphi 0, %s47
      %s51 = sphi 0, %s50
      %s67 = sphi 0, %s51
      %s71 = sphi 0, %s71
      %s73 = sphi 0, %s71
      %s74 = sphi 0, %s73
      %s88 = sphi 0, %s74
      %s94 = sphi 0, %s96
      %s97 = sphi 0, %s94
      %s98 = sphi 0, %s97
      %s114 = sphi 0, %s98
      %s124 = sphi 0, %s126
      %s127 = sphi 0, %s124
      %s128 = sphi 0, %s127
      %s144 = sphi 0, %s128
    $region4: #{tpu_custom_call.1} parent=1 // loop_header_branch
      %19 = sbr.rel (%p17) target = $region8
    $region5: #{tpu_custom_call.1} parent=1 // loop_body
      %s21 = ssub.s32 %s16, 1
      %s22 = ssub.s32 %s16, 2
      %s32 = sadd.s32 1, %s25
      %p33 = scmp.ge.s32.totalorder %s32, 2
      %s34 = scalar_select %p33, 0, %s32
      %s35 = sadd.s32 1, %s24
      %s36 = scalar_select %p33, %s35, %s24
      %p37 = scmp.ge.s32.totalorder %s36, 1
      %s38 = scalar_select %p37, 0, %s36
      %s39 = sadd.s32 1, %s23
      %s40 = scalar_select %p37, %s39, %s23
      %p41 = scmp.ge.s32.totalorder %s40, 1
      %s42 = scalar_select %p41, 0, %s40
      %s43 = ssub.s32 %s23, %s42
      %s44 = ssub.s32 %s25, %s34
      %s45 = sor.u32 %s43, %s44
      %p46 = scmp.eq.s32.totalorder %s45, 0
      %s48 = sadd.s32 %s47, 1
      %s49 = scalar_select %p46, %s47, %s48
      %p52 = pneg %p46
      %p53 = scmp.eq.s32.totalorder %s16, 1
      %p54 = por %p52, %p53
      %p55 = scmp.ne.s32.totalorder %s47, %s50
      %p56 = scmp.eq.s32.totalorder %s16, 0
      %p57 = por %p55, %p56
      %p58 = scmp.ne.s32.totalorder %s47, %s50
      %p59 = scmp.eq.s32.totalorder %s21, 1
      %p60 = por %p58, %p59
      %p61 = scmp.ne.s32.totalorder %s50, %s51
      %p62 = scmp.eq.s32.totalorder %s21, 0
      %p63 = por %p61, %p62
      %p64 = scmp.ne.s32.totalorder %s50, %s51
      %p65 = scmp.eq.s32.totalorder %s22, 1
      %p66 = por %p64, %p65
      %p68 = scmp.ne.s32.totalorder %s51, %s67
      %p69 = scmp.eq.s32.totalorder %s22, 0
      %p70 = por %p68, %p69
      %s72 = sadd.s32 %s71, 1
      %p75 = scmp.eq.s32.totalorder %s16, 1
      %p76 = scmp.ne.s32.totalorder %s71, %s73
      %p77 = scmp.eq.s32.totalorder %s16, 0
      %p78 = por %p76, %p77
      %p79 = scmp.ne.s32.totalorder %s71, %s73
      %p80 = scmp.eq.s32.totalorder %s21, 1
      %p81 = por %p79, %p80
      %p82 = scmp.ne.s32.totalorder %s73, %s74
      %p83 = scmp.eq.s32.totalorder %s21, 0
      %p84 = por %p82, %p83
      %p85 = scmp.ne.s32.totalorder %s73, %s74
      %p86 = scmp.eq.s32.totalorder %s22, 1
      %p87 = por %p85, %p86
      %p89 = scmp.ne.s32.totalorder %s74, %s88
      %p90 = scmp.eq.s32.totalorder %s22, 0
      %p91 = por %p89, %p90
      %s92 = ssub.s32 %s24, %s38
      %p93 = scmp.eq.s32.totalorder %s92, 0
      %s95 = sadd.s32 %s94, 1
      %s96 = scalar_select %p93, %s94, %s95
      %p99 = pneg %p93
      %p100 = scmp.eq.s32.totalorder %s16, 1
      %p101 = por %p99, %p100
      %p102 = scmp.ne.s32.totalorder %s94, %s97
      %p103 = scmp.eq.s32.totalorder %s16, 0
      %p104 = por %p102, %p103
      %p105 = scmp.ne.s32.totalorder %s94, %s97
      %p106 = scmp.eq.s32.totalorder %s21, 1
      %p107 = por %p105, %p106
      %p108 = scmp.ne.s32.totalorder %s97, %s98
      %p109 = scmp.eq.s32.totalorder %s21, 0
      %p110 = por %p108, %p109
      %p111 = scmp.ne.s32.totalorder %s97, %s98
      %p112 = scmp.eq.s32.totalorder %s22, 1
      %p113 = por %p111, %p112
      %p115 = scmp.ne.s32.totalorder %s98, %s114
      %p116 = scmp.eq.s32.totalorder %s22, 0
      %p117 = por %p115, %p116
      %s118 = ssub.s32 %s23, %s42
      %s119 = ssub.s32 %s25, %s34
      %s120 = sor.u32 %s118, %s119
      %s121 = ssub.s32 %s24, %s38
      %s122 = sor.u32 %s120, %s121
      %p123 = scmp.eq.s32.totalorder %s122, 0
      %s125 = sadd.s32 %s124, 1
      %s126 = scalar_select %p123, %s124, %s125
      %p129 = pneg %p123
      %p130 = scmp.eq.s32.totalorder %s16, 1
      %p131 = por %p129, %p130
      %p132 = scmp.ne.s32.totalorder %s124, %s127
      %p133 = scmp.eq.s32.totalorder %s16, 0
      %p134 = por %p132, %p133
      %p135 = scmp.ne.s32.totalorder %s124, %s127
      %p136 = scmp.eq.s32.totalorder %s21, 1
      %p137 = por %p135, %p136
      %p138 = scmp.ne.s32.totalorder %s127, %s128
      %p139 = scmp.eq.s32.totalorder %s21, 0
      %p140 = por %p138, %p139
      %p141 = scmp.ne.s32.totalorder %s127, %s128
      %p142 = scmp.eq.s32.totalorder %s22, 1
      %p143 = por %p141, %p142
      %p145 = scmp.ne.s32.totalorder %s128, %s144
      %p146 = scmp.eq.s32.totalorder %s22, 0
      %p147 = por %p145, %p146
      %p148 = scmp.le.s32.totalorder 1, %s16
      %p149 = scmp.lt.s32.totalorder %s16, 3
      %p150 = pnand %p148, %p149
      %p151 = pneg %p150
      // Predicated region
      $region9: #{tpu_custom_call.1} parent=5 // pred_check
        _
      $region10: #{tpu_custom_call.1} parent=5 // pred_check_branch
        %153 = sbr.rel (%p150) target = $region12
      $region11: #{tpu_custom_call.1} parent=5 // pred_region
        %s154 = ssub.s32 %s16, 1
        // Predicated region
        $region13: #{tpu_custom_call.1} parent=11 // pred_check
          %p155 = pneg %p84
        $region14: #{tpu_custom_call.1} parent=11 // pred_check_branch
          %157 = sbr.rel (%p155) target = $region16
        $region15: #{tpu_custom_call.1} parent=11 // pred_region
          %159 = vsyncadd [#allocation7], 0
          %s160 = sshll.u32 %s1, 4
          %s161 = int_to_ptr.hbm [resolvable:$true] %s160
          %s162 = sshll.u32 [#allocation6], 4
          %s163 = int_to_ptr.vmem [resolvable:$true] %s162
          %168 = dma.hbm_to_vmem [thread:$0]  %s161, 4096, %s163, [#allocation7], 128, 128, 8
        $region16: #{tpu_custom_call.1} parent=11 // pred_fallthru
          _
        // Predicated region
        $region17: #{tpu_custom_call.1} parent=11 // pred_check
          %p169 = pneg %p110
        $region18: #{tpu_custom_call.1} parent=11 // pred_check_branch
          %171 = sbr.rel (%p169) target = $region20
        $region19: #{tpu_custom_call.1} parent=11 // pred_region
          %173 = vsyncadd [#allocation7], 0
          %s174 = smul.addr %s27, 8
          %s175 = scalar_lea.hbm %s2, %s174
          %s176 = sshll.u32 %s175, 4
          %s177 = int_to_ptr.hbm [resolvable:$true] %s176
          %s178 = sshll.u32 [#allocation8], 4
          %s179 = int_to_ptr.vmem [resolvable:$true] %s178
          %184 = dma.hbm_to_vmem [thread:$0]  %s177, 8320, %s179, [#allocation7], 128, 128, 8
        $region20: #{tpu_custom_call.1} parent=11 // pred_fallthru
          _
      $region12: #{tpu_custom_call.1} parent=5 // pred_fallthru
        _
      %p185 = scmp.lt.s32.totalorder %s16, 2
      // Predicated region
      $region21: #{tpu_custom_call.1} parent=5 // pred_check
        %p186 = pneg %p185
      $region22: #{tpu_custom_call.1} parent=5 // pred_check_branch
        %188 = sbr.rel (%p186) target = $region24
      $region23: #{tpu_custom_call.1} parent=5 // pred_region
        // Predicated region
        $region25: #{tpu_custom_call.1} parent=23 // pred_check
          %p189 = pneg %p57
        $region26: #{tpu_custom_call.1} parent=23 // pred_check_branch
          %191 = sbr.rel (%p189) target = $region28
        $region27: #{tpu_custom_call.1} parent=23 // pred_region
          %s192 = sand.u32 %s47, 1
          %s193 = scalar_lea.sflag [#allocation4], %s192
          %s194 = sand.u32 %s47, 1
          %s195 = smul.addr %s194, 4
          %s196 = scalar_lea.vmem [#allocation3], %s195
          %s197 = smul.u32 2, %s25
          %199 = vsyncadd %s193, 0
          %s200 = smul.addr %s23, 4
          %s201 = sadd.s32 %s197, %s200
          %s202 = smul.addr %s201, 2
          %s203 = scalar_lea.hbm %s0, %s202
          %s205 = sshll.u32 %s203, 4
          %s206 = int_to_ptr.hbm [resolvable:$true] %s205
          %s207 = sshll.u32 %s196, 4
          %s208 = int_to_ptr.vmem [resolvable:$true] %s207
          %210 = dma.hbm_to_vmem [thread:$0]  %s206, 64, %s208, %s193
        $region28: #{tpu_custom_call.1} parent=23 // pred_fallthru
          _
      $region24: #{tpu_custom_call.1} parent=5 // pred_fallthru
        _
      %p211 = scmp.le.s32.totalorder 1, %s16
      %p212 = scmp.lt.s32.totalorder %s16, 3
      %p213 = pnand %p211, %p212
      %p214 = pneg %p213
      // Predicated region
      $region29: #{tpu_custom_call.1} parent=5 // pred_check
        _
      $region30: #{tpu_custom_call.1} parent=5 // pred_check_branch
        %216 = sbr.rel (%p213) target = $region32
      $region31: #{tpu_custom_call.1} parent=5 // pred_region
        %s217 = ssub.s32 %s16, 1
        %s218 = sand.u32 %s50, 1
        %s219 = scalar_lea.sflag [#allocation4], %s218
        %s220 = sand.u32 %s50, 1
        %s221 = smul.addr %s220, 4
        %s222 = scalar_lea.vmem [#allocation3], %s221
        // Predicated region
        $region33: #{tpu_custom_call.1} parent=31 // pred_check
          %p223 = pneg %p63
        $region34: #{tpu_custom_call.1} parent=31 // pred_check_branch
          %225 = sbr.rel (%p223) target = $region36
        $region35: #{tpu_custom_call.1} parent=31 // pred_region
          %227 = dma.done %s219, 64
        $region36: #{tpu_custom_call.1} parent=31 // pred_fallthru
          _
        // Predicated region
        $region37: #{tpu_custom_call.1} parent=31 // pred_check
          %p228 = pneg %p84
        $region38: #{tpu_custom_call.1} parent=31 // pred_check_branch
          %230 = sbr.rel (%p228) target = $region40
        $region39: #{tpu_custom_call.1} parent=31 // pred_region
          %232 = dma.done [#allocation7], 4096
        $region40: #{tpu_custom_call.1} parent=31 // pred_fallthru
          _
        // Predicated region
        $region41: #{tpu_custom_call.1} parent=31 // pred_check
          %p233 = pneg %p110
        $region42: #{tpu_custom_call.1} parent=31 // pred_check_branch
          %235 = sbr.rel (%p233) target = $region44
        $region43: #{tpu_custom_call.1} parent=31 // pred_region
          %237 = dma.done [#allocation7], 8320
        $region44: #{tpu_custom_call.1} parent=31 // pred_fallthru
          _
        %s238 = sand.u32 %s50, 1
        %s239 = scalar_lea.sflag [#allocation4], %s238
        %s240 = sand.u32 %s50, 1
        %s241 = smul.addr %s240, 4
        %s242 = scalar_lea.vmem [#allocation3], %s241
        %p243 = pneg %p63
        %p244 = pneg %p60
        %p245 = pneg %p84
        %p246 = pneg %p81
        %p247 = pneg %p110
        %p248 = pneg %p107
        %p249 = pneg %p140
        %p250 = pneg %p137
        %s251 = sand.u32 %s127, 1
        %s252 = scalar_lea.sflag [#allocation5], %s251
        %s253 = sand.u32 %s127, 1
        %s254 = smul.addr %s253, 512
        %s255 = scalar_lea.vmem [#allocation9], %s254
        %s256 = smul.u32 2, %s28
        %s257 = smul.u32 2, %s26
        %s258 = smul.u32 32, %s28
        %p259 = scmp.eq.s32.totalorder %s28, 0
        // Predicated region
        $region45: #{tpu_custom_call.1} parent=31 // pred_check
          %p260 = pneg %p259
        $region46: #{tpu_custom_call.1} parent=31 // pred_check_branch
          %262 = sbr.rel (%p260) target = $region48
        $region47: #{tpu_custom_call.1} parent=31 // pred_region
          %vm263 = vcmask 1024
          %264 = vst.msk [vmem:[#allocation2] sm:$0x3] %vm263, 0.0
        $region48: #{tpu_custom_call.1} parent=31 // pred_fallthru
          _
        %v265 = vld [vmem:[%s222] sm:$0xf]
        %vm266 = vcmp.ne.s32.totalorder %v265, 3
        %v267 = vsel %vm266, 1, 0
        %v268 = vcvt.s32.f32 %v267
        %270 = vst [vmem:[#allocation1] ss:$4 sm:$0xff] %v268
        %v271 = vld.sshfl [vmem:[#allocation1] sm:$0xff pattern:$0x73625140]
        %v272 = vld.sshfl [vmem:[#allocation1 + $0x8] sm:$0xff pattern:$0x73625140]
        %v275 = vpack.c.bf16 %v271, %v271
        %v276 = vpack.c.bf16 %v272, %v272
        %v277 = vld [vmem:[#allocation6] sm:$0xff]
        %v278 = vld [vmem:[#allocation6 + $0x8] sm:$0xff]
        %v279 = vld [vmem:[#allocation6 + $0x10] sm:$0xff]
        %v280 = vld [vmem:[#allocation6 + $0x18] sm:$0xff]
        %v281 = vld [vmem:[#allocation6 + $0x20] sm:$0xff]
        %v282 = vld [vmem:[#allocation6 + $0x28] sm:$0xff]
        %v283 = vld [vmem:[#allocation6 + $0x30] sm:$0xff]
        %v284 = vld [vmem:[#allocation6 + $0x38] sm:$0xff]
        %v285 = vld [vmem:[#allocation6 + $0x40] sm:$0xff]
        %v286 = vld [vmem:[#allocation6 + $0x48] sm:$0xff]
        %v287 = vld [vmem:[#allocation6 + $0x50] sm:$0xff]
        %v288 = vld [vmem:[#allocation6 + $0x58] sm:$0xff]
        %v289 = vld [vmem:[#allocation6 + $0x60] sm:$0xff]
        %v290 = vld [vmem:[#allocation6 + $0x68] sm:$0xff]
        %v291 = vld [vmem:[#allocation6 + $0x70] sm:$0xff]
        %v292 = vld [vmem:[#allocation6 + $0x78] sm:$0xff]
        %v293 = vld [vmem:[#allocation6 + $0x80] sm:$0xff]
        %v294 = vld [vmem:[#allocation6 + $0x88] sm:$0xff]
        %v295 = vld [vmem:[#allocation6 + $0x90] sm:$0xff]
        %v296 = vld [vmem:[#allocation6 + $0x98] sm:$0xff]
        %v297 = vld [vmem:[#allocation6 + $0xa0] sm:$0xff]
        %v298 = vld [vmem:[#allocation6 + $0xa8] sm:$0xff]
        %v299 = vld [vmem:[#allocation6 + $0xb0] sm:$0xff]
        %v300 = vld [vmem:[#allocation6 + $0xb8] sm:$0xff]
        %v301 = vld [vmem:[#allocation6 + $0xc0] sm:$0xff]
        %v302 = vld [vmem:[#allocation6 + $0xc8] sm:$0xff]
        %v303 = vld [vmem:[#allocation6 + $0xd0] sm:$0xff]
        %v304 = vld [vmem:[#allocation6 + $0xd8] sm:$0xff]
        %v305 = vld [vmem:[#allocation6 + $0xe0] sm:$0xff]
        %v306 = vld [vmem:[#allocation6 + $0xe8] sm:$0xff]
        %v307 = vld [vmem:[#allocation6 + $0xf0] sm:$0xff]
        %v308 = vld [vmem:[#allocation6 + $0xf8] sm:$0xff]
        %v341 = vunpack.c.l.b16 %v277
        %v342 = vunpack.c.h.b16 %v277
        %v343 = vunpack.c.l.b16 %v278
        %v344 = vunpack.c.h.b16 %v278
        %v345 = vunpack.c.l.b16 %v279
        %v346 = vunpack.c.h.b16 %v279
        %v347 = vunpack.c.l.b16 %v280
        %v348 = vunpack.c.h.b16 %v280
        %v349 = vunpack.c.l.b16 %v281
        %v350 = vunpack.c.h.b16 %v281
        %v351 = vunpack.c.l.b16 %v282
        %v352 = vunpack.c.h.b16 %v282
        %v353 = vunpack.c.l.b16 %v283
        %v354 = vunpack.c.h.b16 %v283
        %v355 = vunpack.c.l.b16 %v284
        %v356 = vunpack.c.h.b16 %v284
        %v357 = vunpack.c.l.b16 %v285
        %v358 = vunpack.c.h.b16 %v285
        %v359 = vunpack.c.l.b16 %v286
        %v360 = vunpack.c.h.b16 %v286
        %v361 = vunpack.c.l.b16 %v287
        %v362 = vunpack.c.h.b16 %v287
        %v363 = vunpack.c.l.b16 %v288
        %v364 = vunpack.c.h.b16 %v288
        %v365 = vunpack.c.l.b16 %v289
        %v366 = vunpack.c.h.b16 %v289
        %v367 = vunpack.c.l.b16 %v290
        %v368 = vunpack.c.h.b16 %v290
        %v369 = vunpack.c.l.b16 %v291
        %v370 = vunpack.c.h.b16 %v291
        %v371 = vunpack.c.l.b16 %v292
        %v372 = vunpack.c.h.b16 %v292
        %v373 = vunpack.c.l.b16 %v293
        %v374 = vunpack.c.h.b16 %v293
        %v375 = vunpack.c.l.b16 %v294
        %v376 = vunpack.c.h.b16 %v294
        %v377 = vunpack.c.l.b16 %v295
        %v378 = vunpack.c.h.b16 %v295
        %v379 = vunpack.c.l.b16 %v296
        %v380 = vunpack.c.h.b16 %v296
        %v381 = vunpack.c.l.b16 %v297
        %v382 = vunpack.c.h.b16 %v297
        %v383 = vunpack.c.l.b16 %v298
        %v384 = vunpack.c.h.b16 %v298
        %v385 = vunpack.c.l.b16 %v299
        %v386 = vunpack.c.h.b16 %v299
        %v387 = vunpack.c.l.b16 %v300
        %v388 = vunpack.c.h.b16 %v300
        %v389 = vunpack.c.l.b16 %v301
        %v390 = vunpack.c.h.b16 %v301
        %v391 = vunpack.c.l.b16 %v302
        %v392 = vunpack.c.h.b16 %v302
        %v393 = vunpack.c.l.b16 %v303
        %v394 = vunpack.c.h.b16 %v303
        %v395 = vunpack.c.l.b16 %v304
        %v396 = vunpack.c.h.b16 %v304
        %v397 = vunpack.c.l.b16 %v305
        %v398 = vunpack.c.h.b16 %v305
        %v399 = vunpack.c.l.b16 %v306
        %v400 = vunpack.c.h.b16 %v306
        %v401 = vunpack.c.l.b16 %v307
        %v402 = vunpack.c.h.b16 %v307
        %v403 = vunpack.c.l.b16 %v308
        %v404 = vunpack.c.h.b16 %v308
        %v405 = vpack.c.b16 %v343, %v341
        %v406 = vpack.c.b16 %v344, %v342
        %v407 = vpack.c.b16 %v347, %v345
        %v408 = vpack.c.b16 %v348, %v346
        %v409 = vpack.c.b16 %v351, %v349
        %v410 = vpack.c.b16 %v352, %v350
        %v411 = vpack.c.b16 %v355, %v353
        %v412 = vpack.c.b16 %v356, %v354
        %v413 = vpack.c.b16 %v359, %v357
        %v414 = vpack.c.b16 %v360, %v358
        %v415 = vpack.c.b16 %v363, %v361
        %v416 = vpack.c.b16 %v364, %v362
        %v417 = vpack.c.b16 %v367, %v365
        %v418 = vpack.c.b16 %v368, %v366
        %v419 = vpack.c.b16 %v371, %v369
        %v420 = vpack.c.b16 %v372, %v370
        %v421 = vpack.c.b16 %v375, %v373
        %v422 = vpack.c.b16 %v376, %v374
        %v423 = vpack.c.b16 %v379, %v377
        %v424 = vpack.c.b16 %v380, %v378
        %v425 = vpack.c.b16 %v383, %v381
        %v426 = vpack.c.b16 %v384, %v382
        %v427 = vpack.c.b16 %v387, %v385
        %v428 = vpack.c.b16 %v388, %v386
        %v429 = vpack.c.b16 %v391, %v389
        %v430 = vpack.c.b16 %v392, %v390
        %v431 = vpack.c.b16 %v395, %v393
        %v432 = vpack.c.b16 %v396, %v394
        %v433 = vpack.c.b16 %v399, %v397
        %v434 = vpack.c.b16 %v400, %v398
        %v435 = vpack.c.b16 %v403, %v401
        %v436 = vpack.c.b16 %v404, %v402
        %469 = vmatpush.bf16.msra.mxu0 %v419
        %470 = vmatpush.bf16.msra.mxu0 %v417
        %471 = vmatpush.bf16.msra.mxu0 %v415
        %472 = vmatpush.bf16.msra.mxu0 %v413
        %473 = vmatpush.bf16.msra.mxu0 %v411
        %474 = vmatpush.bf16.msra.mxu0 %v409
        %475 = vmatpush.bf16.msra.mxu0 %v407
        %476 = vmatpush.bf16.msra.mxu0 %v405
        %477 = vmatmul.bf16.gmra.mxu0 %v275
        %v478 = vpop.f32.mrf.mxu0
        %v479 = vadd.f32 0.0, %v478
        %v480 = vpop.f32.mrf.mxu0
        %481 = vdwg.mxu0
        %482 = vmatpush.bf16.msra.mxu0 %v435
        %483 = vmatpush.bf16.msra.mxu0 %v433
        %484 = vmatpush.bf16.msra.mxu0 %v431
        %485 = vmatpush.bf16.msra.mxu0 %v429
        %486 = vmatpush.bf16.msra.mxu0 %v427
        %487 = vmatpush.bf16.msra.mxu0 %v425
        %488 = vmatpush.bf16.msra.mxu0 %v423
        %489 = vmatpush.bf16.msra.mxu0 %v421
        %490 = vmatmul.bf16.gmra.mxu0 %v276
        %v491 = vpop.f32.mrf.mxu0
        %v492 = vadd.f32 %v479, %v491
        %v493 = vpop.f32.mrf.mxu0
        %494 = vdwg.mxu0
        %495 = vmatpush.bf16.msra.mxu0 %v420
        %496 = vmatpush.bf16.msra.mxu0 %v418
        %497 = vmatpush.bf16.msra.mxu0 %v416
        %498 = vmatpush.bf16.msra.mxu0 %v414
        %499 = vmatpush.bf16.msra.mxu0 %v412
        %500 = vmatpush.bf16.msra.mxu0 %v410
        %501 = vmatpush.bf16.msra.mxu0 %v408
        %502 = vmatpush.bf16.msra.mxu0 %v406
        %503 = vmatmul.bf16.gmra.mxu0 %v275
        %v504 = vpop.f32.mrf.mxu0
        %v505 = vadd.f32 0.0, %v504
        %v506 = vpop.f32.mrf.mxu0
        %507 = vdwg.mxu0
        %508 = vmatpush.bf16.msra.mxu0 %v436
        %509 = vmatpush.bf16.msra.mxu0 %v434
        %510 = vmatpush.bf16.msra.mxu0 %v432
        %511 = vmatpush.bf16.msra.mxu0 %v430
        %512 = vmatpush.bf16.msra.mxu0 %v428
        %513 = vmatpush.bf16.msra.mxu0 %v426
        %514 = vmatpush.bf16.msra.mxu0 %v424
        %515 = vmatpush.bf16.msra.mxu0 %v422
        %516 = vmatmul.bf16.gmra.mxu0 %v276
        %v517 = vpop.f32.mrf.mxu0
        %v518 = vadd.f32 %v505, %v517
        %v519 = vpop.f32.mrf.mxu0
        %520 = vdwg.mxu0
        %v521 = vld [vmem:[#allocation2] sm:$0x3]
        %523 = vset.pattern.permute.xlu0 0
        %524 = vperm.xlu0 %523, %v521
        %v525 = vpop.permute.xlu0 %524
        %v527 = vadd.f32 %v492, %v525
        %v528 = vadd.f32 %v518, %v525
        %v529 = vcvt.f32.s32.to.zero.pseudo %v527
        %v530 = vcvt.f32.s32.to.zero.pseudo %v528
        %532 = vrot.lane.b32.xlu0 %v518, 1
        %v533 = vpop.permute.xlu0 %532
        %v535 = vadd.f32 %v521, %v533
        %vm536 = vcmask 1024
        %537 = vst.msk [vmem:[#allocation2] sm:$0x3] %vm536, %v535
        %v538 = vlaneseq
        %v539 = vand.u32 %v538, 127
        %v540 = vadd.s32 %v539, 128
        %v541 = vadd.s32 %v539, 256
        %v542 = vadd.s32 %v539, 384
        %v543 = vadd.s32 %v539, 512
        %v544 = vperm.slane %v529, 0
        %v545 = vlaneseq
        %v546 = vshrl.u32 %v545, 7
        %548 = vset.pattern.permute.xlu0 %v546
        %549 = vperm.xlu0 %548, %v544
        %v550 = vpop.permute.xlu0 %549
        %v551 = vlaneseq
        %v552 = vshrl.u32 %v551, 7
        %v553 = vadd.s32 %v552, 8
        %554 = vset.pattern.permute.xlu0 %v553
        %555 = vperm.xlu0 %554, %v544
        %v556 = vpop.permute.xlu0 %555
        %v557 = vlaneseq
        %v558 = vshrl.u32 %v557, 7
        %v559 = vadd.s32 %v558, 16
        %560 = vset.pattern.permute.xlu0 %v559
        %561 = vperm.xlu0 %560, %v544
        %v562 = vpop.permute.xlu0 %561
        %v563 = vlaneseq
        %v564 = vshrl.u32 %v563, 7
        %v565 = vadd.s32 %v564, 24
        %566 = vset.pattern.permute.xlu0 %v565
        %567 = vperm.xlu0 %566, %v544
        %v568 = vpop.permute.xlu0 %567
        %v569 = vlaneseq
        %v570 = vshrl.u32 %v569, 7
        %v571 = vadd.s32 %v570, 32
        %572 = vset.pattern.permute.xlu0 %v571
        %573 = vperm.xlu0 %572, %v544
        %v574 = vpop.permute.xlu0 %573
        %v575 = vlaneseq
        %v576 = vshrl.u32 %v575, 7
        %v577 = vadd.s32 %v576, 40
        %578 = vset.pattern.permute.xlu0 %v577
        %579 = vperm.xlu0 %578, %v544
        %v580 = vpop.permute.xlu0 %579
        %v581 = vlaneseq
        %v582 = vshrl.u32 %v581, 7
        %v583 = vadd.s32 %v582, 48
        %584 = vset.pattern.permute.xlu0 %v583
        %585 = vperm.xlu0 %584, %v544
        %v586 = vpop.permute.xlu0 %585
        %v587 = vlaneseq
        %v588 = vshrl.u32 %v587, 7
        %v589 = vadd.s32 %v588, 56
        %590 = vset.pattern.permute.xlu0 %v589
        %591 = vperm.xlu0 %590, %v544
        %v592 = vpop.permute.xlu0 %591
        %v593 = vlaneseq
        %v594 = vshrl.u32 %v593, 7
        %v595 = vadd.s32 %v594, 64
        %596 = vset.pattern.permute.xlu0 %v595
        %597 = vperm.xlu0 %596, %v544
        %v598 = vpop.permute.xlu0 %597
        %v599 = vlaneseq
        %v600 = vshrl.u32 %v599, 7
        %v601 = vadd.s32 %v600, 72
        %602 = vset.pattern.permute.xlu0 %v601
        %603 = vperm.xlu0 %602, %v544
        %v604 = vpop.permute.xlu0 %603
        %v605 = vlaneseq
        %v606 = vshrl.u32 %v605, 7
        %v607 = vadd.s32 %v606, 80
        %608 = vset.pattern.permute.xlu0 %v607
        %609 = vperm.xlu0 %608, %v544
        %v610 = vpop.permute.xlu0 %609
        %v611 = vlaneseq
        %v612 = vshrl.u32 %v611, 7
        %v613 = vadd.s32 %v612, 88
        %614 = vset.pattern.permute.xlu0 %v613
        %615 = vperm.xlu0 %614, %v544
        %v616 = vpop.permute.xlu0 %615
        %v617 = vlaneseq
        %v618 = vshrl.u32 %v617, 7
        %v619 = vadd.s32 %v618, 96
        %620 = vset.pattern.permute.xlu0 %v619
        %621 = vperm.xlu0 %620, %v544
        %v622 = vpop.permute.xlu0 %621
        %v623 = vlaneseq
        %v624 = vshrl.u32 %v623, 7
        %v625 = vadd.s32 %v624, 104
        %626 = vset.pattern.permute.xlu0 %v625
        %627 = vperm.xlu0 %626, %v544
        %v628 = vpop.permute.xlu0 %627
        %v629 = vlaneseq
        %v630 = vshrl.u32 %v629, 7
        %v631 = vadd.s32 %v630, 112
        %632 = vset.pattern.permute.xlu0 %v631
        %633 = vperm.xlu0 %632, %v544
        %v634 = vpop.permute.xlu0 %633
        %v635 = vlaneseq
        %v636 = vshrl.u32 %v635, 7
        %v637 = vadd.s32 %v636, 120
        %638 = vset.pattern.permute.xlu0 %v637
        %639 = vperm.xlu0 %638, %v544
        %v640 = vpop.permute.xlu0 %639
        %v641 = vperm.slane %v530, 0
        %v642 = vlaneseq
        %v643 = vshrl.u32 %v642, 7
        %645 = vset.pattern.permute.xlu0 %v643
        %646 = vperm.xlu0 %645, %v641
        %v647 = vpop.permute.xlu0 %646
        %v648 = vlaneseq
        %v649 = vshrl.u32 %v648, 7
        %v650 = vadd.s32 %v649, 8
        %651 = vset.pattern.permute.xlu0 %v650
        %652 = vperm.xlu0 %651, %v641
        %v653 = vpop.permute.xlu0 %652
        %v654 = vlaneseq
        %v655 = vshrl.u32 %v654, 7
        %v656 = vadd.s32 %v655, 16
        %657 = vset.pattern.permute.xlu0 %v656
        %658 = vperm.xlu0 %657, %v641
        %v659 = vpop.permute.xlu0 %658
        %v660 = vlaneseq
        %v661 = vshrl.u32 %v660, 7
        %v662 = vadd.s32 %v661, 24
        %663 = vset.pattern.permute.xlu0 %v662
        %664 = vperm.xlu0 %663, %v641
        %v665 = vpop.permute.xlu0 %664
        %v666 = vlaneseq
        %v667 = vshrl.u32 %v666, 7
        %v668 = vadd.s32 %v667, 32
        %669 = vset.pattern.permute.xlu0 %v668
        %670 = vperm.xlu0 %669, %v641
        %v671 = vpop.permute.xlu0 %670
        %v672 = vlaneseq
        %v673 = vshrl.u32 %v672, 7
        %v674 = vadd.s32 %v673, 40
        %675 = vset.pattern.permute.xlu0 %v674
        %676 = vperm.xlu0 %675, %v641
        %v677 = vpop.permute.xlu0 %676
        %v678 = vlaneseq
        %v679 = vshrl.u32 %v678, 7
        %v680 = vadd.s32 %v679, 48
        %681 = vset.pattern.permute.xlu0 %v680
        %682 = vperm.xlu0 %681, %v641
        %v683 = vpop.permute.xlu0 %682
        %v684 = vlaneseq
        %v685 = vshrl.u32 %v684, 7
        %v686 = vadd.s32 %v685, 56
        %687 = vset.pattern.permute.xlu0 %v686
        %688 = vperm.xlu0 %687, %v641
        %v689 = vpop.permute.xlu0 %688
        %v690 = vlaneseq
        %v691 = vshrl.u32 %v690, 7
        %v692 = vadd.s32 %v691, 64
        %693 = vset.pattern.permute.xlu0 %v692
        %694 = vperm.xlu0 %693, %v641
        %v695 = vpop.permute.xlu0 %694
        %v696 = vlaneseq
        %v697 = vshrl.u32 %v696, 7
        %v698 = vadd.s32 %v697, 72
        %699 = vset.pattern.permute.xlu0 %v698
        %700 = vperm.xlu0 %699, %v641
        %v701 = vpop.permute.xlu0 %700
        %v702 = vlaneseq
        %v703 = vshrl.u32 %v702, 7
        %v704 = vadd.s32 %v703, 80
        %705 = vset.pattern.permute.xlu0 %v704
        %706 = vperm.xlu0 %705, %v641
        %v707 = vpop.permute.xlu0 %706
        %v708 = vlaneseq
        %v709 = vshrl.u32 %v708, 7
        %v710 = vadd.s32 %v709, 88
        %711 = vset.pattern.permute.xlu0 %v710
        %712 = vperm.xlu0 %711, %v641
        %v713 = vpop.permute.xlu0 %712
        %v714 = vlaneseq
        %v715 = vshrl.u32 %v714, 7
        %v716 = vadd.s32 %v715, 96
        %717 = vset.pattern.permute.xlu0 %v716
        %718 = vperm.xlu0 %717, %v641
        %v719 = vpop.permute.xlu0 %718
        %v720 = vlaneseq
        %v721 = vshrl.u32 %v720, 7
        %v722 = vadd.s32 %v721, 104
        %723 = vset.pattern.permute.xlu0 %v722
        %724 = vperm.xlu0 %723, %v641
        %v725 = vpop.permute.xlu0 %724
        %v726 = vlaneseq
        %v727 = vshrl.u32 %v726, 7
        %v728 = vadd.s32 %v727, 112
        %729 = vset.pattern.permute.xlu0 %v728
        %730 = vperm.xlu0 %729, %v641
        %v731 = vpop.permute.xlu0 %730
        %v732 = vlaneseq
        %v733 = vshrl.u32 %v732, 7
        %v734 = vadd.s32 %v733, 120
        %735 = vset.pattern.permute.xlu0 %v734
        %736 = vperm.xlu0 %735, %v641
        %v737 = vpop.permute.xlu0 %736
        %v738 = vperm.slane %v529, 1
        %v739 = vlaneseq
        %v740 = vshrl.u32 %v739, 7
        %742 = vset.pattern.permute.xlu0 %v740
        %743 = vperm.xlu0 %742, %v738
        %v744 = vpop.permute.xlu0 %743
        %v745 = vlaneseq
        %v746 = vshrl.u32 %v745, 7
        %v747 = vadd.s32 %v746, 8
        %748 = vset.pattern.permute.xlu0 %v747
        %749 = vperm.xlu0 %748, %v738
        %v750 = vpop.permute.xlu0 %749
        %v751 = vlaneseq
        %v752 = vshrl.u32 %v751, 7
        %v753 = vadd.s32 %v752, 16
        %754 = vset.pattern.permute.xlu0 %v753
        %755 = vperm.xlu0 %754, %v738
        %v756 = vpop.permute.xlu0 %755
        %v757 = vlaneseq
        %v758 = vshrl.u32 %v757, 7
        %v759 = vadd.s32 %v758, 24
        %760 = vset.pattern.permute.xlu0 %v759
        %761 = vperm.xlu0 %760, %v738
        %v762 = vpop.permute.xlu0 %761
        %v763 = vlaneseq
        %v764 = vshrl.u32 %v763, 7
        %v765 = vadd.s32 %v764, 32
        %766 = vset.pattern.permute.xlu0 %v765
        %767 = vperm.xlu0 %766, %v738
        %v768 = vpop.permute.xlu0 %767
        %v769 = vlaneseq
        %v770 = vshrl.u32 %v769, 7
        %v771 = vadd.s32 %v770, 40
        %772 = vset.pattern.permute.xlu0 %v771
        %773 = vperm.xlu0 %772, %v738
        %v774 = vpop.permute.xlu0 %773
        %v775 = vlaneseq
        %v776 = vshrl.u32 %v775, 7
        %v777 = vadd.s32 %v776, 48
        %778 = vset.pattern.permute.xlu0 %v777
        %779 = vperm.xlu0 %778, %v738
        %v780 = vpop.permute.xlu0 %779
        %v781 = vlaneseq
        %v782 = vshrl.u32 %v781, 7
        %v783 = vadd.s32 %v782, 56
        %784 = vset.pattern.permute.xlu0 %v783
        %785 = vperm.xlu0 %784, %v738
        %v786 = vpop.permute.xlu0 %785
        %v787 = vlaneseq
        %v788 = vshrl.u32 %v787, 7
        %v789 = vadd.s32 %v788, 64
        %790 = vset.pattern.permute.xlu0 %v789
        %791 = vperm.xlu0 %790, %v738
        %v792 = vpop.permute.xlu0 %791
        %v793 = vlaneseq
        %v794 = vshrl.u32 %v793, 7
        %v795 = vadd.s32 %v794, 72
        %796 = vset.pattern.permute.xlu0 %v795
        %797 = vperm.xlu0 %796, %v738
        %v798 = vpop.permute.xlu0 %797
        %v799 = vlaneseq
        %v800 = vshrl.u32 %v799, 7
        %v801 = vadd.s32 %v800, 80
        %802 = vset.pattern.permute.xlu0 %v801
        %803 = vperm.xlu0 %802, %v738
        %v804 = vpop.permute.xlu0 %803
        %v805 = vlaneseq
        %v806 = vshrl.u32 %v805, 7
        %v807 = vadd.s32 %v806, 88
        %808 = vset.pattern.permute.xlu0 %v807
        %809 = vperm.xlu0 %808, %v738
        %v810 = vpop.permute.xlu0 %809
        %v811 = vlaneseq
        %v812 = vshrl.u32 %v811, 7
        %v813 = vadd.s32 %v812, 96
        %814 = vset.pattern.permute.xlu0 %v813
        %815 = vperm.xlu0 %814, %v738
        %v816 = vpop.permute.xlu0 %815
        %v817 = vlaneseq
        %v818 = vshrl.u32 %v817, 7
        %v819 = vadd.s32 %v818, 104
        %820 = vset.pattern.permute.xlu0 %v819
        %821 = vperm.xlu0 %820, %v738
        %v822 = vpop.permute.xlu0 %821
        %v823 = vlaneseq
        %v824 = vshrl.u32 %v823, 7
        %v825 = vadd.s32 %v824, 112
        %826 = vset.pattern.permute.xlu0 %v825
        %827 = vperm.xlu0 %826, %v738
        %v828 = vpop.permute.xlu0 %827
        %v829 = vlaneseq
        %v830 = vshrl.u32 %v829, 7
        %v831 = vadd.s32 %v830, 120
        %832 = vset.pattern.permute.xlu0 %v831
        %833 = vperm.xlu0 %832, %v738
        %v834 = vpop.permute.xlu0 %833
        %v835 = vperm.slane %v530, 1
        %v836 = vlaneseq
        %v837 = vshrl.u32 %v836, 7
        %839 = vset.pattern.permute.xlu0 %v837
        %840 = vperm.xlu0 %839, %v835
        %v841 = vpop.permute.xlu0 %840
        %v842 = vlaneseq
        %v843 = vshrl.u32 %v842, 7
        %v844 = vadd.s32 %v843, 8
        %845 = vset.pattern.permute.xlu0 %v844
        %846 = vperm.xlu0 %845, %v835
        %v847 = vpop.permute.xlu0 %846
        %v848 = vlaneseq
        %v849 = vshrl.u32 %v848, 7
        %v850 = vadd.s32 %v849, 16
        %851 = vset.pattern.permute.xlu0 %v850
        %852 = vperm.xlu0 %851, %v835
        %v853 = vpop.permute.xlu0 %852
        %v854 = vlaneseq
        %v855 = vshrl.u32 %v854, 7
        %v856 = vadd.s32 %v855, 24
        %857 = vset.pattern.permute.xlu0 %v856
        %858 = vperm.xlu0 %857, %v835
        %v859 = vpop.permute.xlu0 %858
        %v860 = vlaneseq
        %v861 = vshrl.u32 %v860, 7
        %v862 = vadd.s32 %v861, 32
        %863 = vset.pattern.permute.xlu0 %v862
        %864 = vperm.xlu0 %863, %v835
        %v865 = vpop.permute.xlu0 %864
        %v866 = vlaneseq
        %v867 = vshrl.u32 %v866, 7
        %v868 = vadd.s32 %v867, 40
        %869 = vset.pattern.permute.xlu0 %v868
        %870 = vperm.xlu0 %869, %v835
        %v871 = vpop.permute.xlu0 %870
        %v872 = vlaneseq
        %v873 = vshrl.u32 %v872, 7
        %v874 = vadd.s32 %v873, 48
        %875 = vset.pattern.permute.xlu0 %v874
        %876 = vperm.xlu0 %875, %v835
        %v877 = vpop.permute.xlu0 %876
        %v878 = vlaneseq
        %v879 = vshrl.u32 %v878, 7
        %v880 = vadd.s32 %v879, 56
        %881 = vset.pattern.permute.xlu0 %v880
        %882 = vperm.xlu0 %881, %v835
        %v883 = vpop.permute.xlu0 %882
        %v884 = vlaneseq
        %v885 = vshrl.u32 %v884, 7
        %v886 = vadd.s32 %v885, 64
        %887 = vset.pattern.permute.xlu0 %v886
        %888 = vperm.xlu0 %887, %v835
        %v889 = vpop.permute.xlu0 %888
        %v890 = vlaneseq
        %v891 = vshrl.u32 %v890, 7
        %v892 = vadd.s32 %v891, 72
        %893 = vset.pattern.permute.xlu0 %v892
        %894 = vperm.xlu0 %893, %v835
        %v895 = vpop.permute.xlu0 %894
        %v896 = vlaneseq
        %v897 = vshrl.u32 %v896, 7
        %v898 = vadd.s32 %v897, 80
        %899 = vset.pattern.permute.xlu0 %v898
        %900 = vperm.xlu0 %899, %v835
        %v901 = vpop.permute.xlu0 %900
        %v902 = vlaneseq
        %v903 = vshrl.u32 %v902, 7
        %v904 = vadd.s32 %v903, 88
        %905 = vset.pattern.permute.xlu0 %v904
        %906 = vperm.xlu0 %905, %v835
        %v907 = vpop.permute.xlu0 %906
        %v908 = vlaneseq
        %v909 = vshrl.u32 %v908, 7
        %v910 = vadd.s32 %v909, 96
        %911 = vset.pattern.permute.xlu0 %v910
        %912 = vperm.xlu0 %911, %v835
        %v913 = vpop.permute.xlu0 %912
        %v914 = vlaneseq
        %v915 = vshrl.u32 %v914, 7
        %v916 = vadd.s32 %v915, 104
        %917 = vset.pattern.permute.xlu0 %v916
        %918 = vperm.xlu0 %917, %v835
        %v919 = vpop.permute.xlu0 %918
        %v920 = vlaneseq
        %v921 = vshrl.u32 %v920, 7
        %v922 = vadd.s32 %v921, 112
        %923 = vset.pattern.permute.xlu0 %v922
        %924 = vperm.xlu0 %923, %v835
        %v925 = vpop.permute.xlu0 %924
        %v926 = vlaneseq
        %v927 = vshrl.u32 %v926, 7
        %v928 = vadd.s32 %v927, 120
        %929 = vset.pattern.permute.xlu0 %v928
        %930 = vperm.xlu0 %929, %v835
        %v931 = vpop.permute.xlu0 %930
        %vm932 = vcmp.eq.s32.totalorder %v550, %v539
        %vm933 = vcmp.eq.s32.totalorder %v550, %v540
        %vm934 = vcmp.eq.s32.totalorder %v550, %v541
        %vm935 = vcmp.eq.s32.totalorder %v550, %v542
        %vm936 = vcmp.eq.s32.totalorder %v550, %v543
        %vm937 = vcmp.eq.s32.totalorder %v556, %v539
        %vm938 = vcmp.eq.s32.totalorder %v556, %v540
        %vm939 = vcmp.eq.s32.totalorder %v556, %v541
        %vm940 = vcmp.eq.s32.totalorder %v556, %v542
        %vm941 = vcmp.eq.s32.totalorder %v556, %v543
        %vm942 = vcmp.eq.s32.totalorder %v562, %v539
        %vm943 = vcmp.eq.s32.totalorder %v562, %v540
        %vm944 = vcmp.eq.s32.totalorder %v562, %v541
        %vm945 = vcmp.eq.s32.totalorder %v562, %v542
        %vm946 = vcmp.eq.s32.totalorder %v562, %v543
        %vm947 = vcmp.eq.s32.totalorder %v568, %v539
        %vm948 = vcmp.eq.s32.totalorder %v568, %v540
        %vm949 = vcmp.eq.s32.totalorder %v568, %v541
        %vm950 = vcmp.eq.s32.totalorder %v568, %v542
        %vm951 = vcmp.eq.s32.totalorder %v568, %v543
        %vm952 = vcmp.eq.s32.totalorder %v574, %v539
        %vm953 = vcmp.eq.s32.totalorder %v574, %v540
        %vm954 = vcmp.eq.s32.totalorder %v574, %v541
        %vm955 = vcmp.eq.s32.totalorder %v574, %v542
        %vm956 = vcmp.eq.s32.totalorder %v574, %v543
        %vm957 = vcmp.eq.s32.totalorder %v580, %v539
        %vm958 = vcmp.eq.s32.totalorder %v580, %v540
        %vm959 = vcmp.eq.s32.totalorder %v580, %v541
        %vm960 = vcmp.eq.s32.totalorder %v580, %v542
        %vm961 = vcmp.eq.s32.totalorder %v580, %v543
        %vm962 = vcmp.eq.s32.totalorder %v586, %v539
        %vm963 = vcmp.eq.s32.totalorder %v586, %v540
        %vm964 = vcmp.eq.s32.totalorder %v586, %v541
        %vm965 = vcmp.eq.s32.totalorder %v586, %v542
        %vm966 = vcmp.eq.s32.totalorder %v586, %v543
        %vm967 = vcmp.eq.s32.totalorder %v592, %v539
        %vm968 = vcmp.eq.s32.totalorder %v592, %v540
        %vm969 = vcmp.eq.s32.totalorder %v592, %v541
        %vm970 = vcmp.eq.s32.totalorder %v592, %v542
        %vm971 = vcmp.eq.s32.totalorder %v592, %v543
        %vm972 = vcmp.eq.s32.totalorder %v598, %v539
        %vm973 = vcmp.eq.s32.totalorder %v598, %v540
        %vm974 = vcmp.eq.s32.totalorder %v598, %v541
        %vm975 = vcmp.eq.s32.totalorder %v598, %v542
        %vm976 = vcmp.eq.s32.totalorder %v598, %v543
        %vm977 = vcmp.eq.s32.totalorder %v604, %v539
        %vm978 = vcmp.eq.s32.totalorder %v604, %v540
        %vm979 = vcmp.eq.s32.totalorder %v604, %v541
        %vm980 = vcmp.eq.s32.totalorder %v604, %v542
        %vm981 = vcmp.eq.s32.totalorder %v604, %v543
        %vm982 = vcmp.eq.s32.totalorder %v610, %v539
        %vm983 = vcmp.eq.s32.totalorder %v610, %v540
        %vm984 = vcmp.eq.s32.totalorder %v610, %v541
        %vm985 = vcmp.eq.s32.totalorder %v610, %v542
        %vm986 = vcmp.eq.s32.totalorder %v610, %v543
        %vm987 = vcmp.eq.s32.totalorder %v616, %v539
        %vm988 = vcmp.eq.s32.totalorder %v616, %v540
        %vm989 = vcmp.eq.s32.totalorder %v616, %v541
        %vm990 = vcmp.eq.s32.totalorder %v616, %v542
        %vm991 = vcmp.eq.s32.totalorder %v616, %v543
        %vm992 = vcmp.eq.s32.totalorder %v622, %v539
        %vm993 = vcmp.eq.s32.totalorder %v622, %v540
        %vm994 = vcmp.eq.s32.totalorder %v622, %v541
        %vm995 = vcmp.eq.s32.totalorder %v622, %v542
        %vm996 = vcmp.eq.s32.totalorder %v622, %v543
        %vm997 = vcmp.eq.s32.totalorder %v628, %v539
        %vm998 = vcmp.eq.s32.totalorder %v628, %v540
        %vm999 = vcmp.eq.s32.totalorder %v628, %v541
        %vm1000 = vcmp.eq.s32.totalorder %v628, %v542
        %vm1001 = vcmp.eq.s32.totalorder %v628, %v543
        %vm1002 = vcmp.eq.s32.totalorder %v634, %v539
        %vm1003 = vcmp.eq.s32.totalorder %v634, %v540
        %vm1004 = vcmp.eq.s32.totalorder %v634, %v541
        %vm1005 = vcmp.eq.s32.totalorder %v634, %v542
        %vm1006 = vcmp.eq.s32.totalorder %v634, %v543
        %vm1007 = vcmp.eq.s32.totalorder %v640, %v539
        %vm1008 = vcmp.eq.s32.totalorder %v640, %v540
        %vm1009 = vcmp.eq.s32.totalorder %v640, %v541
        %vm1010 = vcmp.eq.s32.totalorder %v640, %v542
        %vm1011 = vcmp.eq.s32.totalorder %v640, %v543
        %vm1012 = vcmp.eq.s32.totalorder %v647, %v539
        %vm1013 = vcmp.eq.s32.totalorder %v647, %v540
        %vm1014 = vcmp.eq.s32.totalorder %v647, %v541
        %vm1015 = vcmp.eq.s32.totalorder %v647, %v542
        %vm1016 = vcmp.eq.s32.totalorder %v647, %v543
        %vm1017 = vcmp.eq.s32.totalorder %v653, %v539
        %vm1018 = vcmp.eq.s32.totalorder %v653, %v540
        %vm1019 = vcmp.eq.s32.totalorder %v653, %v541
        %vm1020 = vcmp.eq.s32.totalorder %v653, %v542
        %vm1021 = vcmp.eq.s32.totalorder %v653, %v543
        %vm1022 = vcmp.eq.s32.totalorder %v659, %v539
        %vm1023 = vcmp.eq.s32.totalorder %v659, %v540
        %vm1024 = vcmp.eq.s32.totalorder %v659, %v541
        %vm1025 = vcmp.eq.s32.totalorder %v659, %v542
        %vm1026 = vcmp.eq.s32.totalorder %v659, %v543
        %vm1027 = vcmp.eq.s32.totalorder %v665, %v539
        %vm1028 = vcmp.eq.s32.totalorder %v665, %v540
        %vm1029 = vcmp.eq.s32.totalorder %v665, %v541
        %vm1030 = vcmp.eq.s32.totalorder %v665, %v542
        %vm1031 = vcmp.eq.s32.totalorder %v665, %v543
        %vm1032 = vcmp.eq.s32.totalorder %v671, %v539
        %vm1033 = vcmp.eq.s32.totalorder %v671, %v540
        %vm1034 = vcmp.eq.s32.totalorder %v671, %v541
        %vm1035 = vcmp.eq.s32.totalorder %v671, %v542
        %vm1036 = vcmp.eq.s32.totalorder %v671, %v543
        %vm1037 = vcmp.eq.s32.totalorder %v677, %v539
        %vm1038 = vcmp.eq.s32.totalorder %v677, %v540
        %vm1039 = vcmp.eq.s32.totalorder %v677, %v541
        %vm1040 = vcmp.eq.s32.totalorder %v677, %v542
        %vm1041 = vcmp.eq.s32.totalorder %v677, %v543
        %vm1042 = vcmp.eq.s32.totalorder %v683, %v539
        %vm1043 = vcmp.eq.s32.totalorder %v683, %v540
        %vm1044 = vcmp.eq.s32.totalorder %v683, %v541
        %vm1045 = vcmp.eq.s32.totalorder %v683, %v542
        %vm1046 = vcmp.eq.s32.totalorder %v683, %v543
        %vm1047 = vcmp.eq.s32.totalorder %v689, %v539
        %vm1048 = vcmp.eq.s32.totalorder %v689, %v540
        %vm1049 = vcmp.eq.s32.totalorder %v689, %v541
        %vm1050 = vcmp.eq.s32.totalorder %v689, %v542
        %vm1051 = vcmp.eq.s32.totalorder %v689, %v543
        %vm1052 = vcmp.eq.s32.totalorder %v695, %v539
        %vm1053 = vcmp.eq.s32.totalorder %v695, %v540
        %vm1054 = vcmp.eq.s32.totalorder %v695, %v541
        %vm1055 = vcmp.eq.s32.totalorder %v695, %v542
        %vm1056 = vcmp.eq.s32.totalorder %v695, %v543
        %vm1057 = vcmp.eq.s32.totalorder %v701, %v539
        %vm1058 = vcmp.eq.s32.totalorder %v701, %v540
        %vm1059 = vcmp.eq.s32.totalorder %v701, %v541
        %vm1060 = vcmp.eq.s32.totalorder %v701, %v542
        %vm1061 = vcmp.eq.s32.totalorder %v701, %v543
        %vm1062 = vcmp.eq.s32.totalorder %v707, %v539
        %vm1063 = vcmp.eq.s32.totalorder %v707, %v540
        %vm1064 = vcmp.eq.s32.totalorder %v707, %v541
        %vm1065 = vcmp.eq.s32.totalorder %v707, %v542
        %vm1066 = vcmp.eq.s32.totalorder %v707, %v543
        %vm1067 = vcmp.eq.s32.totalorder %v713, %v539
        %vm1068 = vcmp.eq.s32.totalorder %v713, %v540
        %vm1069 = vcmp.eq.s32.totalorder %v713, %v541
        %vm1070 = vcmp.eq.s32.totalorder %v713, %v542
        %vm1071 = vcmp.eq.s32.totalorder %v713, %v543
        %vm1072 = vcmp.eq.s32.totalorder %v719, %v539
        %vm1073 = vcmp.eq.s32.totalorder %v719, %v540
        %vm1074 = vcmp.eq.s32.totalorder %v719, %v541
        %vm1075 = vcmp.eq.s32.totalorder %v719, %v542
        %vm1076 = vcmp.eq.s32.totalorder %v719, %v543
        %vm1077 = vcmp.eq.s32.totalorder %v725, %v539
        %vm1078 = vcmp.eq.s32.totalorder %v725, %v540
        %vm1079 = vcmp.eq.s32.totalorder %v725, %v541
        %vm1080 = vcmp.eq.s32.totalorder %v725, %v542
        %vm1081 = vcmp.eq.s32.totalorder %v725, %v543
        %vm1082 = vcmp.eq.s32.totalorder %v731, %v539
        %vm1083 = vcmp.eq.s32.totalorder %v731, %v540
        %vm1084 = vcmp.eq.s32.totalorder %v731, %v541
        %vm1085 = vcmp.eq.s32.totalorder %v731, %v542
        %vm1086 = vcmp.eq.s32.totalorder %v731, %v543
        %vm1087 = vcmp.eq.s32.totalorder %v737, %v539
        %vm1088 = vcmp.eq.s32.totalorder %v737, %v540
        %vm1089 = vcmp.eq.s32.totalorder %v737, %v541
        %vm1090 = vcmp.eq.s32.totalorder %v737, %v542
        %vm1091 = vcmp.eq.s32.totalorder %v737, %v543
        %vm1092 = vcmp.eq.s32.totalorder %v744, %v539
        %vm1093 = vcmp.eq.s32.totalorder %v744, %v540
        %vm1094 = vcmp.eq.s32.totalorder %v744, %v541
        %vm1095 = vcmp.eq.s32.totalorder %v744, %v542
        %vm1096 = vcmp.eq.s32.totalorder %v744, %v543
        %vm1097 = vcmp.eq.s32.totalorder %v750, %v539
        %vm1098 = vcmp.eq.s32.totalorder %v750, %v540
        %vm1099 = vcmp.eq.s32.totalorder %v750, %v541
        %vm1100 = vcmp.eq.s32.totalorder %v750, %v542
        %vm1101 = vcmp.eq.s32.totalorder %v750, %v543
        %vm1102 = vcmp.eq.s32.totalorder %v756, %v539
        %vm1103 = vcmp.eq.s32.totalorder %v756, %v540
        %vm1104 = vcmp.eq.s32.totalorder %v756, %v541
        %vm1105 = vcmp.eq.s32.totalorder %v756, %v542
        %vm1106 = vcmp.eq.s32.totalorder %v756, %v543
        %vm1107 = vcmp.eq.s32.totalorder %v762, %v539
        %vm1108 = vcmp.eq.s32.totalorder %v762, %v540
        %vm1109 = vcmp.eq.s32.totalorder %v762, %v541
        %vm1110 = vcmp.eq.s32.totalorder %v762, %v542
        %vm1111 = vcmp.eq.s32.totalorder %v762, %v543
        %vm1112 = vcmp.eq.s32.totalorder %v768, %v539
        %vm1113 = vcmp.eq.s32.totalorder %v768, %v540
        %vm1114 = vcmp.eq.s32.totalorder %v768, %v541
        %vm1115 = vcmp.eq.s32.totalorder %v768, %v542
        %vm1116 = vcmp.eq.s32.totalorder %v768, %v543
        %vm1117 = vcmp.eq.s32.totalorder %v774, %v539
        %vm1118 = vcmp.eq.s32.totalorder %v774, %v540
        %vm1119 = vcmp.eq.s32.totalorder %v774, %v541
        %vm1120 = vcmp.eq.s32.totalorder %v774, %v542
        %vm1121 = vcmp.eq.s32.totalorder %v774, %v543
        %vm1122 = vcmp.eq.s32.totalorder %v780, %v539
        %vm1123 = vcmp.eq.s32.totalorder %v780, %v540
        %vm1124 = vcmp.eq.s32.totalorder %v780, %v541
        %vm1125 = vcmp.eq.s32.totalorder %v780, %v542
        %vm1126 = vcmp.eq.s32.totalorder %v780, %v543
        %vm1127 = vcmp.eq.s32.totalorder %v786, %v539
        %vm1128 = vcmp.eq.s32.totalorder %v786, %v540
        %vm1129 = vcmp.eq.s32.totalorder %v786, %v541
        %vm1130 = vcmp.eq.s32.totalorder %v786, %v542
        %vm1131 = vcmp.eq.s32.totalorder %v786, %v543
        %vm1132 = vcmp.eq.s32.totalorder %v792, %v539
        %vm1133 = vcmp.eq.s32.totalorder %v792, %v540
        %vm1134 = vcmp.eq.s32.totalorder %v792, %v541
        %vm1135 = vcmp.eq.s32.totalorder %v792, %v542
        %vm1136 = vcmp.eq.s32.totalorder %v792, %v543
        %vm1137 = vcmp.eq.s32.totalorder %v798, %v539
        %vm1138 = vcmp.eq.s32.totalorder %v798, %v540
        %vm1139 = vcmp.eq.s32.totalorder %v798, %v541
        %vm1140 = vcmp.eq.s32.totalorder %v798, %v542
        %vm1141 = vcmp.eq.s32.totalorder %v798, %v543
        %vm1142 = vcmp.eq.s32.totalorder %v804, %v539
        %vm1143 = vcmp.eq.s32.totalorder %v804, %v540
        %vm1144 = vcmp.eq.s32.totalorder %v804, %v541
        %vm1145 = vcmp.eq.s32.totalorder %v804, %v542
        %vm1146 = vcmp.eq.s32.totalorder %v804, %v543
        %vm1147 = vcmp.eq.s32.totalorder %v810, %v539
        %vm1148 = vcmp.eq.s32.totalorder %v810, %v540
        %vm1149 = vcmp.eq.s32.totalorder %v810, %v541
        %vm1150 = vcmp.eq.s32.totalorder %v810, %v542
        %vm1151 = vcmp.eq.s32.totalorder %v810, %v543
        %vm1152 = vcmp.eq.s32.totalorder %v816, %v539
        %vm1153 = vcmp.eq.s32.totalorder %v816, %v540
        %vm1154 = vcmp.eq.s32.totalorder %v816, %v541
        %vm1155 = vcmp.eq.s32.totalorder %v816, %v542
        %vm1156 = vcmp.eq.s32.totalorder %v816, %v543
        %vm1157 = vcmp.eq.s32.totalorder %v822, %v539
        %vm1158 = vcmp.eq.s32.totalorder %v822, %v540
        %vm1159 = vcmp.eq.s32.totalorder %v822, %v541
        %vm1160 = vcmp.eq.s32.totalorder %v822, %v542
        %vm1161 = vcmp.eq.s32.totalorder %v822, %v543
        %vm1162 = vcmp.eq.s32.totalorder %v828, %v539
        %vm1163 = vcmp.eq.s32.totalorder %v828, %v540
        %vm1164 = vcmp.eq.s32.totalorder %v828, %v541
        %vm1165 = vcmp.eq.s32.totalorder %v828, %v542
        %vm1166 = vcmp.eq.s32.totalorder %v828, %v543
        %vm1167 = vcmp.eq.s32.totalorder %v834, %v539
        %vm1168 = vcmp.eq.s32.totalorder %v834, %v540
        %vm1169 = vcmp.eq.s32.totalorder %v834, %v541
        %vm1170 = vcmp.eq.s32.totalorder %v834, %v542
        %vm1171 = vcmp.eq.s32.totalorder %v834, %v543
        %vm1172 = vcmp.eq.s32.totalorder %v841, %v539
        %vm1173 = vcmp.eq.s32.totalorder %v841, %v540
        %vm1174 = vcmp.eq.s32.totalorder %v841, %v541
        %vm1175 = vcmp.eq.s32.totalorder %v841, %v542
        %vm1176 = vcmp.eq.s32.totalorder %v841, %v543
        %vm1177 = vcmp.eq.s32.totalorder %v847, %v539
        %vm1178 = vcmp.eq.s32.totalorder %v847, %v540
        %vm1179 = vcmp.eq.s32.totalorder %v847, %v541
        %vm1180 = vcmp.eq.s32.totalorder %v847, %v542
        %vm1181 = vcmp.eq.s32.totalorder %v847, %v543
        %vm1182 = vcmp.eq.s32.totalorder %v853, %v539
        %vm1183 = vcmp.eq.s32.totalorder %v853, %v540
        %vm1184 = vcmp.eq.s32.totalorder %v853, %v541
        %vm1185 = vcmp.eq.s32.totalorder %v853, %v542
        %vm1186 = vcmp.eq.s32.totalorder %v853, %v543
        %vm1187 = vcmp.eq.s32.totalorder %v859, %v539
        %vm1188 = vcmp.eq.s32.totalorder %v859, %v540
        %vm1189 = vcmp.eq.s32.totalorder %v859, %v541
        %vm1190 = vcmp.eq.s32.totalorder %v859, %v542
        %vm1191 = vcmp.eq.s32.totalorder %v859, %v543
        %vm1192 = vcmp.eq.s32.totalorder %v865, %v539
        %vm1193 = vcmp.eq.s32.totalorder %v865, %v540
        %vm1194 = vcmp.eq.s32.totalorder %v865, %v541
        %vm1195 = vcmp.eq.s32.totalorder %v865, %v542
        %vm1196 = vcmp.eq.s32.totalorder %v865, %v543
        %vm1197 = vcmp.eq.s32.totalorder %v871, %v539
        %vm1198 = vcmp.eq.s32.totalorder %v871, %v540
        %vm1199 = vcmp.eq.s32.totalorder %v871, %v541
        %vm1200 = vcmp.eq.s32.totalorder %v871, %v542
        %vm1201 = vcmp.eq.s32.totalorder %v871, %v543
        %vm1202 = vcmp.eq.s32.totalorder %v877, %v539
        %vm1203 = vcmp.eq.s32.totalorder %v877, %v540
        %vm1204 = vcmp.eq.s32.totalorder %v877, %v541
        %vm1205 = vcmp.eq.s32.totalorder %v877, %v542
        %vm1206 = vcmp.eq.s32.totalorder %v877, %v543
        %vm1207 = vcmp.eq.s32.totalorder %v883, %v539
        %vm1208 = vcmp.eq.s32.totalorder %v883, %v540
        %vm1209 = vcmp.eq.s32.totalorder %v883, %v541
        %vm1210 = vcmp.eq.s32.totalorder %v883, %v542
        %vm1211 = vcmp.eq.s32.totalorder %v883, %v543
        %vm1212 = vcmp.eq.s32.totalorder %v889, %v539
        %vm1213 = vcmp.eq.s32.totalorder %v889, %v540
        %vm1214 = vcmp.eq.s32.totalorder %v889, %v541
        %vm1215 = vcmp.eq.s32.totalorder %v889, %v542
        %vm1216 = vcmp.eq.s32.totalorder %v889, %v543
        %vm1217 = vcmp.eq.s32.totalorder %v895, %v539
        %vm1218 = vcmp.eq.s32.totalorder %v895, %v540
        %vm1219 = vcmp.eq.s32.totalorder %v895, %v541
        %vm1220 = vcmp.eq.s32.totalorder %v895, %v542
        %vm1221 = vcmp.eq.s32.totalorder %v895, %v543
        %vm1222 = vcmp.eq.s32.totalorder %v901, %v539
        %vm1223 = vcmp.eq.s32.totalorder %v901, %v540
        %vm1224 = vcmp.eq.s32.totalorder %v901, %v541
        %vm1225 = vcmp.eq.s32.totalorder %v901, %v542
        %vm1226 = vcmp.eq.s32.totalorder %v901, %v543
        %vm1227 = vcmp.eq.s32.totalorder %v907, %v539
        %vm1228 = vcmp.eq.s32.totalorder %v907, %v540
        %vm1229 = vcmp.eq.s32.totalorder %v907, %v541
        %vm1230 = vcmp.eq.s32.totalorder %v907, %v542
        %vm1231 = vcmp.eq.s32.totalorder %v907, %v543
        %vm1232 = vcmp.eq.s32.totalorder %v913, %v539
        %vm1233 = vcmp.eq.s32.totalorder %v913, %v540
        %vm1234 = vcmp.eq.s32.totalorder %v913, %v541
        %vm1235 = vcmp.eq.s32.totalorder %v913, %v542
        %vm1236 = vcmp.eq.s32.totalorder %v913, %v543
        %vm1237 = vcmp.eq.s32.totalorder %v919, %v539
        %vm1238 = vcmp.eq.s32.totalorder %v919, %v540
        %vm1239 = vcmp.eq.s32.totalorder %v919, %v541
        %vm1240 = vcmp.eq.s32.totalorder %v919, %v542
        %vm1241 = vcmp.eq.s32.totalorder %v919, %v543
        %vm1242 = vcmp.eq.s32.totalorder %v925, %v539
        %vm1243 = vcmp.eq.s32.totalorder %v925, %v540
        %vm1244 = vcmp.eq.s32.totalorder %v925, %v541
        %vm1245 = vcmp.eq.s32.totalorder %v925, %v542
        %vm1246 = vcmp.eq.s32.totalorder %v925, %v543
        %vm1247 = vcmp.eq.s32.totalorder %v931, %v539
        %vm1248 = vcmp.eq.s32.totalorder %v931, %v540
        %vm1249 = vcmp.eq.s32.totalorder %v931, %v541
        %vm1250 = vcmp.eq.s32.totalorder %v931, %v542
        %vm1251 = vcmp.eq.s32.totalorder %v931, %v543
        %v1252 = vsel %vm932, 1, 0
        %v1253 = vsel %vm933, 1, 0
        %v1254 = vsel %vm934, 1, 0
        %v1255 = vsel %vm935, 1, 0
        %v1256 = vsel %vm936, 1, 0
        %v1257 = vsel %vm937, 1, 0
        %v1258 = vsel %vm938, 1, 0
        %v1259 = vsel %vm939, 1, 0
        %v1260 = vsel %vm940, 1, 0
        %v1261 = vsel %vm941, 1, 0
        %v1262 = vsel %vm942, 1, 0
        %v1263 = vsel %vm943, 1, 0
        %v1264 = vsel %vm944, 1, 0
        %v1265 = vsel %vm945, 1, 0
        %v1266 = vsel %vm946, 1, 0
        %v1267 = vsel %vm947, 1, 0
        %v1268 = vsel %vm948, 1, 0
        %v1269 = vsel %vm949, 1, 0
        %v1270 = vsel %vm950, 1, 0
        %v1271 = vsel %vm951, 1, 0
        %v1272 = vsel %vm952, 1, 0
        %v1273 = vsel %vm953, 1, 0
        %v1274 = vsel %vm954, 1, 0
        %v1275 = vsel %vm955, 1, 0
        %v1276 = vsel %vm956, 1, 0
        %v1277 = vsel %vm957, 1, 0
        %v1278 = vsel %vm958, 1, 0
        %v1279 = vsel %vm959, 1, 0
        %v1280 = vsel %vm960, 1, 0
        %v1281 = vsel %vm961, 1, 0
        %v1282 = vsel %vm962, 1, 0
        %v1283 = vsel %vm963, 1, 0
        %v1284 = vsel %vm964, 1, 0
        %v1285 = vsel %vm965, 1, 0
        %v1286 = vsel %vm966, 1, 0
        %v1287 = vsel %vm967, 1, 0
        %v1288 = vsel %vm968, 1, 0
        %v1289 = vsel %vm969, 1, 0
        %v1290 = vsel %vm970, 1, 0
        %v1291 = vsel %vm971, 1, 0
        %v1292 = vsel %vm972, 1, 0
        %v1293 = vsel %vm973, 1, 0
        %v1294 = vsel %vm974, 1, 0
        %v1295 = vsel %vm975, 1, 0
        %v1296 = vsel %vm976, 1, 0
        %v1297 = vsel %vm977, 1, 0
        %v1298 = vsel %vm978, 1, 0
        %v1299 = vsel %vm979, 1, 0
        %v1300 = vsel %vm980, 1, 0
        %v1301 = vsel %vm981, 1, 0
        %v1302 = vsel %vm982, 1, 0
        %v1303 = vsel %vm983, 1, 0
        %v1304 = vsel %vm984, 1, 0
        %v1305 = vsel %vm985, 1, 0
        %v1306 = vsel %vm986, 1, 0
        %v1307 = vsel %vm987, 1, 0
        %v1308 = vsel %vm988, 1, 0
        %v1309 = vsel %vm989, 1, 0
        %v1310 = vsel %vm990, 1, 0
        %v1311 = vsel %vm991, 1, 0
        %v1312 = vsel %vm992, 1, 0
        %v1313 = vsel %vm993, 1, 0
        %v1314 = vsel %vm994, 1, 0
        %v1315 = vsel %vm995, 1, 0
        %v1316 = vsel %vm996, 1, 0
        %v1317 = vsel %vm997, 1, 0
        %v1318 = vsel %vm998, 1, 0
        %v1319 = vsel %vm999, 1, 0
        %v1320 = vsel %vm1000, 1, 0
        %v1321 = vsel %vm1001, 1, 0
        %v1322 = vsel %vm1002, 1, 0
        %v1323 = vsel %vm1003, 1, 0
        %v1324 = vsel %vm1004, 1, 0
        %v1325 = vsel %vm1005, 1, 0
        %v1326 = vsel %vm1006, 1, 0
        %v1327 = vsel %vm1007, 1, 0
        %v1328 = vsel %vm1008, 1, 0
        %v1329 = vsel %vm1009, 1, 0
        %v1330 = vsel %vm1010, 1, 0
        %v1331 = vsel %vm1011, 1, 0
        %v1332 = vsel %vm1012, 1, 0
        %v1333 = vsel %vm1013, 1, 0
        %v1334 = vsel %vm1014, 1, 0
        %v1335 = vsel %vm1015, 1, 0
        %v1336 = vsel %vm1016, 1, 0
        %v1337 = vsel %vm1017, 1, 0
        %v1338 = vsel %vm1018, 1, 0
        %v1339 = vsel %vm1019, 1, 0
        %v1340 = vsel %vm1020, 1, 0
        %v1341 = vsel %vm1021, 1, 0
        %v1342 = vsel %vm1022, 1, 0
        %v1343 = vsel %vm1023, 1, 0
        %v1344 = vsel %vm1024, 1, 0
        %v1345 = vsel %vm1025, 1, 0
        %v1346 = vsel %vm1026, 1, 0
        %v1347 = vsel %vm1027, 1, 0
        %v1348 = vsel %vm1028, 1, 0
        %v1349 = vsel %vm1029, 1, 0
        %v1350 = vsel %vm1030, 1, 0
        %v1351 = vsel %vm1031, 1, 0
        %v1352 = vsel %vm1032, 1, 0
        %v1353 = vsel %vm1033, 1, 0
        %v1354 = vsel %vm1034, 1, 0
        %v1355 = vsel %vm1035, 1, 0
        %v1356 = vsel %vm1036, 1, 0
        %v1357 = vsel %vm1037, 1, 0
        %v1358 = vsel %vm1038, 1, 0
        %v1359 = vsel %vm1039, 1, 0
        %v1360 = vsel %vm1040, 1, 0
        %v1361 = vsel %vm1041, 1, 0
        %v1362 = vsel %vm1042, 1, 0
        %v1363 = vsel %vm1043, 1, 0
        %v1364 = vsel %vm1044, 1, 0
        %v1365 = vsel %vm1045, 1, 0
        %v1366 = vsel %vm1046, 1, 0
        %v1367 = vsel %vm1047, 1, 0
        %v1368 = vsel %vm1048, 1, 0
        %v1369 = vsel %vm1049, 1, 0
        %v1370 = vsel %vm1050, 1, 0
        %v1371 = vsel %vm1051, 1, 0
        %v1372 = vsel %vm1052, 1, 0
        %v1373 = vsel %vm1053, 1, 0
        %v1374 = vsel %vm1054, 1, 0
        %v1375 = vsel %vm1055, 1, 0
        %v1376 = vsel %vm1056, 1, 0
        %v1377 = vsel %vm1057, 1, 0
        %v1378 = vsel %vm1058, 1, 0
        %v1379 = vsel %vm1059, 1, 0
        %v1380 = vsel %vm1060, 1, 0
        %v1381 = vsel %vm1061, 1, 0
        %v1382 = vsel %vm1062, 1, 0
        %v1383 = vsel %vm1063, 1, 0
        %v1384 = vsel %vm1064, 1, 0
        %v1385 = vsel %vm1065, 1, 0
        %v1386 = vsel %vm1066, 1, 0
        %v1387 = vsel %vm1067, 1, 0
        %v1388 = vsel %vm1068, 1, 0
        %v1389 = vsel %vm1069, 1, 0
        %v1390 = vsel %vm1070, 1, 0
        %v1391 = vsel %vm1071, 1, 0
        %v1392 = vsel %vm1072, 1, 0
        %v1393 = vsel %vm1073, 1, 0
        %v1394 = vsel %vm1074, 1, 0
        %v1395 = vsel %vm1075, 1, 0
        %v1396 = vsel %vm1076, 1, 0
        %v1397 = vsel %vm1077, 1, 0
        %v1398 = vsel %vm1078, 1, 0
        %v1399 = vsel %vm1079, 1, 0
        %v1400 = vsel %vm1080, 1, 0
        %v1401 = vsel %vm1081, 1, 0
        %v1402 = vsel %vm1082, 1, 0
        %v1403 = vsel %vm1083, 1, 0
        %v1404 = vsel %vm1084, 1, 0
        %v1405 = vsel %vm1085, 1, 0
        %v1406 = vsel %vm1086, 1, 0
        %v1407 = vsel %vm1087, 1, 0
        %v1408 = vsel %vm1088, 1, 0
        %v1409 = vsel %vm1089, 1, 0
        %v1410 = vsel %vm1090, 1, 0
        %v1411 = vsel %vm1091, 1, 0
        %v1412 = vsel %vm1092, 1, 0
        %v1413 = vsel %vm1093, 1, 0
        %v1414 = vsel %vm1094, 1, 0
        %v1415 = vsel %vm1095, 1, 0
        %v1416 = vsel %vm1096, 1, 0
        %v1417 = vsel %vm1097, 1, 0
        %v1418 = vsel %vm1098, 1, 0
        %v1419 = vsel %vm1099, 1, 0
        %v1420 = vsel %vm1100, 1, 0
        %v1421 = vsel %vm1101, 1, 0
        %v1422 = vsel %vm1102, 1, 0
        %v1423 = vsel %vm1103, 1, 0
        %v1424 = vsel %vm1104, 1, 0
        %v1425 = vsel %vm1105, 1, 0
        %v1426 = vsel %vm1106, 1, 0
        %v1427 = vsel %vm1107, 1, 0
        %v1428 = vsel %vm1108, 1, 0
        %v1429 = vsel %vm1109, 1, 0
        %v1430 = vsel %vm1110, 1, 0
        %v1431 = vsel %vm1111, 1, 0
        %v1432 = vsel %vm1112, 1, 0
        %v1433 = vsel %vm1113, 1, 0
        %v1434 = vsel %vm1114, 1, 0
        %v1435 = vsel %vm1115, 1, 0
        %v1436 = vsel %vm1116, 1, 0
        %v1437 = vsel %vm1117, 1, 0
        %v1438 = vsel %vm1118, 1, 0
        %v1439 = vsel %vm1119, 1, 0
        %v1440 = vsel %vm1120, 1, 0
        %v1441 = vsel %vm1121, 1, 0
        %v1442 = vsel %vm1122, 1, 0
        %v1443 = vsel %vm1123, 1, 0
        %v1444 = vsel %vm1124, 1, 0
        %v1445 = vsel %vm1125, 1, 0
        %v1446 = vsel %vm1126, 1, 0
        %v1447 = vsel %vm1127, 1, 0
        %v1448 = vsel %vm1128, 1, 0
        %v1449 = vsel %vm1129, 1, 0
        %v1450 = vsel %vm1130, 1, 0
        %v1451 = vsel %vm1131, 1, 0
        %v1452 = vsel %vm1132, 1, 0
        %v1453 = vsel %vm1133, 1, 0
        %v1454 = vsel %vm1134, 1, 0
        %v1455 = vsel %vm1135, 1, 0
        %v1456 = vsel %vm1136, 1, 0
        %v1457 = vsel %vm1137, 1, 0
        %v1458 = vsel %vm1138, 1, 0
        %v1459 = vsel %vm1139, 1, 0
        %v1460 = vsel %vm1140, 1, 0
        %v1461 = vsel %vm1141, 1, 0
        %v1462 = vsel %vm1142, 1, 0
        %v1463 = vsel %vm1143, 1, 0
        %v1464 = vsel %vm1144, 1, 0
        %v1465 = vsel %vm1145, 1, 0
        %v1466 = vsel %vm1146, 1, 0
        %v1467 = vsel %vm1147, 1, 0
        %v1468 = vsel %vm1148, 1, 0
        %v1469 = vsel %vm1149, 1, 0
        %v1470 = vsel %vm1150, 1, 0
        %v1471 = vsel %vm1151, 1, 0
        %v1472 = vsel %vm1152, 1, 0
        %v1473 = vsel %vm1153, 1, 0
        %v1474 = vsel %vm1154, 1, 0
        %v1475 = vsel %vm1155, 1, 0
        %v1476 = vsel %vm1156, 1, 0
        %v1477 = vsel %vm1157, 1, 0
        %v1478 = vsel %vm1158, 1, 0
        %v1479 = vsel %vm1159, 1, 0
        %v1480 = vsel %vm1160, 1, 0
        %v1481 = vsel %vm1161, 1, 0
        %v1482 = vsel %vm1162, 1, 0
        %v1483 = vsel %vm1163, 1, 0
        %v1484 = vsel %vm1164, 1, 0
        %v1485 = vsel %vm1165, 1, 0
        %v1486 = vsel %vm1166, 1, 0
        %v1487 = vsel %vm1167, 1, 0
        %v1488 = vsel %vm1168, 1, 0
        %v1489 = vsel %vm1169, 1, 0
        %v1490 = vsel %vm1170, 1, 0
        %v1491 = vsel %vm1171, 1, 0
        %v1492 = vsel %vm1172, 1, 0
        %v1493 = vsel %vm1173, 1, 0
        %v1494 = vsel %vm1174, 1, 0
        %v1495 = vsel %vm1175, 1, 0
        %v1496 = vsel %vm1176, 1, 0
        %v1497 = vsel %vm1177, 1, 0
        %v1498 = vsel %vm1178, 1, 0
        %v1499 = vsel %vm1179, 1, 0
        %v1500 = vsel %vm1180, 1, 0
        %v1501 = vsel %vm1181, 1, 0
        %v1502 = vsel %vm1182, 1, 0
        %v1503 = vsel %vm1183, 1, 0
        %v1504 = vsel %vm1184, 1, 0
        %v1505 = vsel %vm1185, 1, 0
        %v1506 = vsel %vm1186, 1, 0
        %v1507 = vsel %vm1187, 1, 0
        %v1508 = vsel %vm1188, 1, 0
        %v1509 = vsel %vm1189, 1, 0
        %v1510 = vsel %vm1190, 1, 0
        %v1511 = vsel %vm1191, 1, 0
        %v1512 = vsel %vm1192, 1, 0
        %v1513 = vsel %vm1193, 1, 0
        %v1514 = vsel %vm1194, 1, 0
        %v1515 = vsel %vm1195, 1, 0
        %v1516 = vsel %vm1196, 1, 0
        %v1517 = vsel %vm1197, 1, 0
        %v1518 = vsel %vm1198, 1, 0
        %v1519 = vsel %vm1199, 1, 0
        %v1520 = vsel %vm1200, 1, 0
        %v1521 = vsel %vm1201, 1, 0
        %v1522 = vsel %vm1202, 1, 0
        %v1523 = vsel %vm1203, 1, 0
        %v1524 = vsel %vm1204, 1, 0
        %v1525 = vsel %vm1205, 1, 0
        %v1526 = vsel %vm1206, 1, 0
        %v1527 = vsel %vm1207, 1, 0
        %v1528 = vsel %vm1208, 1, 0
        %v1529 = vsel %vm1209, 1, 0
        %v1530 = vsel %vm1210, 1, 0
        %v1531 = vsel %vm1211, 1, 0
        %v1532 = vsel %vm1212, 1, 0
        %v1533 = vsel %vm1213, 1, 0
        %v1534 = vsel %vm1214, 1, 0
        %v1535 = vsel %vm1215, 1, 0
        %v1536 = vsel %vm1216, 1, 0
        %v1537 = vsel %vm1217, 1, 0
        %v1538 = vsel %vm1218, 1, 0
        %v1539 = vsel %vm1219, 1, 0
        %v1540 = vsel %vm1220, 1, 0
        %v1541 = vsel %vm1221, 1, 0
        %v1542 = vsel %vm1222, 1, 0
        %v1543 = vsel %vm1223, 1, 0
        %v1544 = vsel %vm1224, 1, 0
        %v1545 = vsel %vm1225, 1, 0
        %v1546 = vsel %vm1226, 1, 0
        %v1547 = vsel %vm1227, 1, 0
        %v1548 = vsel %vm1228, 1, 0
        %v1549 = vsel %vm1229, 1, 0
        %v1550 = vsel %vm1230, 1, 0
        %v1551 = vsel %vm1231, 1, 0
        %v1552 = vsel %vm1232, 1, 0
        %v1553 = vsel %vm1233, 1, 0
        %v1554 = vsel %vm1234, 1, 0
        %v1555 = vsel %vm1235, 1, 0
        %v1556 = vsel %vm1236, 1, 0
        %v1557 = vsel %vm1237, 1, 0
        %v1558 = vsel %vm1238, 1, 0
        %v1559 = vsel %vm1239, 1, 0
        %v1560 = vsel %vm1240, 1, 0
        %v1561 = vsel %vm1241, 1, 0
        %v1562 = vsel %vm1242, 1, 0
        %v1563 = vsel %vm1243, 1, 0
        %v1564 = vsel %vm1244, 1, 0
        %v1565 = vsel %vm1245, 1, 0
        %v1566 = vsel %vm1246, 1, 0
        %v1567 = vsel %vm1247, 1, 0
        %v1568 = vsel %vm1248, 1, 0
        %v1569 = vsel %vm1249, 1, 0
        %v1570 = vsel %vm1250, 1, 0
        %v1571 = vsel %vm1251, 1, 0
        %v1572 = vcvt.s32.f32 %v1252
        %v1573 = vcvt.s32.f32 %v1253
        %v1574 = vcvt.s32.f32 %v1254
        %v1575 = vcvt.s32.f32 %v1255
        %v1576 = vcvt.s32.f32 %v1256
        %v1577 = vcvt.s32.f32 %v1257
        %v1578 = vcvt.s32.f32 %v1258
        %v1579 = vcvt.s32.f32 %v1259
        %v1580 = vcvt.s32.f32 %v1260
        %v1581 = vcvt.s32.f32 %v1261
        %v1582 = vcvt.s32.f32 %v1262
        %v1583 = vcvt.s32.f32 %v1263
        %v1584 = vcvt.s32.f32 %v1264
        %v1585 = vcvt.s32.f32 %v1265
        %v1586 = vcvt.s32.f32 %v1266
        %v1587 = vcvt.s32.f32 %v1267
        %v1588 = vcvt.s32.f32 %v1268
        %v1589 = vcvt.s32.f32 %v1269
        %v1590 = vcvt.s32.f32 %v1270
        %v1591 = vcvt.s32.f32 %v1271
        %v1592 = vcvt.s32.f32 %v1272
        %v1593 = vcvt.s32.f32 %v1273
        %v1594 = vcvt.s32.f32 %v1274
        %v1595 = vcvt.s32.f32 %v1275
        %v1596 = vcvt.s32.f32 %v1276
        %v1597 = vcvt.s32.f32 %v1277
        %v1598 = vcvt.s32.f32 %v1278
        %v1599 = vcvt.s32.f32 %v1279
        %v1600 = vcvt.s32.f32 %v1280
        %v1601 = vcvt.s32.f32 %v1281
        %v1602 = vcvt.s32.f32 %v1282
        %v1603 = vcvt.s32.f32 %v1283
        %v1604 = vcvt.s32.f32 %v1284
        %v1605 = vcvt.s32.f32 %v1285
        %v1606 = vcvt.s32.f32 %v1286
        %v1607 = vcvt.s32.f32 %v1287
        %v1608 = vcvt.s32.f32 %v1288
        %v1609 = vcvt.s32.f32 %v1289
        %v1610 = vcvt.s32.f32 %v1290
        %v1611 = vcvt.s32.f32 %v1291
        %v1612 = vcvt.s32.f32 %v1292
        %v1613 = vcvt.s32.f32 %v1293
        %v1614 = vcvt.s32.f32 %v1294
        %v1615 = vcvt.s32.f32 %v1295
        %v1616 = vcvt.s32.f32 %v1296
        %v1617 = vcvt.s32.f32 %v1297
        %v1618 = vcvt.s32.f32 %v1298
        %v1619 = vcvt.s32.f32 %v1299
        %v1620 = vcvt.s32.f32 %v1300
        %v1621 = vcvt.s32.f32 %v1301
        %v1622 = vcvt.s32.f32 %v1302
        %v1623 = vcvt.s32.f32 %v1303
        %v1624 = vcvt.s32.f32 %v1304
        %v1625 = vcvt.s32.f32 %v1305
        %v1626 = vcvt.s32.f32 %v1306
        %v1627 = vcvt.s32.f32 %v1307
        %v1628 = vcvt.s32.f32 %v1308
        %v1629 = vcvt.s32.f32 %v1309
        %v1630 = vcvt.s32.f32 %v1310
        %v1631 = vcvt.s32.f32 %v1311
        %v1632 = vcvt.s32.f32 %v1312
        %v1633 = vcvt.s32.f32 %v1313
        %v1634 = vcvt.s32.f32 %v1314
        %v1635 = vcvt.s32.f32 %v1315
        %v1636 = vcvt.s32.f32 %v1316
        %v1637 = vcvt.s32.f32 %v1317
        %v1638 = vcvt.s32.f32 %v1318
        %v1639 = vcvt.s32.f32 %v1319
        %v1640 = vcvt.s32.f32 %v1320
        %v1641 = vcvt.s32.f32 %v1321
        %v1642 = vcvt.s32.f32 %v1322
        %v1643 = vcvt.s32.f32 %v1323
        %v1644 = vcvt.s32.f32 %v1324
        %v1645 = vcvt.s32.f32 %v1325
        %v1646 = vcvt.s32.f32 %v1326
        %v1647 = vcvt.s32.f32 %v1327
        %v1648 = vcvt.s32.f32 %v1328
        %v1649 = vcvt.s32.f32 %v1329
        %v1650 = vcvt.s32.f32 %v1330
        %v1651 = vcvt.s32.f32 %v1331
        %v1652 = vcvt.s32.f32 %v1332
        %v1653 = vcvt.s32.f32 %v1333
        %v1654 = vcvt.s32.f32 %v1334
        %v1655 = vcvt.s32.f32 %v1335
        %v1656 = vcvt.s32.f32 %v1336
        %v1657 = vcvt.s32.f32 %v1337
        %v1658 = vcvt.s32.f32 %v1338
        %v1659 = vcvt.s32.f32 %v1339
        %v1660 = vcvt.s32.f32 %v1340
        %v1661 = vcvt.s32.f32 %v1341
        %v1662 = vcvt.s32.f32 %v1342
        %v1663 = vcvt.s32.f32 %v1343
        %v1664 = vcvt.s32.f32 %v1344
        %v1665 = vcvt.s32.f32 %v1345
        %v1666 = vcvt.s32.f32 %v1346
        %v1667 = vcvt.s32.f32 %v1347
        %v1668 = vcvt.s32.f32 %v1348
        %v1669 = vcvt.s32.f32 %v1349
        %v1670 = vcvt.s32.f32 %v1350
        %v1671 = vcvt.s32.f32 %v1351
        %v1672 = vcvt.s32.f32 %v1352
        %v1673 = vcvt.s32.f32 %v1353
        %v1674 = vcvt.s32.f32 %v1354
        %v1675 = vcvt.s32.f32 %v1355
        %v1676 = vcvt.s32.f32 %v1356
        %v1677 = vcvt.s32.f32 %v1357
        %v1678 = vcvt.s32.f32 %v1358
        %v1679 = vcvt.s32.f32 %v1359
        %v1680 = vcvt.s32.f32 %v1360
        %v1681 = vcvt.s32.f32 %v1361
        %v1682 = vcvt.s32.f32 %v1362
        %v1683 = vcvt.s32.f32 %v1363
        %v1684 = vcvt.s32.f32 %v1364
        %v1685 = vcvt.s32.f32 %v1365
        %v1686 = vcvt.s32.f32 %v1366
        %v1687 = vcvt.s32.f32 %v1367
        %v1688 = vcvt.s32.f32 %v1368
        %v1689 = vcvt.s32.f32 %v1369
        %v1690 = vcvt.s32.f32 %v1370
        %v1691 = vcvt.s32.f32 %v1371
        %v1692 = vcvt.s32.f32 %v1372
        %v1693 = vcvt.s32.f32 %v1373
        %v1694 = vcvt.s32.f32 %v1374
        %v1695 = vcvt.s32.f32 %v1375
        %v1696 = vcvt.s32.f32 %v1376
        %v1697 = vcvt.s32.f32 %v1377
        %v1698 = vcvt.s32.f32 %v1378
        %v1699 = vcvt.s32.f32 %v1379
        %v1700 = vcvt.s32.f32 %v1380
        %v1701 = vcvt.s32.f32 %v1381
        %v1702 = vcvt.s32.f32 %v1382
        %v1703 = vcvt.s32.f32 %v1383
        %v1704 = vcvt.s32.f32 %v1384
        %v1705 = vcvt.s32.f32 %v1385
        %v1706 = vcvt.s32.f32 %v1386
        %v1707 = vcvt.s32.f32 %v1387
        %v1708 = vcvt.s32.f32 %v1388
        %v1709 = vcvt.s32.f32 %v1389
        %v1710 = vcvt.s32.f32 %v1390
        %v1711 = vcvt.s32.f32 %v1391
        %v1712 = vcvt.s32.f32 %v1392
        %v1713 = vcvt.s32.f32 %v1393
        %v1714 = vcvt.s32.f32 %v1394
        %v1715 = vcvt.s32.f32 %v1395
        %v1716 = vcvt.s32.f32 %v1396
        %v1717 = vcvt.s32.f32 %v1397
        %v1718 = vcvt.s32.f32 %v1398
        %v1719 = vcvt.s32.f32 %v1399
        %v1720 = vcvt.s32.f32 %v1400
        %v1721 = vcvt.s32.f32 %v1401
        %v1722 = vcvt.s32.f32 %v1402
        %v1723 = vcvt.s32.f32 %v1403
        %v1724 = vcvt.s32.f32 %v1404
        %v1725 = vcvt.s32.f32 %v1405
        %v1726 = vcvt.s32.f32 %v1406
        %v1727 = vcvt.s32.f32 %v1407
        %v1728 = vcvt.s32.f32 %v1408
        %v1729 = vcvt.s32.f32 %v1409
        %v1730 = vcvt.s32.f32 %v1410
        %v1731 = vcvt.s32.f32 %v1411
        %v1732 = vcvt.s32.f32 %v1412
        %v1733 = vcvt.s32.f32 %v1413
        %v1734 = vcvt.s32.f32 %v1414
        %v1735 = vcvt.s32.f32 %v1415
        %v1736 = vcvt.s32.f32 %v1416
        %v1737 = vcvt.s32.f32 %v1417
        %v1738 = vcvt.s32.f32 %v1418
        %v1739 = vcvt.s32.f32 %v1419
        %v1740 = vcvt.s32.f32 %v1420
        %v1741 = vcvt.s32.f32 %v1421
        %v1742 = vcvt.s32.f32 %v1422
        %v1743 = vcvt.s32.f32 %v1423
        %v1744 = vcvt.s32.f32 %v1424
        %v1745 = vcvt.s32.f32 %v1425
        %v1746 = vcvt.s32.f32 %v1426
        %v1747 = vcvt.s32.f32 %v1427
        %v1748 = vcvt.s32.f32 %v1428
        %v1749 = vcvt.s32.f32 %v1429
        %v1750 = vcvt.s32.f32 %v1430
        %v1751 = vcvt.s32.f32 %v1431
        %v1752 = vcvt.s32.f32 %v1432
        %v1753 = vcvt.s32.f32 %v1433
        %v1754 = vcvt.s32.f32 %v1434
        %v1755 = vcvt.s32.f32 %v1435
        %v1756 = vcvt.s32.f32 %v1436
        %v1757 = vcvt.s32.f32 %v1437
        %v1758 = vcvt.s32.f32 %v1438
        %v1759 = vcvt.s32.f32 %v1439
        %v1760 = vcvt.s32.f32 %v1440
        %v1761 = vcvt.s32.f32 %v1441
        %v1762 = vcvt.s32.f32 %v1442
        %v1763 = vcvt.s32.f32 %v1443
        %v1764 = vcvt.s32.f32 %v1444
        %v1765 = vcvt.s32.f32 %v1445
        %v1766 = vcvt.s32.f32 %v1446
        %v1767 = vcvt.s32.f32 %v1447
        %v1768 = vcvt.s32.f32 %v1448
        %v1769 = vcvt.s32.f32 %v1449
        %v1770 = vcvt.s32.f32 %v1450
        %v1771 = vcvt.s32.f32 %v1451
        %v1772 = vcvt.s32.f32 %v1452
        %v1773 = vcvt.s32.f32 %v1453
        %v1774 = vcvt.s32.f32 %v1454
        %v1775 = vcvt.s32.f32 %v1455
        %v1776 = vcvt.s32.f32 %v1456
        %v1777 = vcvt.s32.f32 %v1457
        %v1778 = vcvt.s32.f32 %v1458
        %v1779 = vcvt.s32.f32 %v1459
        %v1780 = vcvt.s32.f32 %v1460
        %v1781 = vcvt.s32.f32 %v1461
        %v1782 = vcvt.s32.f32 %v1462
        %v1783 = vcvt.s32.f32 %v1463
        %v1784 = vcvt.s32.f32 %v1464
        %v1785 = vcvt.s32.f32 %v1465
        %v1786 = vcvt.s32.f32 %v1466
        %v1787 = vcvt.s32.f32 %v1467
        %v1788 = vcvt.s32.f32 %v1468
        %v1789 = vcvt.s32.f32 %v1469
        %v1790 = vcvt.s32.f32 %v1470
        %v1791 = vcvt.s32.f32 %v1471
        %v1792 = vcvt.s32.f32 %v1472
        %v1793 = vcvt.s32.f32 %v1473
        %v1794 = vcvt.s32.f32 %v1474
        %v1795 = vcvt.s32.f32 %v1475
        %v1796 = vcvt.s32.f32 %v1476
        %v1797 = vcvt.s32.f32 %v1477
        %v1798 = vcvt.s32.f32 %v1478
        %v1799 = vcvt.s32.f32 %v1479
        %v1800 = vcvt.s32.f32 %v1480
        %v1801 = vcvt.s32.f32 %v1481
        %v1802 = vcvt.s32.f32 %v1482
        %v1803 = vcvt.s32.f32 %v1483
        %v1804 = vcvt.s32.f32 %v1484
        %v1805 = vcvt.s32.f32 %v1485
        %v1806 = vcvt.s32.f32 %v1486
        %v1807 = vcvt.s32.f32 %v1487
        %v1808 = vcvt.s32.f32 %v1488
        %v1809 = vcvt.s32.f32 %v1489
        %v1810 = vcvt.s32.f32 %v1490
        %v1811 = vcvt.s32.f32 %v1491
        %v1812 = vcvt.s32.f32 %v1492
        %v1813 = vcvt.s32.f32 %v1493
        %v1814 = vcvt.s32.f32 %v1494
        %v1815 = vcvt.s32.f32 %v1495
        %v1816 = vcvt.s32.f32 %v1496
        %v1817 = vcvt.s32.f32 %v1497
        %v1818 = vcvt.s32.f32 %v1498
        %v1819 = vcvt.s32.f32 %v1499
        %v1820 = vcvt.s32.f32 %v1500
        %v1821 = vcvt.s32.f32 %v1501
        %v1822 = vcvt.s32.f32 %v1502
        %v1823 = vcvt.s32.f32 %v1503
        %v1824 = vcvt.s32.f32 %v1504
        %v1825 = vcvt.s32.f32 %v1505
        %v1826 = vcvt.s32.f32 %v1506
        %v1827 = vcvt.s32.f32 %v1507
        %v1828 = vcvt.s32.f32 %v1508
        %v1829 = vcvt.s32.f32 %v1509
        %v1830 = vcvt.s32.f32 %v1510
        %v1831 = vcvt.s32.f32 %v1511
        %v1832 = vcvt.s32.f32 %v1512
        %v1833 = vcvt.s32.f32 %v1513
        %v1834 = vcvt.s32.f32 %v1514
        %v1835 = vcvt.s32.f32 %v1515
        %v1836 = vcvt.s32.f32 %v1516
        %v1837 = vcvt.s32.f32 %v1517
        %v1838 = vcvt.s32.f32 %v1518
        %v1839 = vcvt.s32.f32 %v1519
        %v1840 = vcvt.s32.f32 %v1520
        %v1841 = vcvt.s32.f32 %v1521
        %v1842 = vcvt.s32.f32 %v1522
        %v1843 = vcvt.s32.f32 %v1523
        %v1844 = vcvt.s32.f32 %v1524
        %v1845 = vcvt.s32.f32 %v1525
        %v1846 = vcvt.s32.f32 %v1526
        %v1847 = vcvt.s32.f32 %v1527
        %v1848 = vcvt.s32.f32 %v1528
        %v1849 = vcvt.s32.f32 %v1529
        %v1850 = vcvt.s32.f32 %v1530
        %v1851 = vcvt.s32.f32 %v1531
        %v1852 = vcvt.s32.f32 %v1532
        %v1853 = vcvt.s32.f32 %v1533
        %v1854 = vcvt.s32.f32 %v1534
        %v1855 = vcvt.s32.f32 %v1535
        %v1856 = vcvt.s32.f32 %v1536
        %v1857 = vcvt.s32.f32 %v1537
        %v1858 = vcvt.s32.f32 %v1538
        %v1859 = vcvt.s32.f32 %v1539
        %v1860 = vcvt.s32.f32 %v1540
        %v1861 = vcvt.s32.f32 %v1541
        %v1862 = vcvt.s32.f32 %v1542
        %v1863 = vcvt.s32.f32 %v1543
        %v1864 = vcvt.s32.f32 %v1544
        %v1865 = vcvt.s32.f32 %v1545
        %v1866 = vcvt.s32.f32 %v1546
        %v1867 = vcvt.s32.f32 %v1547
        %v1868 = vcvt.s32.f32 %v1548
        %v1869 = vcvt.s32.f32 %v1549
        %v1870 = vcvt.s32.f32 %v1550
        %v1871 = vcvt.s32.f32 %v1551
        %v1872 = vcvt.s32.f32 %v1552
        %v1873 = vcvt.s32.f32 %v1553
        %v1874 = vcvt.s32.f32 %v1554
        %v1875 = vcvt.s32.f32 %v1555
        %v1876 = vcvt.s32.f32 %v1556
        %v1877 = vcvt.s32.f32 %v1557
        %v1878 = vcvt.s32.f32 %v1558
        %v1879 = vcvt.s32.f32 %v1559
        %v1880 = vcvt.s32.f32 %v1560
        %v1881 = vcvt.s32.f32 %v1561
        %v1882 = vcvt.s32.f32 %v1562
        %v1883 = vcvt.s32.f32 %v1563
        %v1884 = vcvt.s32.f32 %v1564
        %v1885 = vcvt.s32.f32 %v1565
        %v1886 = vcvt.s32.f32 %v1566
        %v1887 = vcvt.s32.f32 %v1567
        %v1888 = vcvt.s32.f32 %v1568
        %v1889 = vcvt.s32.f32 %v1569
        %v1890 = vcvt.s32.f32 %v1570
        %v1891 = vcvt.s32.f32 %v1571
        %v1892 = vld [vmem:[#allocation8] sm:$0xff]
        %v1893 = vld [vmem:[#allocation8 + $0x8] sm:$0xff]
        %v1894 = vld [vmem:[#allocation8 + $0x10] sm:$0xff]
        %v1895 = vld [vmem:[#allocation8 + $0x18] sm:$0xff]
        %v1896 = vld [vmem:[#allocation8 + $0x20] sm:$0xff]
        %v1897 = vld [vmem:[#allocation8 + $0x28] sm:$0xff]
        %v1898 = vld [vmem:[#allocation8 + $0x30] sm:$0xff]
        %v1899 = vld [vmem:[#allocation8 + $0x38] sm:$0xff]
        %v1900 = vld [vmem:[#allocation8 + $0x40] sm:$0xff]
        %v1901 = vld [vmem:[#allocation8 + $0x48] sm:$0xff]
        %v1902 = vld [vmem:[#allocation8 + $0x50] sm:$0xff]
        %v1903 = vld [vmem:[#allocation8 + $0x58] sm:$0xff]
        %v1904 = vld [vmem:[#allocation8 + $0x60] sm:$0xff]
        %v1905 = vld [vmem:[#allocation8 + $0x68] sm:$0xff]
        %v1906 = vld [vmem:[#allocation8 + $0x70] sm:$0xff]
        %v1907 = vld [vmem:[#allocation8 + $0x78] sm:$0xff]
        %v1908 = vld [vmem:[#allocation8 + $0x80] sm:$0xff]
        %v1909 = vld [vmem:[#allocation8 + $0x88] sm:$0xff]
        %v1910 = vld [vmem:[#allocation8 + $0x90] sm:$0xff]
        %v1911 = vld [vmem:[#allocation8 + $0x98] sm:$0xff]
        %v1912 = vld [vmem:[#allocation8 + $0xa0] sm:$0xff]
        %v1913 = vld [vmem:[#allocation8 + $0xa8] sm:$0xff]
        %v1914 = vld [vmem:[#allocation8 + $0xb0] sm:$0xff]
        %v1915 = vld [vmem:[#allocation8 + $0xb8] sm:$0xff]
        %v1916 = vld [vmem:[#allocation8 + $0xc0] sm:$0xff]
        %v1917 = vld [vmem:[#allocation8 + $0xc8] sm:$0xff]
        %v1918 = vld [vmem:[#allocation8 + $0xd0] sm:$0xff]
        %v1919 = vld [vmem:[#allocation8 + $0xd8] sm:$0xff]
        %v1920 = vld [vmem:[#allocation8 + $0xe0] sm:$0xff]
        %v1921 = vld [vmem:[#allocation8 + $0xe8] sm:$0xff]
        %v1922 = vld [vmem:[#allocation8 + $0xf0] sm:$0xff]
        %v1923 = vld [vmem:[#allocation8 + $0xf8] sm:$0xff]
        %v1924 = vld [vmem:[#allocation8 + $0x100] sm:$0xff]
        %v1925 = vld [vmem:[#allocation8 + $0x108] sm:$0xff]
        %v1926 = vld [vmem:[#allocation8 + $0x110] sm:$0xff]
        %v1927 = vld [vmem:[#allocation8 + $0x118] sm:$0xff]
        %v1928 = vld [vmem:[#allocation8 + $0x120] sm:$0xff]
        %v1929 = vld [vmem:[#allocation8 + $0x128] sm:$0xff]
        %v1930 = vld [vmem:[#allocation8 + $0x130] sm:$0xff]
        %v1931 = vld [vmem:[#allocation8 + $0x138] sm:$0xff]
        %v1932 = vld [vmem:[#allocation8 + $0x140] sm:$0xff]
        %v1933 = vld [vmem:[#allocation8 + $0x148] sm:$0xff]
        %v1934 = vld [vmem:[#allocation8 + $0x150] sm:$0xff]
        %v1935 = vld [vmem:[#allocation8 + $0x158] sm:$0xff]
        %v1936 = vld [vmem:[#allocation8 + $0x160] sm:$0xff]
        %v1937 = vld [vmem:[#allocation8 + $0x168] sm:$0xff]
        %v1938 = vld [vmem:[#allocation8 + $0x170] sm:$0xff]
        %v1939 = vld [vmem:[#allocation8 + $0x178] sm:$0xff]
        %v1940 = vld [vmem:[#allocation8 + $0x180] sm:$0xff]
        %v1941 = vld [vmem:[#allocation8 + $0x188] sm:$0xff]
        %v1942 = vld [vmem:[#allocation8 + $0x190] sm:$0xff]
        %v1943 = vld [vmem:[#allocation8 + $0x198] sm:$0xff]
        %v1944 = vld [vmem:[#allocation8 + $0x1a0] sm:$0xff]
        %v1945 = vld [vmem:[#allocation8 + $0x1a8] sm:$0xff]
        %v1946 = vld [vmem:[#allocation8 + $0x1b0] sm:$0xff]
        %v1947 = vld [vmem:[#allocation8 + $0x1b8] sm:$0xff]
        %v1948 = vld [vmem:[#allocation8 + $0x1c0] sm:$0xff]
        %v1949 = vld [vmem:[#allocation8 + $0x1c8] sm:$0xff]
        %v1950 = vld [vmem:[#allocation8 + $0x1d0] sm:$0xff]
        %v1951 = vld [vmem:[#allocation8 + $0x1d8] sm:$0xff]
        %v1952 = vld [vmem:[#allocation8 + $0x1e0] sm:$0xff]
        %v1953 = vld [vmem:[#allocation8 + $0x1e8] sm:$0xff]
        %v1954 = vld [vmem:[#allocation8 + $0x1f0] sm:$0xff]
        %v1955 = vld [vmem:[#allocation8 + $0x1f8] sm:$0xff]
        %v1956 = vld [vmem:[#allocation8 + $0x200] sm:$0x1]
        %vm1957 = vcmask 7168
        %v1959 = vsel %vm1957, %v1576, 0
        %v1962 = vsel %vm1957, %v1581, 0
        %v1965 = vsel %vm1957, %v1586, 0
        %v1968 = vsel %vm1957, %v1591, 0
        %v1971 = vsel %vm1957, %v1596, 0
        %v1974 = vsel %vm1957, %v1601, 0
        %v1977 = vsel %vm1957, %v1606, 0
        %v1980 = vsel %vm1957, %v1611, 0
        %v1983 = vsel %vm1957, %v1616, 0
        %v1986 = vsel %vm1957, %v1621, 0
        %v1989 = vsel %vm1957, %v1626, 0
        %v1992 = vsel %vm1957, %v1631, 0
        %v1995 = vsel %vm1957, %v1636, 0
        %v1998 = vsel %vm1957, %v1641, 0
        %v2001 = vsel %vm1957, %v1646, 0
        %v2004 = vsel %vm1957, %v1651, 0
        %v2007 = vsel %vm1957, %v1656, 0
        %v2010 = vsel %vm1957, %v1661, 0
        %v2013 = vsel %vm1957, %v1666, 0
        %v2016 = vsel %vm1957, %v1671, 0
        %v2019 = vsel %vm1957, %v1676, 0
        %v2022 = vsel %vm1957, %v1681, 0
        %v2025 = vsel %vm1957, %v1686, 0
        %v2028 = vsel %vm1957, %v1691, 0
        %v2031 = vsel %vm1957, %v1696, 0
        %v2034 = vsel %vm1957, %v1701, 0
        %v2037 = vsel %vm1957, %v1706, 0
        %v2040 = vsel %vm1957, %v1711, 0
        %v2043 = vsel %vm1957, %v1716, 0
        %v2046 = vsel %vm1957, %v1721, 0
        %v2049 = vsel %vm1957, %v1726, 0
        %v2052 = vsel %vm1957, %v1731, 0
        %v2055 = vsel %vm1957, %v1736, 0
        %v2058 = vsel %vm1957, %v1741, 0
        %v2061 = vsel %vm1957, %v1746, 0
        %v2064 = vsel %vm1957, %v1751, 0
        %v2067 = vsel %vm1957, %v1756, 0
        %v2070 = vsel %vm1957, %v1761, 0
        %v2073 = vsel %vm1957, %v1766, 0
        %v2076 = vsel %vm1957, %v1771, 0
        %v2079 = vsel %vm1957, %v1776, 0
        %v2082 = vsel %vm1957, %v1781, 0
        %v2085 = vsel %vm1957, %v1786, 0
        %v2088 = vsel %vm1957, %v1791, 0
        %v2091 = vsel %vm1957, %v1796, 0
        %v2094 = vsel %vm1957, %v1801, 0
        %v2097 = vsel %vm1957, %v1806, 0
        %v2100 = vsel %vm1957, %v1811, 0
        %v2103 = vsel %vm1957, %v1816, 0
        %v2106 = vsel %vm1957, %v1821, 0
        %v2109 = vsel %vm1957, %v1826, 0
        %v2112 = vsel %vm1957, %v1831, 0
        %v2115 = vsel %vm1957, %v1836, 0
        %v2118 = vsel %vm1957, %v1841, 0
        %v2121 = vsel %vm1957, %v1846, 0
        %v2124 = vsel %vm1957, %v1851, 0
        %v2127 = vsel %vm1957, %v1856, 0
        %v2130 = vsel %vm1957, %v1861, 0
        %v2133 = vsel %vm1957, %v1866, 0
        %v2136 = vsel %vm1957, %v1871, 0
        %v2139 = vsel %vm1957, %v1876, 0
        %v2142 = vsel %vm1957, %v1881, 0
        %v2145 = vsel %vm1957, %v1886, 0
        %v2148 = vsel %vm1957, %v1891, 0
        %vm2150 = vcmask 1040384
        %v2152 = vsel %vm2150, %v1956, 0
        %2154 = vmatpush.msra.mxu0 %v1907
        %2155 = vmatpush.msra.mxu0 %v1906
        %2156 = vmatpush.msra.mxu0 %v1905
        %2157 = vmatpush.msra.mxu0 %v1904
        %2158 = vmatpush.msra.mxu0 %v1903
        %2159 = vmatpush.msra.mxu0 %v1902
        %2160 = vmatpush.msra.mxu0 %v1901
        %2161 = vmatpush.msra.mxu0 %v1900
        %2162 = vmatpush.msra.mxu0 %v1899
        %2163 = vmatpush.msra.mxu0 %v1898
        %2164 = vmatpush.msra.mxu0 %v1897
        %2165 = vmatpush.msra.mxu0 %v1896
        %2166 = vmatpush.msra.mxu0 %v1895
        %2167 = vmatpush.msra.mxu0 %v1894
        %2168 = vmatpush.msra.mxu0 %v1893
        %2169 = vmatpush.msra.mxu0 %v1892
        %2170 = vmatmul.f32.gmra.mxu0 %v1572
        %v2171 = vpop.f32.mrf.mxu0
        %v2172 = vadd.f32 0.0, %v2171
        %2173 = vmatmul.f32.gmra.mxu0 %v1577
        %v2174 = vpop.f32.mrf.mxu0
        %v2175 = vadd.f32 0.0, %v2174
        %2176 = vmatmul.f32.gmra.mxu0 %v1582
        %v2177 = vpop.f32.mrf.mxu0
        %v2178 = vadd.f32 0.0, %v2177
        %2179 = vmatmul.f32.gmra.mxu0 %v1587
        %v2180 = vpop.f32.mrf.mxu0
        %v2181 = vadd.f32 0.0, %v2180
        %2182 = vmatmul.f32.gmra.mxu0 %v1592
        %v2183 = vpop.f32.mrf.mxu0
        %v2184 = vadd.f32 0.0, %v2183
        %2185 = vmatmul.f32.gmra.mxu0 %v1597
        %v2186 = vpop.f32.mrf.mxu0
        %v2187 = vadd.f32 0.0, %v2186
        %2188 = vmatmul.f32.gmra.mxu0 %v1602
        %v2189 = vpop.f32.mrf.mxu0
        %v2190 = vadd.f32 0.0, %v2189
        %2191 = vmatmul.f32.gmra.mxu0 %v1607
        %v2192 = vpop.f32.mrf.mxu0
        %v2193 = vadd.f32 0.0, %v2192
        %2194 = vmatmul.f32.gmra.mxu0 %v1612
        %v2195 = vpop.f32.mrf.mxu0
        %v2196 = vadd.f32 0.0, %v2195
        %2197 = vmatmul.f32.gmra.mxu0 %v1617
        %v2198 = vpop.f32.mrf.mxu0
        %v2199 = vadd.f32 0.0, %v2198
        %2200 = vmatmul.f32.gmra.mxu0 %v1622
        %v2201 = vpop.f32.mrf.mxu0
        %v2202 = vadd.f32 0.0, %v2201
        %2203 = vmatmul.f32.gmra.mxu0 %v1627
        %v2204 = vpop.f32.mrf.mxu0
        %v2205 = vadd.f32 0.0, %v2204
        %2206 = vmatmul.f32.gmra.mxu0 %v1632
        %v2207 = vpop.f32.mrf.mxu0
        %v2208 = vadd.f32 0.0, %v2207
        %2209 = vmatmul.f32.gmra.mxu0 %v1637
        %v2210 = vpop.f32.mrf.mxu0
        %v2211 = vadd.f32 0.0, %v2210
        %2212 = vmatmul.f32.gmra.mxu0 %v1642
        %v2213 = vpop.f32.mrf.mxu0
        %v2214 = vadd.f32 0.0, %v2213
        %2215 = vmatmul.f32.gmra.mxu0 %v1647
        %v2216 = vpop.f32.mrf.mxu0
        %v2217 = vadd.f32 0.0, %v2216
        %2218 = vmatmul.f32.gmra.mxu0 %v1652
        %v2219 = vpop.f32.mrf.mxu0
        %v2220 = vadd.f32 0.0, %v2219
        %2221 = vmatmul.f32.gmra.mxu0 %v1657
        %v2222 = vpop.f32.mrf.mxu0
        %v2223 = vadd.f32 0.0, %v2222
        %2224 = vmatmul.f32.gmra.mxu0 %v1662
        %v2225 = vpop.f32.mrf.mxu0
        %v2226 = vadd.f32 0.0, %v2225
        %2227 = vmatmul.f32.gmra.mxu0 %v1667
        %v2228 = vpop.f32.mrf.mxu0
        %v2229 = vadd.f32 0.0, %v2228
        %2230 = vmatmul.f32.gmra.mxu0 %v1672
        %v2231 = vpop.f32.mrf.mxu0
        %v2232 = vadd.f32 0.0, %v2231
        %2233 = vmatmul.f32.gmra.mxu0 %v1677
        %v2234 = vpop.f32.mrf.mxu0
        %v2235 = vadd.f32 0.0, %v2234
        %2236 = vmatmul.f32.gmra.mxu0 %v1682
        %v2237 = vpop.f32.mrf.mxu0
        %v2238 = vadd.f32 0.0, %v2237
        %2239 = vmatmul.f32.gmra.mxu0 %v1687
        %v2240 = vpop.f32.mrf.mxu0
        %v2241 = vadd.f32 0.0, %v2240
        %2242 = vmatmul.f32.gmra.mxu0 %v1692
        %v2243 = vpop.f32.mrf.mxu0
        %v2244 = vadd.f32 0.0, %v2243
        %2245 = vmatmul.f32.gmra.mxu0 %v1697
        %v2246 = vpop.f32.mrf.mxu0
        %v2247 = vadd.f32 0.0, %v2246
        %2248 = vmatmul.f32.gmra.mxu0 %v1702
        %v2249 = vpop.f32.mrf.mxu0
        %v2250 = vadd.f32 0.0, %v2249
        %2251 = vmatmul.f32.gmra.mxu0 %v1707
        %v2252 = vpop.f32.mrf.mxu0
        %v2253 = vadd.f32 0.0, %v2252
        %2254 = vmatmul.f32.gmra.mxu0 %v1712
        %v2255 = vpop.f32.mrf.mxu0
        %v2256 = vadd.f32 0.0, %v2255
        %2257 = vmatmul.f32.gmra.mxu0 %v1717
        %v2258 = vpop.f32.mrf.mxu0
        %v2259 = vadd.f32 0.0, %v2258
        %2260 = vmatmul.f32.gmra.mxu0 %v1722
        %v2261 = vpop.f32.mrf.mxu0
        %v2262 = vadd.f32 0.0, %v2261
        %2263 = vmatmul.f32.gmra.mxu0 %v1727
        %v2264 = vpop.f32.mrf.mxu0
        %v2265 = vadd.f32 0.0, %v2264
        %2266 = vmatmul.f32.gmra.mxu0 %v1732
        %v2267 = vpop.f32.mrf.mxu0
        %v2268 = vadd.f32 0.0, %v2267
        %2269 = vmatmul.f32.gmra.mxu0 %v1737
        %v2270 = vpop.f32.mrf.mxu0
        %v2271 = vadd.f32 0.0, %v2270
        %2272 = vmatmul.f32.gmra.mxu0 %v1742
        %v2273 = vpop.f32.mrf.mxu0
        %v2274 = vadd.f32 0.0, %v2273
        %2275 = vmatmul.f32.gmra.mxu0 %v1747
        %v2276 = vpop.f32.mrf.mxu0
        %v2277 = vadd.f32 0.0, %v2276
        %2278 = vmatmul.f32.gmra.mxu0 %v1752
        %v2279 = vpop.f32.mrf.mxu0
        %v2280 = vadd.f32 0.0, %v2279
        %2281 = vmatmul.f32.gmra.mxu0 %v1757
        %v2282 = vpop.f32.mrf.mxu0
        %v2283 = vadd.f32 0.0, %v2282
        %2284 = vmatmul.f32.gmra.mxu0 %v1762
        %v2285 = vpop.f32.mrf.mxu0
        %v2286 = vadd.f32 0.0, %v2285
        %2287 = vmatmul.f32.gmra.mxu0 %v1767
        %v2288 = vpop.f32.mrf.mxu0
        %v2289 = vadd.f32 0.0, %v2288
        %2290 = vmatmul.f32.gmra.mxu0 %v1772
        %v2291 = vpop.f32.mrf.mxu0
        %v2292 = vadd.f32 0.0, %v2291
        %2293 = vmatmul.f32.gmra.mxu0 %v1777
        %v2294 = vpop.f32.mrf.mxu0
        %v2295 = vadd.f32 0.0, %v2294
        %2296 = vmatmul.f32.gmra.mxu0 %v1782
        %v2297 = vpop.f32.mrf.mxu0
        %v2298 = vadd.f32 0.0, %v2297
        %2299 = vmatmul.f32.gmra.mxu0 %v1787
        %v2300 = vpop.f32.mrf.mxu0
        %v2301 = vadd.f32 0.0, %v2300
        %2302 = vmatmul.f32.gmra.mxu0 %v1792
        %v2303 = vpop.f32.mrf.mxu0
        %v2304 = vadd.f32 0.0, %v2303
        %2305 = vmatmul.f32.gmra.mxu0 %v1797
        %v2306 = vpop.f32.mrf.mxu0
        %v2307 = vadd.f32 0.0, %v2306
        %2308 = vmatmul.f32.gmra.mxu0 %v1802
        %v2309 = vpop.f32.mrf.mxu0
        %v2310 = vadd.f32 0.0, %v2309
        %2311 = vmatmul.f32.gmra.mxu0 %v1807
        %v2312 = vpop.f32.mrf.mxu0
        %v2313 = vadd.f32 0.0, %v2312
        %2314 = vmatmul.f32.gmra.mxu0 %v1812
        %v2315 = vpop.f32.mrf.mxu0
        %v2316 = vadd.f32 0.0, %v2315
        %2317 = vmatmul.f32.gmra.mxu0 %v1817
        %v2318 = vpop.f32.mrf.mxu0
        %v2319 = vadd.f32 0.0, %v2318
        %2320 = vmatmul.f32.gmra.mxu0 %v1822
        %v2321 = vpop.f32.mrf.mxu0
        %v2322 = vadd.f32 0.0, %v2321
        %2323 = vmatmul.f32.gmra.mxu0 %v1827
        %v2324 = vpop.f32.mrf.mxu0
        %v2325 = vadd.f32 0.0, %v2324
        %2326 = vmatmul.f32.gmra.mxu0 %v1832
        %v2327 = vpop.f32.mrf.mxu0
        %v2328 = vadd.f32 0.0, %v2327
        %2329 = vmatmul.f32.gmra.mxu0 %v1837
        %v2330 = vpop.f32.mrf.mxu0
        %v2331 = vadd.f32 0.0, %v2330
        %2332 = vmatmul.f32.gmra.mxu0 %v1842
        %v2333 = vpop.f32.mrf.mxu0
        %v2334 = vadd.f32 0.0, %v2333
        %2335 = vmatmul.f32.gmra.mxu0 %v1847
        %v2336 = vpop.f32.mrf.mxu0
        %v2337 = vadd.f32 0.0, %v2336
        %2338 = vmatmul.f32.gmra.mxu0 %v1852
        %v2339 = vpop.f32.mrf.mxu0
        %v2340 = vadd.f32 0.0, %v2339
        %2341 = vmatmul.f32.gmra.mxu0 %v1857
        %v2342 = vpop.f32.mrf.mxu0
        %v2343 = vadd.f32 0.0, %v2342
        %2344 = vmatmul.f32.gmra.mxu0 %v1862
        %v2345 = vpop.f32.mrf.mxu0
        %v2346 = vadd.f32 0.0, %v2345
        %2347 = vmatmul.f32.gmra.mxu0 %v1867
        %v2348 = vpop.f32.mrf.mxu0
        %v2349 = vadd.f32 0.0, %v2348
        %2350 = vmatmul.f32.gmra.mxu0 %v1872
        %v2351 = vpop.f32.mrf.mxu0
        %v2352 = vadd.f32 0.0, %v2351
        %2353 = vmatmul.f32.gmra.mxu0 %v1877
        %v2354 = vpop.f32.mrf.mxu0
        %v2355 = vadd.f32 0.0, %v2354
        %2356 = vmatmul.f32.gmra.mxu0 %v1882
        %v2357 = vpop.f32.mrf.mxu0
        %v2358 = vadd.f32 0.0, %v2357
        %2359 = vmatmul.f32.gmra.mxu0 %v1887
        %v2360 = vpop.f32.mrf.mxu0
        %v2361 = vadd.f32 0.0, %v2360
        %2362 = vdwg.mxu0
        %2363 = vmatpush.msra.mxu0 %v1923
        %2364 = vmatpush.msra.mxu0 %v1922
        %2365 = vmatpush.msra.mxu0 %v1921
        %2366 = vmatpush.msra.mxu0 %v1920
        %2367 = vmatpush.msra.mxu0 %v1919
        %2368 = vmatpush.msra.mxu0 %v1918
        %2369 = vmatpush.msra.mxu0 %v1917
        %2370 = vmatpush.msra.mxu0 %v1916
        %2371 = vmatpush.msra.mxu0 %v1915
        %2372 = vmatpush.msra.mxu0 %v1914
        %2373 = vmatpush.msra.mxu0 %v1913
        %2374 = vmatpush.msra.mxu0 %v1912
        %2375 = vmatpush.msra.mxu0 %v1911
        %2376 = vmatpush.msra.mxu0 %v1910
        %2377 = vmatpush.msra.mxu0 %v1909
        %2378 = vmatpush.msra.mxu0 %v1908
        %2379 = vmatmul.f32.gmra.mxu0 %v1573
        %v2380 = vpop.f32.mrf.mxu0
        %v2381 = vadd.f32 %v2172, %v2380
        %2382 = vmatmul.f32.gmra.mxu0 %v1578
        %v2383 = vpop.f32.mrf.mxu0
        %v2384 = vadd.f32 %v2175, %v2383
        %2385 = vmatmul.f32.gmra.mxu0 %v1583
        %v2386 = vpop.f32.mrf.mxu0
        %v2387 = vadd.f32 %v2178, %v2386
        %2388 = vmatmul.f32.gmra.mxu0 %v1588
        %v2389 = vpop.f32.mrf.mxu0
        %v2390 = vadd.f32 %v2181, %v2389
        %2391 = vmatmul.f32.gmra.mxu0 %v1593
        %v2392 = vpop.f32.mrf.mxu0
        %v2393 = vadd.f32 %v2184, %v2392
        %2394 = vmatmul.f32.gmra.mxu0 %v1598
        %v2395 = vpop.f32.mrf.mxu0
        %v2396 = vadd.f32 %v2187, %v2395
        %2397 = vmatmul.f32.gmra.mxu0 %v1603
        %v2398 = vpop.f32.mrf.mxu0
        %v2399 = vadd.f32 %v2190, %v2398
        %2400 = vmatmul.f32.gmra.mxu0 %v1608
        %v2401 = vpop.f32.mrf.mxu0
        %v2402 = vadd.f32 %v2193, %v2401
        %2403 = vmatmul.f32.gmra.mxu0 %v1613
        %v2404 = vpop.f32.mrf.mxu0
        %v2405 = vadd.f32 %v2196, %v2404
        %2406 = vmatmul.f32.gmra.mxu0 %v1618
        %v2407 = vpop.f32.mrf.mxu0
        %v2408 = vadd.f32 %v2199, %v2407
        %2409 = vmatmul.f32.gmra.mxu0 %v1623
        %v2410 = vpop.f32.mrf.mxu0
        %v2411 = vadd.f32 %v2202, %v2410
        %2412 = vmatmul.f32.gmra.mxu0 %v1628
        %v2413 = vpop.f32.mrf.mxu0
        %v2414 = vadd.f32 %v2205, %v2413
        %2415 = vmatmul.f32.gmra.mxu0 %v1633
        %v2416 = vpop.f32.mrf.mxu0
        %v2417 = vadd.f32 %v2208, %v2416
        %2418 = vmatmul.f32.gmra.mxu0 %v1638
        %v2419 = vpop.f32.mrf.mxu0
        %v2420 = vadd.f32 %v2211, %v2419
        %2421 = vmatmul.f32.gmra.mxu0 %v1643
        %v2422 = vpop.f32.mrf.mxu0
        %v2423 = vadd.f32 %v2214, %v2422
        %2424 = vmatmul.f32.gmra.mxu0 %v1648
        %v2425 = vpop.f32.mrf.mxu0
        %v2426 = vadd.f32 %v2217, %v2425
        %2427 = vmatmul.f32.gmra.mxu0 %v1653
        %v2428 = vpop.f32.mrf.mxu0
        %v2429 = vadd.f32 %v2220, %v2428
        %2430 = vmatmul.f32.gmra.mxu0 %v1658
        %v2431 = vpop.f32.mrf.mxu0
        %v2432 = vadd.f32 %v2223, %v2431
        %2433 = vmatmul.f32.gmra.mxu0 %v1663
        %v2434 = vpop.f32.mrf.mxu0
        %v2435 = vadd.f32 %v2226, %v2434
        %2436 = vmatmul.f32.gmra.mxu0 %v1668
        %v2437 = vpop.f32.mrf.mxu0
        %v2438 = vadd.f32 %v2229, %v2437
        %2439 = vmatmul.f32.gmra.mxu0 %v1673
        %v2440 = vpop.f32.mrf.mxu0
        %v2441 = vadd.f32 %v2232, %v2440
        %2442 = vmatmul.f32.gmra.mxu0 %v1678
        %v2443 = vpop.f32.mrf.mxu0
        %v2444 = vadd.f32 %v2235, %v2443
        %2445 = vmatmul.f32.gmra.mxu0 %v1683
        %v2446 = vpop.f32.mrf.mxu0
        %v2447 = vadd.f32 %v2238, %v2446
        %2448 = vmatmul.f32.gmra.mxu0 %v1688
        %v2449 = vpop.f32.mrf.mxu0
        %v2450 = vadd.f32 %v2241, %v2449
        %2451 = vmatmul.f32.gmra.mxu0 %v1693
        %v2452 = vpop.f32.mrf.mxu0
        %v2453 = vadd.f32 %v2244, %v2452
        %2454 = vmatmul.f32.gmra.mxu0 %v1698
        %v2455 = vpop.f32.mrf.mxu0
        %v2456 = vadd.f32 %v2247, %v2455
        %2457 = vmatmul.f32.gmra.mxu0 %v1703
        %v2458 = vpop.f32.mrf.mxu0
        %v2459 = vadd.f32 %v2250, %v2458
        %2460 = vmatmul.f32.gmra.mxu0 %v1708
        %v2461 = vpop.f32.mrf.mxu0
        %v2462 = vadd.f32 %v2253, %v2461
        %2463 = vmatmul.f32.gmra.mxu0 %v1713
        %v2464 = vpop.f32.mrf.mxu0
        %v2465 = vadd.f32 %v2256, %v2464
        %2466 = vmatmul.f32.gmra.mxu0 %v1718
        %v2467 = vpop.f32.mrf.mxu0
        %v2468 = vadd.f32 %v2259, %v2467
        %2469 = vmatmul.f32.gmra.mxu0 %v1723
        %v2470 = vpop.f32.mrf.mxu0
        %v2471 = vadd.f32 %v2262, %v2470
        %2472 = vmatmul.f32.gmra.mxu0 %v1728
        %v2473 = vpop.f32.mrf.mxu0
        %v2474 = vadd.f32 %v2265, %v2473
        %2475 = vmatmul.f32.gmra.mxu0 %v1733
        %v2476 = vpop.f32.mrf.mxu0
        %v2477 = vadd.f32 %v2268, %v2476
        %2478 = vmatmul.f32.gmra.mxu0 %v1738
        %v2479 = vpop.f32.mrf.mxu0
        %v2480 = vadd.f32 %v2271, %v2479
        %2481 = vmatmul.f32.gmra.mxu0 %v1743
        %v2482 = vpop.f32.mrf.mxu0
        %v2483 = vadd.f32 %v2274, %v2482
        %2484 = vmatmul.f32.gmra.mxu0 %v1748
        %v2485 = vpop.f32.mrf.mxu0
        %v2486 = vadd.f32 %v2277, %v2485
        %2487 = vmatmul.f32.gmra.mxu0 %v1753
        %v2488 = vpop.f32.mrf.mxu0
        %v2489 = vadd.f32 %v2280, %v2488
        %2490 = vmatmul.f32.gmra.mxu0 %v1758
        %v2491 = vpop.f32.mrf.mxu0
        %v2492 = vadd.f32 %v2283, %v2491
        %2493 = vmatmul.f32.gmra.mxu0 %v1763
        %v2494 = vpop.f32.mrf.mxu0
        %v2495 = vadd.f32 %v2286, %v2494
        %2496 = vmatmul.f32.gmra.mxu0 %v1768
        %v2497 = vpop.f32.mrf.mxu0
        %v2498 = vadd.f32 %v2289, %v2497
        %2499 = vmatmul.f32.gmra.mxu0 %v1773
        %v2500 = vpop.f32.mrf.mxu0
        %v2501 = vadd.f32 %v2292, %v2500
        %2502 = vmatmul.f32.gmra.mxu0 %v1778
        %v2503 = vpop.f32.mrf.mxu0
        %v2504 = vadd.f32 %v2295, %v2503
        %2505 = vmatmul.f32.gmra.mxu0 %v1783
        %v2506 = vpop.f32.mrf.mxu0
        %v2507 = vadd.f32 %v2298, %v2506
        %2508 = vmatmul.f32.gmra.mxu0 %v1788
        %v2509 = vpop.f32.mrf.mxu0
        %v2510 = vadd.f32 %v2301, %v2509
        %2511 = vmatmul.f32.gmra.mxu0 %v1793
        %v2512 = vpop.f32.mrf.mxu0
        %v2513 = vadd.f32 %v2304, %v2512
        %2514 = vmatmul.f32.gmra.mxu0 %v1798
        %v2515 = vpop.f32.mrf.mxu0
        %v2516 = vadd.f32 %v2307, %v2515
        %2517 = vmatmul.f32.gmra.mxu0 %v1803
        %v2518 = vpop.f32.mrf.mxu0
        %v2519 = vadd.f32 %v2310, %v2518
        %2520 = vmatmul.f32.gmra.mxu0 %v1808
        %v2521 = vpop.f32.mrf.mxu0
        %v2522 = vadd.f32 %v2313, %v2521
        %2523 = vmatmul.f32.gmra.mxu0 %v1813
        %v2524 = vpop.f32.mrf.mxu0
        %v2525 = vadd.f32 %v2316, %v2524
        %2526 = vmatmul.f32.gmra.mxu0 %v1818
        %v2527 = vpop.f32.mrf.mxu0
        %v2528 = vadd.f32 %v2319, %v2527
        %2529 = vmatmul.f32.gmra.mxu0 %v1823
        %v2530 = vpop.f32.mrf.mxu0
        %v2531 = vadd.f32 %v2322, %v2530
        %2532 = vmatmul.f32.gmra.mxu0 %v1828
        %v2533 = vpop.f32.mrf.mxu0
        %v2534 = vadd.f32 %v2325, %v2533
        %2535 = vmatmul.f32.gmra.mxu0 %v1833
        %v2536 = vpop.f32.mrf.mxu0
        %v2537 = vadd.f32 %v2328, %v2536
        %2538 = vmatmul.f32.gmra.mxu0 %v1838
        %v2539 = vpop.f32.mrf.mxu0
        %v2540 = vadd.f32 %v2331, %v2539
        %2541 = vmatmul.f32.gmra.mxu0 %v1843
        %v2542 = vpop.f32.mrf.mxu0
        %v2543 = vadd.f32 %v2334, %v2542
        %2544 = vmatmul.f32.gmra.mxu0 %v1848
        %v2545 = vpop.f32.mrf.mxu0
        %v2546 = vadd.f32 %v2337, %v2545
        %2547 = vmatmul.f32.gmra.mxu0 %v1853
        %v2548 = vpop.f32.mrf.mxu0
        %v2549 = vadd.f32 %v2340, %v2548
        %2550 = vmatmul.f32.gmra.mxu0 %v1858
        %v2551 = vpop.f32.mrf.mxu0
        %v2552 = vadd.f32 %v2343, %v2551
        %2553 = vmatmul.f32.gmra.mxu0 %v1863
        %v2554 = vpop.f32.mrf.mxu0
        %v2555 = vadd.f32 %v2346, %v2554
        %2556 = vmatmul.f32.gmra.mxu0 %v1868
        %v2557 = vpop.f32.mrf.mxu0
        %v2558 = vadd.f32 %v2349, %v2557
        %2559 = vmatmul.f32.gmra.mxu0 %v1873
        %v2560 = vpop.f32.mrf.mxu0
        %v2561 = vadd.f32 %v2352, %v2560
        %2562 = vmatmul.f32.gmra.mxu0 %v1878
        %v2563 = vpop.f32.mrf.mxu0
        %v2564 = vadd.f32 %v2355, %v2563
        %2565 = vmatmul.f32.gmra.mxu0 %v1883
        %v2566 = vpop.f32.mrf.mxu0
        %v2567 = vadd.f32 %v2358, %v2566
        %2568 = vmatmul.f32.gmra.mxu0 %v1888
        %v2569 = vpop.f32.mrf.mxu0
        %v2570 = vadd.f32 %v2361, %v2569
        %2571 = vdwg.mxu0
        %2572 = vmatpush.msra.mxu0 %v1939
        %2573 = vmatpush.msra.mxu0 %v1938
        %2574 = vmatpush.msra.mxu0 %v1937
        %2575 = vmatpush.msra.mxu0 %v1936
        %2576 = vmatpush.msra.mxu0 %v1935
        %2577 = vmatpush.msra.mxu0 %v1934
        %2578 = vmatpush.msra.mxu0 %v1933
        %2579 = vmatpush.msra.mxu0 %v1932
        %2580 = vmatpush.msra.mxu0 %v1931
        %2581 = vmatpush.msra.mxu0 %v1930
        %2582 = vmatpush.msra.mxu0 %v1929
        %2583 = vmatpush.msra.mxu0 %v1928
        %2584 = vmatpush.msra.mxu0 %v1927
        %2585 = vmatpush.msra.mxu0 %v1926
        %2586 = vmatpush.msra.mxu0 %v1925
        %2587 = vmatpush.msra.mxu0 %v1924
        %2588 = vmatmul.f32.gmra.mxu0 %v1574
        %v2589 = vpop.f32.mrf.mxu0
        %v2590 = vadd.f32 %v2381, %v2589
        %2591 = vmatmul.f32.gmra.mxu0 %v1579
        %v2592 = vpop.f32.mrf.mxu0
        %v2593 = vadd.f32 %v2384, %v2592
        %2594 = vmatmul.f32.gmra.mxu0 %v1584
        %v2595 = vpop.f32.mrf.mxu0
        %v2596 = vadd.f32 %v2387, %v2595
        %2597 = vmatmul.f32.gmra.mxu0 %v1589
        %v2598 = vpop.f32.mrf.mxu0
        %v2599 = vadd.f32 %v2390, %v2598
        %2600 = vmatmul.f32.gmra.mxu0 %v1594
        %v2601 = vpop.f32.mrf.mxu0
        %v2602 = vadd.f32 %v2393, %v2601
        %2603 = vmatmul.f32.gmra.mxu0 %v1599
        %v2604 = vpop.f32.mrf.mxu0
        %v2605 = vadd.f32 %v2396, %v2604
        %2606 = vmatmul.f32.gmra.mxu0 %v1604
        %v2607 = vpop.f32.mrf.mxu0
        %v2608 = vadd.f32 %v2399, %v2607
        %2609 = vmatmul.f32.gmra.mxu0 %v1609
        %v2610 = vpop.f32.mrf.mxu0
        %v2611 = vadd.f32 %v2402, %v2610
        %2612 = vmatmul.f32.gmra.mxu0 %v1614
        %v2613 = vpop.f32.mrf.mxu0
        %v2614 = vadd.f32 %v2405, %v2613
        %2615 = vmatmul.f32.gmra.mxu0 %v1619
        %v2616 = vpop.f32.mrf.mxu0
        %v2617 = vadd.f32 %v2408, %v2616
        %2618 = vmatmul.f32.gmra.mxu0 %v1624
        %v2619 = vpop.f32.mrf.mxu0
        %v2620 = vadd.f32 %v2411, %v2619
        %2621 = vmatmul.f32.gmra.mxu0 %v1629
        %v2622 = vpop.f32.mrf.mxu0
        %v2623 = vadd.f32 %v2414, %v2622
        %2624 = vmatmul.f32.gmra.mxu0 %v1634
        %v2625 = vpop.f32.mrf.mxu0
        %v2626 = vadd.f32 %v2417, %v2625
        %2627 = vmatmul.f32.gmra.mxu0 %v1639
        %v2628 = vpop.f32.mrf.mxu0
        %v2629 = vadd.f32 %v2420, %v2628
        %2630 = vmatmul.f32.gmra.mxu0 %v1644
        %v2631 = vpop.f32.mrf.mxu0
        %v2632 = vadd.f32 %v2423, %v2631
        %2633 = vmatmul.f32.gmra.mxu0 %v1649
        %v2634 = vpop.f32.mrf.mxu0
        %v2635 = vadd.f32 %v2426, %v2634
        %2636 = vmatmul.f32.gmra.mxu0 %v1654
        %v2637 = vpop.f32.mrf.mxu0
        %v2638 = vadd.f32 %v2429, %v2637
        %2639 = vmatmul.f32.gmra.mxu0 %v1659
        %v2640 = vpop.f32.mrf.mxu0
        %v2641 = vadd.f32 %v2432, %v2640
        %2642 = vmatmul.f32.gmra.mxu0 %v1664
        %v2643 = vpop.f32.mrf.mxu0
        %v2644 = vadd.f32 %v2435, %v2643
        %2645 = vmatmul.f32.gmra.mxu0 %v1669
        %v2646 = vpop.f32.mrf.mxu0
        %v2647 = vadd.f32 %v2438, %v2646
        %2648 = vmatmul.f32.gmra.mxu0 %v1674
        %v2649 = vpop.f32.mrf.mxu0
        %v2650 = vadd.f32 %v2441, %v2649
        %2651 = vmatmul.f32.gmra.mxu0 %v1679
        %v2652 = vpop.f32.mrf.mxu0
        %v2653 = vadd.f32 %v2444, %v2652
        %2654 = vmatmul.f32.gmra.mxu0 %v1684
        %v2655 = vpop.f32.mrf.mxu0
        %v2656 = vadd.f32 %v2447, %v2655
        %2657 = vmatmul.f32.gmra.mxu0 %v1689
        %v2658 = vpop.f32.mrf.mxu0
        %v2659 = vadd.f32 %v2450, %v2658
        %2660 = vmatmul.f32.gmra.mxu0 %v1694
        %v2661 = vpop.f32.mrf.mxu0
        %v2662 = vadd.f32 %v2453, %v2661
        %2663 = vmatmul.f32.gmra.mxu0 %v1699
        %v2664 = vpop.f32.mrf.mxu0
        %v2665 = vadd.f32 %v2456, %v2664
        %2666 = vmatmul.f32.gmra.mxu0 %v1704
        %v2667 = vpop.f32.mrf.mxu0
        %v2668 = vadd.f32 %v2459, %v2667
        %2669 = vmatmul.f32.gmra.mxu0 %v1709
        %v2670 = vpop.f32.mrf.mxu0
        %v2671 = vadd.f32 %v2462, %v2670
        %2672 = vmatmul.f32.gmra.mxu0 %v1714
        %v2673 = vpop.f32.mrf.mxu0
        %v2674 = vadd.f32 %v2465, %v2673
        %2675 = vmatmul.f32.gmra.mxu0 %v1719
        %v2676 = vpop.f32.mrf.mxu0
        %v2677 = vadd.f32 %v2468, %v2676
        %2678 = vmatmul.f32.gmra.mxu0 %v1724
        %v2679 = vpop.f32.mrf.mxu0
        %v2680 = vadd.f32 %v2471, %v2679
        %2681 = vmatmul.f32.gmra.mxu0 %v1729
        %v2682 = vpop.f32.mrf.mxu0
        %v2683 = vadd.f32 %v2474, %v2682
        %2684 = vmatmul.f32.gmra.mxu0 %v1734
        %v2685 = vpop.f32.mrf.mxu0
        %v2686 = vadd.f32 %v2477, %v2685
        %2687 = vmatmul.f32.gmra.mxu0 %v1739
        %v2688 = vpop.f32.mrf.mxu0
        %v2689 = vadd.f32 %v2480, %v2688
        %2690 = vmatmul.f32.gmra.mxu0 %v1744
        %v2691 = vpop.f32.mrf.mxu0
        %v2692 = vadd.f32 %v2483, %v2691
        %2693 = vmatmul.f32.gmra.mxu0 %v1749
        %v2694 = vpop.f32.mrf.mxu0
        %v2695 = vadd.f32 %v2486, %v2694
        %2696 = vmatmul.f32.gmra.mxu0 %v1754
        %v2697 = vpop.f32.mrf.mxu0
        %v2698 = vadd.f32 %v2489, %v2697
        %2699 = vmatmul.f32.gmra.mxu0 %v1759
        %v2700 = vpop.f32.mrf.mxu0
        %v2701 = vadd.f32 %v2492, %v2700
        %2702 = vmatmul.f32.gmra.mxu0 %v1764
        %v2703 = vpop.f32.mrf.mxu0
        %v2704 = vadd.f32 %v2495, %v2703
        %2705 = vmatmul.f32.gmra.mxu0 %v1769
        %v2706 = vpop.f32.mrf.mxu0
        %v2707 = vadd.f32 %v2498, %v2706
        %2708 = vmatmul.f32.gmra.mxu0 %v1774
        %v2709 = vpop.f32.mrf.mxu0
        %v2710 = vadd.f32 %v2501, %v2709
        %2711 = vmatmul.f32.gmra.mxu0 %v1779
        %v2712 = vpop.f32.mrf.mxu0
        %v2713 = vadd.f32 %v2504, %v2712
        %2714 = vmatmul.f32.gmra.mxu0 %v1784
        %v2715 = vpop.f32.mrf.mxu0
        %v2716 = vadd.f32 %v2507, %v2715
        %2717 = vmatmul.f32.gmra.mxu0 %v1789
        %v2718 = vpop.f32.mrf.mxu0
        %v2719 = vadd.f32 %v2510, %v2718
        %2720 = vmatmul.f32.gmra.mxu0 %v1794
        %v2721 = vpop.f32.mrf.mxu0
        %v2722 = vadd.f32 %v2513, %v2721
        %2723 = vmatmul.f32.gmra.mxu0 %v1799
        %v2724 = vpop.f32.mrf.mxu0
        %v2725 = vadd.f32 %v2516, %v2724
        %2726 = vmatmul.f32.gmra.mxu0 %v1804
        %v2727 = vpop.f32.mrf.mxu0
        %v2728 = vadd.f32 %v2519, %v2727
        %2729 = vmatmul.f32.gmra.mxu0 %v1809
        %v2730 = vpop.f32.mrf.mxu0
        %v2731 = vadd.f32 %v2522, %v2730
        %2732 = vmatmul.f32.gmra.mxu0 %v1814
        %v2733 = vpop.f32.mrf.mxu0
        %v2734 = vadd.f32 %v2525, %v2733
        %2735 = vmatmul.f32.gmra.mxu0 %v1819
        %v2736 = vpop.f32.mrf.mxu0
        %v2737 = vadd.f32 %v2528, %v2736
        %2738 = vmatmul.f32.gmra.mxu0 %v1824
        %v2739 = vpop.f32.mrf.mxu0
        %v2740 = vadd.f32 %v2531, %v2739
        %2741 = vmatmul.f32.gmra.mxu0 %v1829
        %v2742 = vpop.f32.mrf.mxu0
        %v2743 = vadd.f32 %v2534, %v2742
        %2744 = vmatmul.f32.gmra.mxu0 %v1834
        %v2745 = vpop.f32.mrf.mxu0
        %v2746 = vadd.f32 %v2537, %v2745
        %2747 = vmatmul.f32.gmra.mxu0 %v1839
        %v2748 = vpop.f32.mrf.mxu0
        %v2749 = vadd.f32 %v2540, %v2748
        %2750 = vmatmul.f32.gmra.mxu0 %v1844
        %v2751 = vpop.f32.mrf.mxu0
        %v2752 = vadd.f32 %v2543, %v2751
        %2753 = vmatmul.f32.gmra.mxu0 %v1849
        %v2754 = vpop.f32.mrf.mxu0
        %v2755 = vadd.f32 %v2546, %v2754
        %2756 = vmatmul.f32.gmra.mxu0 %v1854
        %v2757 = vpop.f32.mrf.mxu0
        %v2758 = vadd.f32 %v2549, %v2757
        %2759 = vmatmul.f32.gmra.mxu0 %v1859
        %v2760 = vpop.f32.mrf.mxu0
        %v2761 = vadd.f32 %v2552, %v2760
        %2762 = vmatmul.f32.gmra.mxu0 %v1864
        %v2763 = vpop.f32.mrf.mxu0
        %v2764 = vadd.f32 %v2555, %v2763
        %2765 = vmatmul.f32.gmra.mxu0 %v1869
        %v2766 = vpop.f32.mrf.mxu0
        %v2767 = vadd.f32 %v2558, %v2766
        %2768 = vmatmul.f32.gmra.mxu0 %v1874
        %v2769 = vpop.f32.mrf.mxu0
        %v2770 = vadd.f32 %v2561, %v2769
        %2771 = vmatmul.f32.gmra.mxu0 %v1879
        %v2772 = vpop.f32.mrf.mxu0
        %v2773 = vadd.f32 %v2564, %v2772
        %2774 = vmatmul.f32.gmra.mxu0 %v1884
        %v2775 = vpop.f32.mrf.mxu0
        %v2776 = vadd.f32 %v2567, %v2775
        %2777 = vmatmul.f32.gmra.mxu0 %v1889
        %v2778 = vpop.f32.mrf.mxu0
        %v2779 = vadd.f32 %v2570, %v2778
        %2780 = vdwg.mxu0
        %2781 = vmatpush.msra.mxu0 %v1955
        %2782 = vmatpush.msra.mxu0 %v1954
        %2783 = vmatpush.msra.mxu0 %v1953
        %2784 = vmatpush.msra.mxu0 %v1952
        %2785 = vmatpush.msra.mxu0 %v1951
        %2786 = vmatpush.msra.mxu0 %v1950
        %2787 = vmatpush.msra.mxu0 %v1949
        %2788 = vmatpush.msra.mxu0 %v1948
        %2789 = vmatpush.msra.mxu0 %v1947
        %2790 = vmatpush.msra.mxu0 %v1946
        %2791 = vmatpush.msra.mxu0 %v1945
        %2792 = vmatpush.msra.mxu0 %v1944
        %2793 = vmatpush.msra.mxu0 %v1943
        %2794 = vmatpush.msra.mxu0 %v1942
        %2795 = vmatpush.msra.mxu0 %v1941
        %2796 = vmatpush.msra.mxu0 %v1940
        %2797 = vmatmul.f32.gmra.mxu0 %v1575
        %v2798 = vpop.f32.mrf.mxu0
        %v2799 = vadd.f32 %v2590, %v2798
        %2800 = vmatmul.f32.gmra.mxu0 %v1580
        %v2801 = vpop.f32.mrf.mxu0
        %v2802 = vadd.f32 %v2593, %v2801
        %2803 = vmatmul.f32.gmra.mxu0 %v1585
        %v2804 = vpop.f32.mrf.mxu0
        %v2805 = vadd.f32 %v2596, %v2804
        %2806 = vmatmul.f32.gmra.mxu0 %v1590
        %v2807 = vpop.f32.mrf.mxu0
        %v2808 = vadd.f32 %v2599, %v2807
        %2809 = vmatmul.f32.gmra.mxu0 %v1595
        %v2810 = vpop.f32.mrf.mxu0
        %v2811 = vadd.f32 %v2602, %v2810
        %2812 = vmatmul.f32.gmra.mxu0 %v1600
        %v2813 = vpop.f32.mrf.mxu0
        %v2814 = vadd.f32 %v2605, %v2813
        %2815 = vmatmul.f32.gmra.mxu0 %v1605
        %v2816 = vpop.f32.mrf.mxu0
        %v2817 = vadd.f32 %v2608, %v2816
        %2818 = vmatmul.f32.gmra.mxu0 %v1610
        %v2819 = vpop.f32.mrf.mxu0
        %v2820 = vadd.f32 %v2611, %v2819
        %2821 = vmatmul.f32.gmra.mxu0 %v1615
        %v2822 = vpop.f32.mrf.mxu0
        %v2823 = vadd.f32 %v2614, %v2822
        %2824 = vmatmul.f32.gmra.mxu0 %v1620
        %v2825 = vpop.f32.mrf.mxu0
        %v2826 = vadd.f32 %v2617, %v2825
        %2827 = vmatmul.f32.gmra.mxu0 %v1625
        %v2828 = vpop.f32.mrf.mxu0
        %v2829 = vadd.f32 %v2620, %v2828
        %2830 = vmatmul.f32.gmra.mxu0 %v1630
        %v2831 = vpop.f32.mrf.mxu0
        %v2832 = vadd.f32 %v2623, %v2831
        %2833 = vmatmul.f32.gmra.mxu0 %v1635
        %v2834 = vpop.f32.mrf.mxu0
        %v2835 = vadd.f32 %v2626, %v2834
        %2836 = vmatmul.f32.gmra.mxu0 %v1640
        %v2837 = vpop.f32.mrf.mxu0
        %v2838 = vadd.f32 %v2629, %v2837
        %2839 = vmatmul.f32.gmra.mxu0 %v1645
        %v2840 = vpop.f32.mrf.mxu0
        %v2841 = vadd.f32 %v2632, %v2840
        %2842 = vmatmul.f32.gmra.mxu0 %v1650
        %v2843 = vpop.f32.mrf.mxu0
        %v2844 = vadd.f32 %v2635, %v2843
        %2845 = vmatmul.f32.gmra.mxu0 %v1655
        %v2846 = vpop.f32.mrf.mxu0
        %v2847 = vadd.f32 %v2638, %v2846
        %2848 = vmatmul.f32.gmra.mxu0 %v1660
        %v2849 = vpop.f32.mrf.mxu0
        %v2850 = vadd.f32 %v2641, %v2849
        %2851 = vmatmul.f32.gmra.mxu0 %v1665
        %v2852 = vpop.f32.mrf.mxu0
        %v2853 = vadd.f32 %v2644, %v2852
        %2854 = vmatmul.f32.gmra.mxu0 %v1670
        %v2855 = vpop.f32.mrf.mxu0
        %v2856 = vadd.f32 %v2647, %v2855
        %2857 = vmatmul.f32.gmra.mxu0 %v1675
        %v2858 = vpop.f32.mrf.mxu0
        %v2859 = vadd.f32 %v2650, %v2858
        %2860 = vmatmul.f32.gmra.mxu0 %v1680
        %v2861 = vpop.f32.mrf.mxu0
        %v2862 = vadd.f32 %v2653, %v2861
        %2863 = vmatmul.f32.gmra.mxu0 %v1685
        %v2864 = vpop.f32.mrf.mxu0
        %v2865 = vadd.f32 %v2656, %v2864
        %2866 = vmatmul.f32.gmra.mxu0 %v1690
        %v2867 = vpop.f32.mrf.mxu0
        %v2868 = vadd.f32 %v2659, %v2867
        %2869 = vmatmul.f32.gmra.mxu0 %v1695
        %v2870 = vpop.f32.mrf.mxu0
        %v2871 = vadd.f32 %v2662, %v2870
        %2872 = vmatmul.f32.gmra.mxu0 %v1700
        %v2873 = vpop.f32.mrf.mxu0
        %v2874 = vadd.f32 %v2665, %v2873
        %2875 = vmatmul.f32.gmra.mxu0 %v1705
        %v2876 = vpop.f32.mrf.mxu0
        %v2877 = vadd.f32 %v2668, %v2876
        %2878 = vmatmul.f32.gmra.mxu0 %v1710
        %v2879 = vpop.f32.mrf.mxu0
        %v2880 = vadd.f32 %v2671, %v2879
        %2881 = vmatmul.f32.gmra.mxu0 %v1715
        %v2882 = vpop.f32.mrf.mxu0
        %v2883 = vadd.f32 %v2674, %v2882
        %2884 = vmatmul.f32.gmra.mxu0 %v1720
        %v2885 = vpop.f32.mrf.mxu0
        %v2886 = vadd.f32 %v2677, %v2885
        %2887 = vmatmul.f32.gmra.mxu0 %v1725
        %v2888 = vpop.f32.mrf.mxu0
        %v2889 = vadd.f32 %v2680, %v2888
        %2890 = vmatmul.f32.gmra.mxu0 %v1730
        %v2891 = vpop.f32.mrf.mxu0
        %v2892 = vadd.f32 %v2683, %v2891
        %2893 = vmatmul.f32.gmra.mxu0 %v1735
        %v2894 = vpop.f32.mrf.mxu0
        %v2895 = vadd.f32 %v2686, %v2894
        %2896 = vmatmul.f32.gmra.mxu0 %v1740
        %v2897 = vpop.f32.mrf.mxu0
        %v2898 = vadd.f32 %v2689, %v2897
        %2899 = vmatmul.f32.gmra.mxu0 %v1745
        %v2900 = vpop.f32.mrf.mxu0
        %v2901 = vadd.f32 %v2692, %v2900
        %2902 = vmatmul.f32.gmra.mxu0 %v1750
        %v2903 = vpop.f32.mrf.mxu0
        %v2904 = vadd.f32 %v2695, %v2903
        %2905 = vmatmul.f32.gmra.mxu0 %v1755
        %v2906 = vpop.f32.mrf.mxu0
        %v2907 = vadd.f32 %v2698, %v2906
        %2908 = vmatmul.f32.gmra.mxu0 %v1760
        %v2909 = vpop.f32.mrf.mxu0
        %v2910 = vadd.f32 %v2701, %v2909
        %2911 = vmatmul.f32.gmra.mxu0 %v1765
        %v2912 = vpop.f32.mrf.mxu0
        %v2913 = vadd.f32 %v2704, %v2912
        %2914 = vmatmul.f32.gmra.mxu0 %v1770
        %v2915 = vpop.f32.mrf.mxu0
        %v2916 = vadd.f32 %v2707, %v2915
        %2917 = vmatmul.f32.gmra.mxu0 %v1775
        %v2918 = vpop.f32.mrf.mxu0
        %v2919 = vadd.f32 %v2710, %v2918
        %2920 = vmatmul.f32.gmra.mxu0 %v1780
        %v2921 = vpop.f32.mrf.mxu0
        %v2922 = vadd.f32 %v2713, %v2921
        %2923 = vmatmul.f32.gmra.mxu0 %v1785
        %v2924 = vpop.f32.mrf.mxu0
        %v2925 = vadd.f32 %v2716, %v2924
        %2926 = vmatmul.f32.gmra.mxu0 %v1790
        %v2927 = vpop.f32.mrf.mxu0
        %v2928 = vadd.f32 %v2719, %v2927
        %2929 = vmatmul.f32.gmra.mxu0 %v1795
        %v2930 = vpop.f32.mrf.mxu0
        %v2931 = vadd.f32 %v2722, %v2930
        %2932 = vmatmul.f32.gmra.mxu0 %v1800
        %v2933 = vpop.f32.mrf.mxu0
        %v2934 = vadd.f32 %v2725, %v2933
        %2935 = vmatmul.f32.gmra.mxu0 %v1805
        %v2936 = vpop.f32.mrf.mxu0
        %v2937 = vadd.f32 %v2728, %v2936
        %2938 = vmatmul.f32.gmra.mxu0 %v1810
        %v2939 = vpop.f32.mrf.mxu0
        %v2940 = vadd.f32 %v2731, %v2939
        %2941 = vmatmul.f32.gmra.mxu0 %v1815
        %v2942 = vpop.f32.mrf.mxu0
        %v2943 = vadd.f32 %v2734, %v2942
        %2944 = vmatmul.f32.gmra.mxu0 %v1820
        %v2945 = vpop.f32.mrf.mxu0
        %v2946 = vadd.f32 %v2737, %v2945
        %2947 = vmatmul.f32.gmra.mxu0 %v1825
        %v2948 = vpop.f32.mrf.mxu0
        %v2949 = vadd.f32 %v2740, %v2948
        %2950 = vmatmul.f32.gmra.mxu0 %v1830
        %v2951 = vpop.f32.mrf.mxu0
        %v2952 = vadd.f32 %v2743, %v2951
        %2953 = vmatmul.f32.gmra.mxu0 %v1835
        %v2954 = vpop.f32.mrf.mxu0
        %v2955 = vadd.f32 %v2746, %v2954
        %2956 = vmatmul.f32.gmra.mxu0 %v1840
        %v2957 = vpop.f32.mrf.mxu0
        %v2958 = vadd.f32 %v2749, %v2957
        %2959 = vmatmul.f32.gmra.mxu0 %v1845
        %v2960 = vpop.f32.mrf.mxu0
        %v2961 = vadd.f32 %v2752, %v2960
        %2962 = vmatmul.f32.gmra.mxu0 %v1850
        %v2963 = vpop.f32.mrf.mxu0
        %v2964 = vadd.f32 %v2755, %v2963
        %2965 = vmatmul.f32.gmra.mxu0 %v1855
        %v2966 = vpop.f32.mrf.mxu0
        %v2967 = vadd.f32 %v2758, %v2966
        %2968 = vmatmul.f32.gmra.mxu0 %v1860
        %v2969 = vpop.f32.mrf.mxu0
        %v2970 = vadd.f32 %v2761, %v2969
        %2971 = vmatmul.f32.gmra.mxu0 %v1865
        %v2972 = vpop.f32.mrf.mxu0
        %v2973 = vadd.f32 %v2764, %v2972
        %2974 = vmatmul.f32.gmra.mxu0 %v1870
        %v2975 = vpop.f32.mrf.mxu0
        %v2976 = vadd.f32 %v2767, %v2975
        %2977 = vmatmul.f32.gmra.mxu0 %v1875
        %v2978 = vpop.f32.mrf.mxu0
        %v2979 = vadd.f32 %v2770, %v2978
        %2980 = vmatmul.f32.gmra.mxu0 %v1880
        %v2981 = vpop.f32.mrf.mxu0
        %v2982 = vadd.f32 %v2773, %v2981
        %2983 = vmatmul.f32.gmra.mxu0 %v1885
        %v2984 = vpop.f32.mrf.mxu0
        %v2985 = vadd.f32 %v2776, %v2984
        %2986 = vmatmul.f32.gmra.mxu0 %v1890
        %v2987 = vpop.f32.mrf.mxu0
        %v2988 = vadd.f32 %v2779, %v2987
        %2989 = vdwg.mxu0
        %2990 = vmatpush.msra.mxu0 0.0
        %2991 = vmatpush.msra.mxu0 0.0
        %2992 = vmatpush.msra.mxu0 0.0
        %2993 = vmatpush.msra.mxu0 0.0
        %2994 = vmatpush.msra.mxu0 0.0
        %2995 = vmatpush.msra.mxu0 0.0
        %2996 = vmatpush.msra.mxu0 0.0
        %2997 = vmatpush.msra.mxu0 0.0
        %2998 = vmatpush.msra.mxu0 0.0
        %2999 = vmatpush.msra.mxu0 0.0
        %3000 = vmatpush.msra.mxu0 0.0
        %3001 = vmatpush.msra.mxu0 0.0
        %3002 = vmatpush.msra.mxu0 0.0
        %3003 = vmatpush.msra.mxu0 0.0
        %3004 = vmatpush.msra.mxu0 0.0
        %3005 = vmatpush.msra.mxu0 %v2152
        %3006 = vmatmul.f32.gmra.mxu0 %v1959
        %v3007 = vpop.f32.mrf.mxu0
        %v3008 = vadd.f32 %v2799, %v3007
        %3009 = vmatmul.f32.gmra.mxu0 %v1962
        %v3010 = vpop.f32.mrf.mxu0
        %v3011 = vadd.f32 %v2802, %v3010
        %3012 = vmatmul.f32.gmra.mxu0 %v1965
        %v3013 = vpop.f32.mrf.mxu0
        %v3014 = vadd.f32 %v2805, %v3013
        %3015 = vmatmul.f32.gmra.mxu0 %v1968
        %v3016 = vpop.f32.mrf.mxu0
        %v3017 = vadd.f32 %v2808, %v3016
        %3018 = vmatmul.f32.gmra.mxu0 %v1971
        %v3019 = vpop.f32.mrf.mxu0
        %v3020 = vadd.f32 %v2811, %v3019
        %3021 = vmatmul.f32.gmra.mxu0 %v1974
        %v3022 = vpop.f32.mrf.mxu0
        %v3023 = vadd.f32 %v2814, %v3022
        %3024 = vmatmul.f32.gmra.mxu0 %v1977
        %v3025 = vpop.f32.mrf.mxu0
        %v3026 = vadd.f32 %v2817, %v3025
        %3027 = vmatmul.f32.gmra.mxu0 %v1980
        %v3028 = vpop.f32.mrf.mxu0
        %v3029 = vadd.f32 %v2820, %v3028
        %3030 = vmatmul.f32.gmra.mxu0 %v1983
        %v3031 = vpop.f32.mrf.mxu0
        %v3032 = vadd.f32 %v2823, %v3031
        %3033 = vmatmul.f32.gmra.mxu0 %v1986
        %v3034 = vpop.f32.mrf.mxu0
        %v3035 = vadd.f32 %v2826, %v3034
        %3036 = vmatmul.f32.gmra.mxu0 %v1989
        %v3037 = vpop.f32.mrf.mxu0
        %v3038 = vadd.f32 %v2829, %v3037
        %3039 = vmatmul.f32.gmra.mxu0 %v1992
        %v3040 = vpop.f32.mrf.mxu0
        %v3041 = vadd.f32 %v2832, %v3040
        %3042 = vmatmul.f32.gmra.mxu0 %v1995
        %v3043 = vpop.f32.mrf.mxu0
        %v3044 = vadd.f32 %v2835, %v3043
        %3045 = vmatmul.f32.gmra.mxu0 %v1998
        %v3046 = vpop.f32.mrf.mxu0
        %v3047 = vadd.f32 %v2838, %v3046
        %3048 = vmatmul.f32.gmra.mxu0 %v2001
        %v3049 = vpop.f32.mrf.mxu0
        %v3050 = vadd.f32 %v2841, %v3049
        %3051 = vmatmul.f32.gmra.mxu0 %v2004
        %v3052 = vpop.f32.mrf.mxu0
        %v3053 = vadd.f32 %v2844, %v3052
        %3054 = vmatmul.f32.gmra.mxu0 %v2007
        %v3055 = vpop.f32.mrf.mxu0
        %v3056 = vadd.f32 %v2847, %v3055
        %3057 = vmatmul.f32.gmra.mxu0 %v2010
        %v3058 = vpop.f32.mrf.mxu0
        %v3059 = vadd.f32 %v2850, %v3058
        %3060 = vmatmul.f32.gmra.mxu0 %v2013
        %v3061 = vpop.f32.mrf.mxu0
        %v3062 = vadd.f32 %v2853, %v3061
        %3063 = vmatmul.f32.gmra.mxu0 %v2016
        %v3064 = vpop.f32.mrf.mxu0
        %v3065 = vadd.f32 %v2856, %v3064
        %3066 = vmatmul.f32.gmra.mxu0 %v2019
        %v3067 = vpop.f32.mrf.mxu0
        %v3068 = vadd.f32 %v2859, %v3067
        %3069 = vmatmul.f32.gmra.mxu0 %v2022
        %v3070 = vpop.f32.mrf.mxu0
        %v3071 = vadd.f32 %v2862, %v3070
        %3072 = vmatmul.f32.gmra.mxu0 %v2025
        %v3073 = vpop.f32.mrf.mxu0
        %v3074 = vadd.f32 %v2865, %v3073
        %3075 = vmatmul.f32.gmra.mxu0 %v2028
        %v3076 = vpop.f32.mrf.mxu0
        %v3077 = vadd.f32 %v2868, %v3076
        %3078 = vmatmul.f32.gmra.mxu0 %v2031
        %v3079 = vpop.f32.mrf.mxu0
        %v3080 = vadd.f32 %v2871, %v3079
        %3081 = vmatmul.f32.gmra.mxu0 %v2034
        %v3082 = vpop.f32.mrf.mxu0
        %v3083 = vadd.f32 %v2874, %v3082
        %3084 = vmatmul.f32.gmra.mxu0 %v2037
        %v3085 = vpop.f32.mrf.mxu0
        %v3086 = vadd.f32 %v2877, %v3085
        %3087 = vmatmul.f32.gmra.mxu0 %v2040
        %v3088 = vpop.f32.mrf.mxu0
        %v3089 = vadd.f32 %v2880, %v3088
        %3090 = vmatmul.f32.gmra.mxu0 %v2043
        %v3091 = vpop.f32.mrf.mxu0
        %v3092 = vadd.f32 %v2883, %v3091
        %3093 = vmatmul.f32.gmra.mxu0 %v2046
        %v3094 = vpop.f32.mrf.mxu0
        %v3095 = vadd.f32 %v2886, %v3094
        %3096 = vmatmul.f32.gmra.mxu0 %v2049
        %v3097 = vpop.f32.mrf.mxu0
        %v3098 = vadd.f32 %v2889, %v3097
        %3099 = vmatmul.f32.gmra.mxu0 %v2052
        %v3100 = vpop.f32.mrf.mxu0
        %v3101 = vadd.f32 %v2892, %v3100
        %3102 = vmatmul.f32.gmra.mxu0 %v2055
        %v3103 = vpop.f32.mrf.mxu0
        %v3104 = vadd.f32 %v2895, %v3103
        %3105 = vmatmul.f32.gmra.mxu0 %v2058
        %v3106 = vpop.f32.mrf.mxu0
        %v3107 = vadd.f32 %v2898, %v3106
        %3108 = vmatmul.f32.gmra.mxu0 %v2061
        %v3109 = vpop.f32.mrf.mxu0
        %v3110 = vadd.f32 %v2901, %v3109
        %3111 = vmatmul.f32.gmra.mxu0 %v2064
        %v3112 = vpop.f32.mrf.mxu0
        %v3113 = vadd.f32 %v2904, %v3112
        %3114 = vmatmul.f32.gmra.mxu0 %v2067
        %v3115 = vpop.f32.mrf.mxu0
        %v3116 = vadd.f32 %v2907, %v3115
        %3117 = vmatmul.f32.gmra.mxu0 %v2070
        %v3118 = vpop.f32.mrf.mxu0
        %v3119 = vadd.f32 %v2910, %v3118
        %3120 = vmatmul.f32.gmra.mxu0 %v2073
        %v3121 = vpop.f32.mrf.mxu0
        %v3122 = vadd.f32 %v2913, %v3121
        %3123 = vmatmul.f32.gmra.mxu0 %v2076
        %v3124 = vpop.f32.mrf.mxu0
        %v3125 = vadd.f32 %v2916, %v3124
        %3126 = vmatmul.f32.gmra.mxu0 %v2079
        %v3127 = vpop.f32.mrf.mxu0
        %v3128 = vadd.f32 %v2919, %v3127
        %3129 = vmatmul.f32.gmra.mxu0 %v2082
        %v3130 = vpop.f32.mrf.mxu0
        %v3131 = vadd.f32 %v2922, %v3130
        %3132 = vmatmul.f32.gmra.mxu0 %v2085
        %v3133 = vpop.f32.mrf.mxu0
        %v3134 = vadd.f32 %v2925, %v3133
        %3135 = vmatmul.f32.gmra.mxu0 %v2088
        %v3136 = vpop.f32.mrf.mxu0
        %v3137 = vadd.f32 %v2928, %v3136
        %3138 = vmatmul.f32.gmra.mxu0 %v2091
        %v3139 = vpop.f32.mrf.mxu0
        %v3140 = vadd.f32 %v2931, %v3139
        %3141 = vmatmul.f32.gmra.mxu0 %v2094
        %v3142 = vpop.f32.mrf.mxu0
        %v3143 = vadd.f32 %v2934, %v3142
        %3144 = vmatmul.f32.gmra.mxu0 %v2097
        %v3145 = vpop.f32.mrf.mxu0
        %v3146 = vadd.f32 %v2937, %v3145
        %3147 = vmatmul.f32.gmra.mxu0 %v2100
        %v3148 = vpop.f32.mrf.mxu0
        %v3149 = vadd.f32 %v2940, %v3148
        %3150 = vmatmul.f32.gmra.mxu0 %v2103
        %v3151 = vpop.f32.mrf.mxu0
        %v3152 = vadd.f32 %v2943, %v3151
        %3153 = vmatmul.f32.gmra.mxu0 %v2106
        %v3154 = vpop.f32.mrf.mxu0
        %v3155 = vadd.f32 %v2946, %v3154
        %3156 = vmatmul.f32.gmra.mxu0 %v2109
        %v3157 = vpop.f32.mrf.mxu0
        %v3158 = vadd.f32 %v2949, %v3157
        %3159 = vmatmul.f32.gmra.mxu0 %v2112
        %v3160 = vpop.f32.mrf.mxu0
        %v3161 = vadd.f32 %v2952, %v3160
        %3162 = vmatmul.f32.gmra.mxu0 %v2115
        %v3163 = vpop.f32.mrf.mxu0
        %v3164 = vadd.f32 %v2955, %v3163
        %3165 = vmatmul.f32.gmra.mxu0 %v2118
        %v3166 = vpop.f32.mrf.mxu0
        %v3167 = vadd.f32 %v2958, %v3166
        %3168 = vmatmul.f32.gmra.mxu0 %v2121
        %v3169 = vpop.f32.mrf.mxu0
        %v3170 = vadd.f32 %v2961, %v3169
        %3171 = vmatmul.f32.gmra.mxu0 %v2124
        %v3172 = vpop.f32.mrf.mxu0
        %v3173 = vadd.f32 %v2964, %v3172
        %3174 = vmatmul.f32.gmra.mxu0 %v2127
        %v3175 = vpop.f32.mrf.mxu0
        %v3176 = vadd.f32 %v2967, %v3175
        %3177 = vmatmul.f32.gmra.mxu0 %v2130
        %v3178 = vpop.f32.mrf.mxu0
        %v3179 = vadd.f32 %v2970, %v3178
        %3180 = vmatmul.f32.gmra.mxu0 %v2133
        %v3181 = vpop.f32.mrf.mxu0
        %v3182 = vadd.f32 %v2973, %v3181
        %3183 = vmatmul.f32.gmra.mxu0 %v2136
        %v3184 = vpop.f32.mrf.mxu0
        %v3185 = vadd.f32 %v2976, %v3184
        %3186 = vmatmul.f32.gmra.mxu0 %v2139
        %v3187 = vpop.f32.mrf.mxu0
        %v3188 = vadd.f32 %v2979, %v3187
        %3189 = vmatmul.f32.gmra.mxu0 %v2142
        %v3190 = vpop.f32.mrf.mxu0
        %v3191 = vadd.f32 %v2982, %v3190
        %3192 = vmatmul.f32.gmra.mxu0 %v2145
        %v3193 = vpop.f32.mrf.mxu0
        %v3194 = vadd.f32 %v2985, %v3193
        %3195 = vmatmul.f32.gmra.mxu0 %v2148
        %v3196 = vpop.f32.mrf.mxu0
        %v3197 = vadd.f32 %v2988, %v3196
        %3198 = vdwg.mxu0
        %3199 = vst [vmem:[%s255] sm:$0xff] %v3008
        %3200 = vst [vmem:[%s255 + $0x8] sm:$0xff] %v3011
        %3201 = vst [vmem:[%s255 + $0x10] sm:$0xff] %v3014
        %3202 = vst [vmem:[%s255 + $0x18] sm:$0xff] %v3017
        %3203 = vst [vmem:[%s255 + $0x20] sm:$0xff] %v3020
        %3204 = vst [vmem:[%s255 + $0x28] sm:$0xff] %v3023
        %3205 = vst [vmem:[%s255 + $0x30] sm:$0xff] %v3026
        %3206 = vst [vmem:[%s255 + $0x38] sm:$0xff] %v3029
        %3207 = vst [vmem:[%s255 + $0x40] sm:$0xff] %v3032
        %3208 = vst [vmem:[%s255 + $0x48] sm:$0xff] %v3035
        %3209 = vst [vmem:[%s255 + $0x50] sm:$0xff] %v3038
        %3210 = vst [vmem:[%s255 + $0x58] sm:$0xff] %v3041
        %3211 = vst [vmem:[%s255 + $0x60] sm:$0xff] %v3044
        %3212 = vst [vmem:[%s255 + $0x68] sm:$0xff] %v3047
        %3213 = vst [vmem:[%s255 + $0x70] sm:$0xff] %v3050
        %3214 = vst [vmem:[%s255 + $0x78] sm:$0xff] %v3053
        %3215 = vst [vmem:[%s255 + $0x80] sm:$0xff] %v3056
        %3216 = vst [vmem:[%s255 + $0x88] sm:$0xff] %v3059
        %3217 = vst [vmem:[%s255 + $0x90] sm:$0xff] %v3062
        %3218 = vst [vmem:[%s255 + $0x98] sm:$0xff] %v3065
        %3219 = vst [vmem:[%s255 + $0xa0] sm:$0xff] %v3068
        %3220 = vst [vmem:[%s255 + $0xa8] sm:$0xff] %v3071
        %3221 = vst [vmem:[%s255 + $0xb0] sm:$0xff] %v3074
        %3222 = vst [vmem:[%s255 + $0xb8] sm:$0xff] %v3077
        %3223 = vst [vmem:[%s255 + $0xc0] sm:$0xff] %v3080
        %3224 = vst [vmem:[%s255 + $0xc8] sm:$0xff] %v3083
        %3225 = vst [vmem:[%s255 + $0xd0] sm:$0xff] %v3086
        %3226 = vst [vmem:[%s255 + $0xd8] sm:$0xff] %v3089
        %3227 = vst [vmem:[%s255 + $0xe0] sm:$0xff] %v3092
        %3228 = vst [vmem:[%s255 + $0xe8] sm:$0xff] %v3095
        %3229 = vst [vmem:[%s255 + $0xf0] sm:$0xff] %v3098
        %3230 = vst [vmem:[%s255 + $0xf8] sm:$0xff] %v3101
        %3231 = vst [vmem:[%s255 + $0x100] sm:$0xff] %v3104
        %3232 = vst [vmem:[%s255 + $0x108] sm:$0xff] %v3107
        %3233 = vst [vmem:[%s255 + $0x110] sm:$0xff] %v3110
        %3234 = vst [vmem:[%s255 + $0x118] sm:$0xff] %v3113
        %3235 = vst [vmem:[%s255 + $0x120] sm:$0xff] %v3116
        %3236 = vst [vmem:[%s255 + $0x128] sm:$0xff] %v3119
        %3237 = vst [vmem:[%s255 + $0x130] sm:$0xff] %v3122
        %3238 = vst [vmem:[%s255 + $0x138] sm:$0xff] %v3125
        %3239 = vst [vmem:[%s255 + $0x140] sm:$0xff] %v3128
        %3240 = vst [vmem:[%s255 + $0x148] sm:$0xff] %v3131
        %3241 = vst [vmem:[%s255 + $0x150] sm:$0xff] %v3134
        %3242 = vst [vmem:[%s255 + $0x158] sm:$0xff] %v3137
        %3243 = vst [vmem:[%s255 + $0x160] sm:$0xff] %v3140
        %3244 = vst [vmem:[%s255 + $0x168] sm:$0xff] %v3143
        %3245 = vst [vmem:[%s255 + $0x170] sm:$0xff] %v3146
        %3246 = vst [vmem:[%s255 + $0x178] sm:$0xff] %v3149
        %3247 = vst [vmem:[%s255 + $0x180] sm:$0xff] %v3152
        %3248 = vst [vmem:[%s255 + $0x188] sm:$0xff] %v3155
        %3249 = vst [vmem:[%s255 + $0x190] sm:$0xff] %v3158
        %3250 = vst [vmem:[%s255 + $0x198] sm:$0xff] %v3161
        %3251 = vst [vmem:[%s255 + $0x1a0] sm:$0xff] %v3164
        %3252 = vst [vmem:[%s255 + $0x1a8] sm:$0xff] %v3167
        %3253 = vst [vmem:[%s255 + $0x1b0] sm:$0xff] %v3170
        %3254 = vst [vmem:[%s255 + $0x1b8] sm:$0xff] %v3173
        %3255 = vst [vmem:[%s255 + $0x1c0] sm:$0xff] %v3176
        %3256 = vst [vmem:[%s255 + $0x1c8] sm:$0xff] %v3179
        %3257 = vst [vmem:[%s255 + $0x1d0] sm:$0xff] %v3182
        %3258 = vst [vmem:[%s255 + $0x1d8] sm:$0xff] %v3185
        %3259 = vst [vmem:[%s255 + $0x1e0] sm:$0xff] %v3188
        %3260 = vst [vmem:[%s255 + $0x1e8] sm:$0xff] %v3191
        %3261 = vst [vmem:[%s255 + $0x1f0] sm:$0xff] %v3194
        %3262 = vst [vmem:[%s255 + $0x1f8] sm:$0xff] %v3197
        %s3263 = sand.u32 %s127, 1
        %s3264 = scalar_lea.sflag [#allocation5], %s3263
        %s3265 = sand.u32 %s127, 1
        %s3266 = smul.addr %s3265, 512
        %s3267 = scalar_lea.vmem [#allocation9], %s3266
        // Predicated region
        $region49: #{tpu_custom_call.1} parent=31 // pred_check
          %p3268 = pneg %p137
        $region50: #{tpu_custom_call.1} parent=31 // pred_check_branch
          %3270 = sbr.rel (%p3268) target = $region52
        $region51: #{tpu_custom_call.1} parent=31 // pred_region
          #allocation11 [shape = 'u32[6]{0}', space=smem, size = 0x18, scoped, tag = 'DMA stride descriptor']
          %s3271 = smul.u32 2, %s26
          %s3272 = smul.u32 32, %s28
          %3274 = vsyncadd %s3264, 0
          %s3275 = sadd.s32 %s27, %s3272
          %s3276 = smul.addr %s3271, 64
          %s3277 = sadd.s32 %s3275, %s3276
          %s3278 = smul.addr %s3277, 8
          %s3279 = scalar_lea.hbm %s3, %s3278
          %s3281 = sshll.u32 1, 14
          %s3282 = sxor.u32 4294967295, %s3281
          %s3285 = sshll.u32 7, 18
          %s3286 = sxor.u32 4294967295, %s3285
          %s3287 = sand.u32 0, %s3286
          %s3289 = sor.u32 %s3287, 0
          %s3290 = sshll.u32 %s3267, 4
          %s3291 = int_to_ptr.vmem [resolvable:$true] %s3290
          %s3292 = sshll.u32 %s3279, 4
          %s3293 = int_to_ptr.hbm [resolvable:$true] %s3292
          %3299 = sst [smem:[#allocation11]] 4096
          %s3300 = scalar_lea.smem [#allocation11], 1
          %3301 = sst [smem:[%s3300]] 8192
          %s3302 = scalar_lea.smem [#allocation11], 2
          %3303 = sst [smem:[%s3302]] 32
          %s3304 = scalar_lea.smem [#allocation11], 3
          %3305 = sst [smem:[%s3304]] 128
          %s3306 = scalar_lea.smem [#allocation11], 4
          %3307 = sst [smem:[%s3306]] 128
          %s3308 = scalar_lea.smem [#allocation11], 5
          %3309 = sst [smem:[%s3308]] 8
          %3311 = dma.general %s3291, 8192, %s3293, %s3264, [#allocation10], [#allocation11], %s3289, 0
        $region52: #{tpu_custom_call.1} parent=31 // pred_fallthru
          _
      $region32: #{tpu_custom_call.1} parent=5 // pred_fallthru
        _
      %p3312 = scmp.le.s32.totalorder 2, %s16
      // Predicated region
      $region53: #{tpu_custom_call.1} parent=5 // pred_check
        %p3313 = pneg %p3312
      $region54: #{tpu_custom_call.1} parent=5 // pred_check_branch
        %3315 = sbr.rel (%p3313) target = $region56
      $region55: #{tpu_custom_call.1} parent=5 // pred_region
        %s3316 = ssub.s32 %s16, 2
        // Predicated region
        $region57: #{tpu_custom_call.1} parent=55 // pred_check
          %p3317 = pneg %p143
        $region58: #{tpu_custom_call.1} parent=55 // pred_check_branch
          %3319 = sbr.rel (%p3317) target = $region60
        $region59: #{tpu_custom_call.1} parent=55 // pred_region
          %s3320 = sand.u32 %s128, 1
          %s3321 = scalar_lea.sflag [#allocation5], %s3320
          %s3322 = sand.u32 %s128, 1
          %s3323 = smul.addr %s3322, 512
          %s3324 = scalar_lea.vmem [#allocation9], %s3323
          %3326 = dma.done %s3321, 8192
        $region60: #{tpu_custom_call.1} parent=55 // pred_fallthru
          _
      $region56: #{tpu_custom_call.1} parent=5 // pred_fallthru
        _
    $region6: #{tpu_custom_call.1} parent=1 // loop_footer
      %s20 = sadd.s32 1, %s16
    $region7: #{tpu_custom_call.1} parent=1 // loop_footer_branch
      %15 = sbr.rel target = $region3
    $region8: #{tpu_custom_call.1} parent=1 // loop_exit
      _
    %3327 = vsyncpa [#allocation4], 1
    %s3328 = scalar_lea.sflag [#allocation4], 1
    %3329 = vsyncpa %s3328, 1
    %3330 = vsyncpa [#allocation7], 1
    %3331 = vsyncpa [#allocation5], 1
    %s3332 = scalar_lea.sflag [#allocation5], 1
    %3333 = vsyncpa %s3332, 1

</llo_original>
